<compile_context>
chip_gen: v6e
topology: v6e:2x2x1
jax: 0.10.0
libtpu: 0.0.40
codegen_flags: <defaults>
</compile_context>

<pallas_src>
import jax
import jax.numpy as jnp
from jax import lax
from jax.experimental import pallas as pl
from jax.experimental.pallas import tpu as pltpu


def _round_up(n, m):
    return ((n + m - 1) // m) * m


def _siftnn_kernel(x1_ref, x2_ref,
                   w1a_ref, w1b_ref, b1_ref,
                   w2_ref, b2_ref,
                   w3_ref, b3_ref,
                   o_ref):
    f32 = jnp.float32

    # In-kernel cast to bf16 for the MXU (inputs arrive in native layout/dtype).
    x1 = x1_ref[...].astype(jnp.bfloat16)            # (TB, 128)
    x2 = x2_ref[...].astype(jnp.bfloat16)            # (TB, 128)

    # fc1 as two accumulating K=128 matmuls (no concat):
    #   (TB,128)@(128,64) + (TB,128)@(128,64) -> (TB,64) f32
    h1 = jnp.dot(x1, w1a_ref[...], preferred_element_type=f32)
    h1 = h1 + jnp.dot(x2, w1b_ref[...], preferred_element_type=f32)
    h1 = jnp.maximum(h1 + b1_ref[...], 0.0)          # ReLU, (TB, 64)

    # fc2: (TB,64)@(64,32) -> (TB,32) f32
    h2 = jnp.dot(h1.astype(jnp.bfloat16), w2_ref[...], preferred_element_type=f32)
    h2 = jnp.maximum(h2 + b2_ref[...], 0.0)          # ReLU, (TB, 32)

    # fc3 (output width 1): contract the 32-wide feature axis of both operands.
    # W3 is zero-padded to (8, 32) (sublane-aligned lhs); row 0 of the (8, TB)
    # result is the real output -> lane-dense (1, TB) row, unmasked stores.
    z = lax.dot_general(w3_ref[...], h2,
                        dimension_numbers=(((1,), (1,)), ((), ())),
                        preferred_element_type=f32)  # (8, TB)
    z = z[0:1, :] + b3_ref[...]                      # (1, TB)

    # sigmoid: exp + reciprocal both run on the (otherwise idle) EUP slot.
    o_ref[...] = pl.reciprocal(1.0 + jnp.exp(-z), approx=True)


def siftnn_forward(x1, x2, params, *, block_cols=8192):
    """x1, x2: (128,) or (B, 128) SIFT descriptors (f32 or bf16).

    Returns sigmoid probabilities of shape (B,) ((1,) for a single pair,
    matching the PyTorch module's output shape).
    """
    w1, b1, w2, b2, w3, b3 = params   # PyTorch layout: (64,256),(64,),(32,64),(32,),(1,32),(1,)

    def _norm(x):
        x = jnp.atleast_2d(x)
        if x.dtype not in (jnp.bfloat16, jnp.float16, jnp.float32):
            x = x.astype(jnp.float32)   # e.g. f64/int inputs; TPU has no f64 path
        return x

    x1 = _norm(x1)                      # (B, 128) -- never padded / transposed /
    x2 = _norm(x2)                      # re-cast in the wrapper (no extra HBM pass)
    B = x1.shape[0]

    # Batch tile (rows per grid step); also the output lane width -> multiple of 128.
    TB = min(_round_up(block_cols, 128), _round_up(B, 128))
    Bp = _round_up(B, TB)               # only the tiny OUTPUT is padded to full tiles
    grid = (Bp // TB,)

    # VMEM-resident parameters, pre-transposed to (in, out) for batch-major matmuls.
    w1a = w1[:, :128].T.astype(jnp.bfloat16)                 # (128, 64)
    w1b = w1[:, 128:].T.astype(jnp.bfloat16)                 # (128, 64)
    w2t = w2.T.astype(jnp.bfloat16)                          # (64, 32)
    b1r = b1.reshape(1, 64).astype(jnp.float32)
    b2r = b2.reshape(1, 32).astype(jnp.float32)
    w3p = jnp.zeros((8, 32), jnp.float32).at[0].set(w3.reshape(32).astype(jnp.float32))
    b3r = b3.reshape(1, 1).astype(jnp.float32)

    def resident(shape):
        # Constant block index -> parameter stays resident in VMEM across the grid.
        return pl.BlockSpec(shape, lambda i: (0, 0))

    x_bytes = x1.dtype.itemsize
    # Rough VMEM budget: double-buffered input blocks + whole-tile intermediates.
    in_buf_bytes = 2 * 2 * TB * 128 * x_bytes
    scratch_bytes = TB * 1536
    vmem_limit = min(100 * 1024 * 1024,
                     max(32 * 1024 * 1024, int(1.5 * (in_buf_bytes + scratch_bytes))))

    cost = pl.CostEstimate(
        flops=2 * B * (256 * 64 + 64 * 32 + 32),
        transcendentals=2 * B,
        bytes_accessed=2 * B * 128 * x_bytes + Bp * 4 + 40 * 1024,
    )

    out = pl.pallas_call(
        _siftnn_kernel,
        out_shape=jax.ShapeDtypeStruct((1, Bp), jnp.float32),
        grid=grid,
        in_specs=[
            pl.BlockSpec((TB, 128), lambda i: (i, 0)),   # x1 tile (native layout)
            pl.BlockSpec((TB, 128), lambda i: (i, 0)),   # x2 tile
            resident((128, 64)),                         # W1[:, :128]^T
            resident((128, 64)),                         # W1[:, 128:]^T
            resident((1, 64)),                           # b1
            resident((64, 32)),                          # W2^T
            resident((1, 32)),                           # b2
            resident((8, 32)),                           # W3 (row 0), sublane-padded
            resident((1, 1)),                            # b3
        ],
        out_specs=pl.BlockSpec((1, TB), lambda i: (0, i)),
        compiler_params=pltpu.CompilerParams(
            dimension_semantics=("parallel",),           # megacore sharding on v7x
            vmem_limit_bytes=vmem_limit,
        ),
        cost_estimate=cost,
    )(x1, x2, w1a, w1b, b1r, w2t, b2r, w3p, b3r)

    return out[0, :B]


def init_params(key):
    """Deterministic init matching nn.Linear shapes (PyTorch (out, in) layout)."""
    def linear(k, fan_in, fan_out):
        kw, kb = jax.random.split(k)
        bound = 1.0 / jnp.sqrt(jnp.float32(fan_in))
        w = jax.random.uniform(kw, (fan_out, fan_in), jnp.float32, -bound, bound)
        b = jax.random.uniform(kb, (fan_out,), jnp.float32, -bound, bound)
        return w, b

    k1, k2, k3 = jax.random.split(key, 3)
    w1, b1 = linear(k1, 256, 64)
    w2, b2 = linear(k2, 64, 32)
    w3, b3 = linear(k3, 32, 1)
    return (w1, b1, w2, b2, w3, b3)


def reference_forward(x1, x2, params):
    """Pure-JAX reference with the same bf16 storage precision as the kernel."""
    w1, b1, w2, b2, w3, b3 = params
    f32 = jnp.float32
    x1 = jnp.atleast_2d(x1).astype(jnp.bfloat16).astype(f32)
    x2 = jnp.atleast_2d(x2).astype(jnp.bfloat16).astype(f32)
    x = jnp.concatenate([x1, x2], axis=-1)
    w1f = w1.astype(jnp.bfloat16).astype(f32)
    w2f = w2.astype(jnp.bfloat16).astype(f32)

    h1 = jnp.maximum(jnp.matmul(x, w1f.T, precision="highest") + b1, 0.0)
    h1 = h1.astype(jnp.bfloat16).astype(f32)
    h2 = jnp.maximum(jnp.matmul(h1, w2f.T, precision="highest") + b2, 0.0)
    z = jnp.matmul(h2, w3.T.astype(f32), precision="highest") + b3
    return (1.0 / (1.0 + jnp.exp(-z)))[:, 0]


if __name__ == "__main__":
    key = jax.random.PRNGKey(0)
    kp, kx1, kx2 = jax.random.split(key, 3)

    params = init_params(kp)

    # Batched demo: 1000 descriptor pairs (exercises the unpadded ragged last
    # block and the lane-dense padded output).
    B = 1000
    x1 = jax.random.uniform(kx1, (B, 128), jnp.float32)
    x2 = jax.random.uniform(kx2, (B, 128), jnp.float32)

    ref = reference_forward(x1, x2, params)

    out = jax.block_until_ready(siftnn_forward(x1, x2, params))
    assert out.shape == (B,), out.shape
    err = float(jnp.max(jnp.abs(out - ref)))
    assert err < 5e-3, ("batched mismatch", err)

    # Multi-block grid (weight residency across grid steps + output tiling).
    out_small = jax.block_until_ready(siftnn_forward(x1, x2, params, block_cols=256))
    err_small = float(jnp.max(jnp.abs(out_small - ref)))
    assert err_small < 5e-3, ("multi-block mismatch", err_small)

    # Single-pair path (matches the original module's (x1, x2) -> (1,) signature).
    o1 = jax.block_until_ready(siftnn_forward(x1[0], x2[0], params))
    assert o1.shape == (1,), o1.shape
    assert jnp.allclose(o1, ref[:1], atol=5e-3), (o1, ref[:1])

    print("KERNEL_OK")
</pallas_src>

<mosaic_0001>
module attributes {stable_mosaic.version = 11 : i64} {
  func.func @_siftnn_kernel(%arg0: i32, %arg1: memref<1024x128xf32, #tpu.memory_space<vmem>>, %arg2: memref<1024x128xf32, #tpu.memory_space<vmem>>, %arg3: memref<128x64xbf16, #tpu.memory_space<vmem>>, %arg4: memref<128x64xbf16, #tpu.memory_space<vmem>>, %arg5: memref<1x64xf32, #tpu.memory_space<vmem>>, %arg6: memref<64x32xbf16, #tpu.memory_space<vmem>>, %arg7: memref<1x32xf32, #tpu.memory_space<vmem>>, %arg8: memref<8x32xf32, #tpu.memory_space<vmem>>, %arg9: memref<1x1xf32, #tpu.memory_space<vmem>>, %arg10: memref<1x1024xf32, #tpu.memory_space<vmem>>) attributes {dimension_semantics = [#tpu.dimension_semantics<parallel>], iteration_bounds = array<i64: 1>, scalar_prefetch = 0 : i64, scratch_operands = 0 : i64, tpu.core_type = #tpu.core_type<tc>, window_params = [{transform_indices = @transform_0, window_bounds = array<i64: 1024, 128>}, {transform_indices = @transform_1, window_bounds = array<i64: 1024, 128>}, {pipeline_mode = #tpu.pipeline_mode<synchronous>, transform_indices = @transform_2, window_bounds = array<i64: 128, 64>}, {pipeline_mode = #tpu.pipeline_mode<synchronous>, transform_indices = @transform_3, window_bounds = array<i64: 128, 64>}, {pipeline_mode = #tpu.pipeline_mode<synchronous>, transform_indices = @transform_4, window_bounds = array<i64: 1, 64>}, {pipeline_mode = #tpu.pipeline_mode<synchronous>, transform_indices = @transform_5, window_bounds = array<i64: 64, 32>}, {pipeline_mode = #tpu.pipeline_mode<synchronous>, transform_indices = @transform_6, window_bounds = array<i64: 1, 32>}, {pipeline_mode = #tpu.pipeline_mode<synchronous>, transform_indices = @transform_7, window_bounds = array<i64: 8, 32>}, {pipeline_mode = #tpu.pipeline_mode<synchronous>, transform_indices = @transform_8, window_bounds = array<i64: 1, 1>}, {transform_indices = @transform_9, window_bounds = array<i64: 1, 1024>}]} {
    %c0 = arith.constant 0 : index
    %c0_0 = arith.constant 0 : index
    %0 = vector.load %arg1[%c0, %c0_0] : memref<1024x128xf32, #tpu.memory_space<vmem>>, vector<1024x128xf32>
    %1 = arith.truncf %0 : vector<1024x128xf32> to vector<1024x128xbf16>
    %c0_1 = arith.constant 0 : index
    %c0_2 = arith.constant 0 : index
    %2 = vector.load %arg2[%c0_1, %c0_2] : memref<1024x128xf32, #tpu.memory_space<vmem>>, vector<1024x128xf32>
    %3 = arith.truncf %2 : vector<1024x128xf32> to vector<1024x128xbf16>
    %c0_3 = arith.constant 0 : index
    %c0_4 = arith.constant 0 : index
    %4 = vector.load %arg3[%c0_3, %c0_4] : memref<128x64xbf16, #tpu.memory_space<vmem>>, vector<128x64xbf16>
    %cst = arith.constant dense<0.000000e+00> : vector<1024x64xf32>
    %5 = tpu.matmul %1, %4, %cst {dimension_numbers = #tpu.dot_dimension_numbers<[1], [0], [0], [1], [0, 0, 1, 1], [], []>} : vector<1024x128xbf16>, vector<128x64xbf16>, vector<1024x64xf32> -> vector<1024x64xf32>
    %c0_5 = arith.constant 0 : index
    %c0_6 = arith.constant 0 : index
    %6 = vector.load %arg4[%c0_5, %c0_6] : memref<128x64xbf16, #tpu.memory_space<vmem>>, vector<128x64xbf16>
    %cst_7 = arith.constant dense<0.000000e+00> : vector<1024x64xf32>
    %7 = tpu.matmul %3, %6, %cst_7 {dimension_numbers = #tpu.dot_dimension_numbers<[1], [0], [0], [1], [0, 0, 1, 1], [], []>} : vector<1024x128xbf16>, vector<128x64xbf16>, vector<1024x64xf32> -> vector<1024x64xf32>
    %8 = arith.addf %5, %7 : vector<1024x64xf32>
    %c0_8 = arith.constant 0 : index
    %c0_9 = arith.constant 0 : index
    %9 = vector.load %arg5[%c0_8, %c0_9] : memref<1x64xf32, #tpu.memory_space<vmem>>, vector<1x64xf32>
    %10 = vector.broadcast %9 : vector<1x64xf32> to vector<1024x64xf32>
    %11 = arith.addf %8, %10 : vector<1024x64xf32>
    %cst_10 = arith.constant 0.000000e+00 : f32
    %12 = vector.broadcast %cst_10 : f32 to vector<1024x64xf32>
    %13 = arith.maximumf %11, %12 : vector<1024x64xf32>
    %14 = arith.truncf %13 : vector<1024x64xf32> to vector<1024x64xbf16>
    %c0_11 = arith.constant 0 : index
    %c0_12 = arith.constant 0 : index
    %15 = vector.load %arg6[%c0_11, %c0_12] : memref<64x32xbf16, #tpu.memory_space<vmem>>, vector<64x32xbf16>
    %cst_13 = arith.constant dense<0.000000e+00> : vector<1024x32xf32>
    %16 = tpu.matmul %14, %15, %cst_13 {dimension_numbers = #tpu.dot_dimension_numbers<[1], [0], [0], [1], [0, 0, 1, 1], [], []>} : vector<1024x64xbf16>, vector<64x32xbf16>, vector<1024x32xf32> -> vector<1024x32xf32>
    %c0_14 = arith.constant 0 : index
    %c0_15 = arith.constant 0 : index
    %17 = vector.load %arg7[%c0_14, %c0_15] : memref<1x32xf32, #tpu.memory_space<vmem>>, vector<1x32xf32>
    %18 = vector.broadcast %17 : vector<1x32xf32> to vector<1024x32xf32>
    %19 = arith.addf %16, %18 : vector<1024x32xf32>
    %cst_16 = arith.constant 0.000000e+00 : f32
    %20 = vector.broadcast %cst_16 : f32 to vector<1024x32xf32>
    %21 = arith.maximumf %19, %20 : vector<1024x32xf32>
    %c0_17 = arith.constant 0 : index
    %c0_18 = arith.constant 0 : index
    %22 = vector.load %arg8[%c0_17, %c0_18] : memref<8x32xf32, #tpu.memory_space<vmem>>, vector<8x32xf32>
    %cst_19 = arith.constant dense<0.000000e+00> : vector<8x1024xf32>
    %23 = tpu.matmul %22, %21, %cst_19 {dimension_numbers = #tpu.dot_dimension_numbers<[1], [1], [0], [0], [0, 0, 1, 0], [], []>} : vector<8x32xf32>, vector<1024x32xf32>, vector<8x1024xf32> -> vector<8x1024xf32>
    %24 = vector.extract_strided_slice %23 {offsets = [0, 0], sizes = [1, 1024], strides = [1, 1]} : vector<8x1024xf32> to vector<1x1024xf32>
    %c0_20 = arith.constant 0 : index
    %c0_21 = arith.constant 0 : index
    %25 = vector.load %arg9[%c0_20, %c0_21] : memref<1x1xf32, #tpu.memory_space<vmem>>, vector<1x1xf32>
    %26 = vector.broadcast %25 : vector<1x1xf32> to vector<1x1024xf32>
    %27 = arith.addf %24, %26 : vector<1x1024xf32>
    %cst_22 = arith.constant 0.000000e+00 : f32
    %28 = vector.broadcast %cst_22 : f32 to vector<1x1024xf32>
    %29 = arith.subf %28, %27 : vector<1x1024xf32>
    %30 = math.exp %29 : vector<1x1024xf32>
    %cst_23 = arith.constant 1.000000e+00 : f32
    %31 = vector.broadcast %cst_23 : f32 to vector<1x1024xf32>
    %32 = arith.addf %31, %30 : vector<1x1024xf32>
    %33 = tpu.reciprocal %32 {approx = true} : vector<1x1024xf32> -> vector<1x1024xf32>
    %c0_24 = arith.constant 0 : index
    %c0_25 = arith.constant 0 : index
    %34 = vector.load %arg10[%c0_24, %c0_25] : memref<1x1024xf32, #tpu.memory_space<vmem>>, vector<1x1024xf32>
    tpu.vector_store %arg10[%c0_24, %c0_25], %33 {strides = array<i32>} : memref<1x1024xf32, #tpu.memory_space<vmem>>, vector<1x1024xf32>,
    return
  }
  func.func @transform_0(%arg0: i32) -> (i32, i32) {
    %c0_i32 = arith.constant 0 : i32
    %c0_i32_0 = arith.constant 0 : i32
    return %arg0, %c0_i32 : i32, i32
  }
  func.func @transform_1(%arg0: i32) -> (i32, i32) {
    %c0_i32 = arith.constant 0 : i32
    %c0_i32_0 = arith.constant 0 : i32
    return %arg0, %c0_i32 : i32, i32
  }
  func.func @transform_2(%arg0: i32) -> (i32, i32) {
    %c0_i32 = arith.constant 0 : i32
    %c0_i32_0 = arith.constant 0 : i32
    %c0_i32_1 = arith.constant 0 : i32
    return %c0_i32, %c0_i32_0 : i32, i32
  }
  func.func @transform_3(%arg0: i32) -> (i32, i32) {
    %c0_i32 = arith.constant 0 : i32
    %c0_i32_0 = arith.constant 0 : i32
    %c0_i32_1 = arith.constant 0 : i32
    return %c0_i32, %c0_i32_0 : i32, i32
  }
  func.func @transform_4(%arg0: i32) -> (i32, i32) {
    %c0_i32 = arith.constant 0 : i32
    %c0_i32_0 = arith.constant 0 : i32
    %c0_i32_1 = arith.constant 0 : i32
    return %c0_i32, %c0_i32_0 : i32, i32
  }
  func.func @transform_5(%arg0: i32) -> (i32, i32) {
    %c0_i32 = arith.constant 0 : i32
    %c0_i32_0 = arith.constant 0 : i32
    %c0_i32_1 = arith.constant 0 : i32
    return %c0_i32, %c0_i32_0 : i32, i32
  }
  func.func @transform_6(%arg0: i32) -> (i32, i32) {
    %c0_i32 = arith.constant 0 : i32
    %c0_i32_0 = arith.constant 0 : i32
    %c0_i32_1 = arith.constant 0 : i32
    return %c0_i32, %c0_i32_0 : i32, i32
  }
  func.func @transform_7(%arg0: i32) -> (i32, i32) {
    %c0_i32 = arith.constant 0 : i32
    %c0_i32_0 = arith.constant 0 : i32
    %c0_i32_1 = arith.constant 0 : i32
    return %c0_i32, %c0_i32_0 : i32, i32
  }
  func.func @transform_8(%arg0: i32) -> (i32, i32) {
    %c0_i32 = arith.constant 0 : i32
    %c0_i32_0 = arith.constant 0 : i32
    %c0_i32_1 = arith.constant 0 : i32
    return %c0_i32, %c0_i32_0 : i32, i32
  }
  func.func @transform_9(%arg0: i32) -> (i32, i32) {
    %c0_i32 = arith.constant 0 : i32
    %c0_i32_0 = arith.constant 0 : i32
    return %c0_i32, %arg0 : i32, i32
  }
}

</mosaic_0001>

<llo_original>
// kernel: tpu_custom_call.1
$region0: #{tpu_custom_call.1}
  #allocation0 [shape = 'u32[]', space=smem, size = 0x4, offset = 0x4, fixed_abs, tag = 'smem constant byte address 0x4 - core index']
  #allocation1 [shape = 'u32[144,128]{1,0:T(1,128)}', space=vmem, size = 0x12000, scoped, tag = 'internal scratch']
  #allocation2 [shape = 'f32[1,1]{1,0:T(1,128)S(1)}', space=vmem, size = 0x200, scoped, tag = 'scoped memory for tpu_custom_call.1']
  %s0 = inlined_call_operand.hbm [shape: f32[1000,128], index: 0, kind: input, shape index: {}]
  %s1 = inlined_call_operand.hbm [shape: f32[1000,128], index: 1, kind: input, shape index: {}]
  %s2 = inlined_call_operand.vmem [shape: bf16[128,64], index: 2, kind: input, shape index: {}]
  %s3 = inlined_call_operand.vmem [shape: bf16[128,64], index: 3, kind: input, shape index: {}]
  %s4 = inlined_call_operand.vmem [shape: f32[1,64], index: 4, kind: input, shape index: {}]
  %s5 = inlined_call_operand.vmem [shape: bf16[64,32], index: 5, kind: input, shape index: {}]
  %s6 = inlined_call_operand.vmem [shape: f32[1,32], index: 6, kind: input, shape index: {}]
  %s7 = inlined_call_operand.vmem [shape: f32[8,32], index: 7, kind: input, shape index: {}]
  %s8 = inlined_call_operand.<no memory space> [shape: f32[1,1], index: 8, kind: input, shape index: {}]
  %s9 = inlined_call_operand.hbm [shape: f32[1,1024], index: 9, kind: output, shape index: {}]
  %s10 = sld [smem:[#allocation0]]
  $region54: #{tpu_custom_call.1} parent=0
    _
  %s12 = ssub.s32 1, %s10
  %s13 = scalar_select 0, %s12, %s10
  %v14 = vstv %s8
  %15 = vst [vmem:[#allocation2] sm:$0x1] %v14
  $region1: #{tpu_custom_call.1} parent=0
    #allocation3 [shape = 'u8[524288]{0}', space=vmem, size = 0x80000, scoped, tag = 'input window, operand 0, single buffered']
    #allocation4 [shape = 's32[1]{0}', space=sflag, size = 0x4, scoped, tag = 'scoped memory for tpu_custom_call.1']
    #allocation5 [shape = 's32[1]{0}', space=sflag, size = 0x4, scoped, tag = 'scoped memory for tpu_custom_call.1']
    #allocation6 [shape = 'u8[524288]{0}', space=vmem, size = 0x80000, scoped, tag = 'input window, operand 1, single buffered']
    #allocation7 [shape = 's32[1]{0}', space=sflag, size = 0x4, scoped, tag = 'scoped memory for tpu_custom_call.1']
    #allocation8 [shape = 'u8[4096]{0}', space=vmem, size = 0x1000, scoped, tag = 'output window, operand 0, single buffered']
    %16 = vsyncpa [#allocation4], 0
    %17 = vsyncpa [#allocation7], 0
    %18 = vsyncpa [#allocation5], 0
    // Predicated region
    $region2: #{tpu_custom_call.1} parent=1 // pred_check
      _
    $region3: #{tpu_custom_call.1} parent=1 // pred_check_branch
      %20 = sbr.rel (0) target = $region5
    $region4: #{tpu_custom_call.1} parent=1 // pred_region
      %s22 = ssub.s32 16384, 16000
      %23 = vsyncadd [#allocation4], %s22
      %s24 = sshll.u32 [#allocation3], 4
      %s25 = int_to_ptr.vmem [resolvable:$true] %s24
      %30 = dma.hbm_to_vmem [thread:$0]  %s0, 16000, %s25, [#allocation4], 128, 128, 8
    $region5: #{tpu_custom_call.1} parent=1 // pred_fallthru
      _
    // Predicated region
    $region6: #{tpu_custom_call.1} parent=1 // pred_check
      _
    $region7: #{tpu_custom_call.1} parent=1 // pred_check_branch
      %32 = sbr.rel (0) target = $region9
    $region8: #{tpu_custom_call.1} parent=1 // pred_region
      %s34 = ssub.s32 16384, 16000
      %35 = vsyncadd [#allocation7], %s34
      %s36 = sshll.u32 [#allocation6], 4
      %s37 = int_to_ptr.vmem [resolvable:$true] %s36
      %42 = dma.hbm_to_vmem [thread:$0]  %s1, 16000, %s37, [#allocation7], 128, 128, 8
    $region9: #{tpu_custom_call.1} parent=1 // pred_fallthru
      _
    // Predicated region
    $region10: #{tpu_custom_call.1} parent=1 // pred_check
      _
    $region11: #{tpu_custom_call.1} parent=1 // pred_check_branch
      %44 = sbr.rel (0) target = $region13
    $region12: #{tpu_custom_call.1} parent=1 // pred_region
      _
    $region13: #{tpu_custom_call.1} parent=1 // pred_fallthru
      _
    // Predicated region
    $region14: #{tpu_custom_call.1} parent=1 // pred_check
      _
    $region15: #{tpu_custom_call.1} parent=1 // pred_check_branch
      %46 = sbr.rel (0) target = $region17
    $region16: #{tpu_custom_call.1} parent=1 // pred_region
      _
    $region17: #{tpu_custom_call.1} parent=1 // pred_fallthru
      _
    // Predicated region
    $region18: #{tpu_custom_call.1} parent=1 // pred_check
      _
    $region19: #{tpu_custom_call.1} parent=1 // pred_check_branch
      %48 = sbr.rel (0) target = $region21
    $region20: #{tpu_custom_call.1} parent=1 // pred_region
      _
    $region21: #{tpu_custom_call.1} parent=1 // pred_fallthru
      _
    // Predicated region
    $region22: #{tpu_custom_call.1} parent=1 // pred_check
      _
    $region23: #{tpu_custom_call.1} parent=1 // pred_check_branch
      %50 = sbr.rel (0) target = $region25
    $region24: #{tpu_custom_call.1} parent=1 // pred_region
      _
    $region25: #{tpu_custom_call.1} parent=1 // pred_fallthru
      _
    // Predicated region
    $region26: #{tpu_custom_call.1} parent=1 // pred_check
      _
    $region27: #{tpu_custom_call.1} parent=1 // pred_check_branch
      %52 = sbr.rel (0) target = $region29
    $region28: #{tpu_custom_call.1} parent=1 // pred_region
      _
    $region29: #{tpu_custom_call.1} parent=1 // pred_fallthru
      _
    // Predicated region
    $region30: #{tpu_custom_call.1} parent=1 // pred_check
      _
    $region31: #{tpu_custom_call.1} parent=1 // pred_check_branch
      %54 = sbr.rel (0) target = $region33
    $region32: #{tpu_custom_call.1} parent=1 // pred_region
      _
    $region33: #{tpu_custom_call.1} parent=1 // pred_fallthru
      _
    // Predicated region
    $region34: #{tpu_custom_call.1} parent=1 // pred_check
      _
    $region35: #{tpu_custom_call.1} parent=1 // pred_check_branch
      %56 = sbr.rel (0) target = $region37
    $region36: #{tpu_custom_call.1} parent=1 // pred_region
      _
    $region37: #{tpu_custom_call.1} parent=1 // pred_fallthru
      _
    // Predicated region
    $region38: #{tpu_custom_call.1} parent=1 // pred_check
      _
    $region39: #{tpu_custom_call.1} parent=1 // pred_check_branch
      %58 = sbr.rel (0) target = $region41
    $region40: #{tpu_custom_call.1} parent=1 // pred_region
      %59 = dma.done [#allocation4], 16384
    $region41: #{tpu_custom_call.1} parent=1 // pred_fallthru
      _
    // Predicated region
    $region42: #{tpu_custom_call.1} parent=1 // pred_check
      _
    $region43: #{tpu_custom_call.1} parent=1 // pred_check_branch
      %61 = sbr.rel (0) target = $region45
    $region44: #{tpu_custom_call.1} parent=1 // pred_region
      %62 = dma.done [#allocation7], 16384
    $region45: #{tpu_custom_call.1} parent=1 // pred_fallthru
      _
    %v64 = vld [vmem:[#allocation3] sm:$0xff]
    %v65 = vld [vmem:[#allocation3 + $0x8] sm:$0xff]
    %v66 = vld [vmem:[#allocation3 + $0x10] sm:$0xff]
    %v67 = vld [vmem:[#allocation3 + $0x18] sm:$0xff]
    %v68 = vld [vmem:[#allocation3 + $0x20] sm:$0xff]
    %v69 = vld [vmem:[#allocation3 + $0x28] sm:$0xff]
    %v70 = vld [vmem:[#allocation3 + $0x30] sm:$0xff]
    %v71 = vld [vmem:[#allocation3 + $0x38] sm:$0xff]
    %v72 = vld [vmem:[#allocation3 + $0x40] sm:$0xff]
    %v73 = vld [vmem:[#allocation3 + $0x48] sm:$0xff]
    %v74 = vld [vmem:[#allocation3 + $0x50] sm:$0xff]
    %v75 = vld [vmem:[#allocation3 + $0x58] sm:$0xff]
    %v76 = vld [vmem:[#allocation3 + $0x60] sm:$0xff]
    %v77 = vld [vmem:[#allocation3 + $0x68] sm:$0xff]
    %v78 = vld [vmem:[#allocation3 + $0x70] sm:$0xff]
    %v79 = vld [vmem:[#allocation3 + $0x78] sm:$0xff]
    %v80 = vld [vmem:[#allocation3 + $0x80] sm:$0xff]
    %v81 = vld [vmem:[#allocation3 + $0x88] sm:$0xff]
    %v82 = vld [vmem:[#allocation3 + $0x90] sm:$0xff]
    %v83 = vld [vmem:[#allocation3 + $0x98] sm:$0xff]
    %v84 = vld [vmem:[#allocation3 + $0xa0] sm:$0xff]
    %v85 = vld [vmem:[#allocation3 + $0xa8] sm:$0xff]
    %v86 = vld [vmem:[#allocation3 + $0xb0] sm:$0xff]
    %v87 = vld [vmem:[#allocation3 + $0xb8] sm:$0xff]
    %v88 = vld [vmem:[#allocation3 + $0xc0] sm:$0xff]
    %v89 = vld [vmem:[#allocation3 + $0xc8] sm:$0xff]
    %v90 = vld [vmem:[#allocation3 + $0xd0] sm:$0xff]
    %v91 = vld [vmem:[#allocation3 + $0xd8] sm:$0xff]
    %v92 = vld [vmem:[#allocation3 + $0xe0] sm:$0xff]
    %v93 = vld [vmem:[#allocation3 + $0xe8] sm:$0xff]
    %v94 = vld [vmem:[#allocation3 + $0xf0] sm:$0xff]
    %v95 = vld [vmem:[#allocation3 + $0xf8] sm:$0xff]
    %v96 = vld [vmem:[#allocation3 + $0x100] sm:$0xff]
    %v97 = vld [vmem:[#allocation3 + $0x108] sm:$0xff]
    %v98 = vld [vmem:[#allocation3 + $0x110] sm:$0xff]
    %v99 = vld [vmem:[#allocation3 + $0x118] sm:$0xff]
    %v100 = vld [vmem:[#allocation3 + $0x120] sm:$0xff]
    %v101 = vld [vmem:[#allocation3 + $0x128] sm:$0xff]
    %v102 = vld [vmem:[#allocation3 + $0x130] sm:$0xff]
    %v103 = vld [vmem:[#allocation3 + $0x138] sm:$0xff]
    %v104 = vld [vmem:[#allocation3 + $0x140] sm:$0xff]
    %v105 = vld [vmem:[#allocation3 + $0x148] sm:$0xff]
    %v106 = vld [vmem:[#allocation3 + $0x150] sm:$0xff]
    %v107 = vld [vmem:[#allocation3 + $0x158] sm:$0xff]
    %v108 = vld [vmem:[#allocation3 + $0x160] sm:$0xff]
    %v109 = vld [vmem:[#allocation3 + $0x168] sm:$0xff]
    %v110 = vld [vmem:[#allocation3 + $0x170] sm:$0xff]
    %v111 = vld [vmem:[#allocation3 + $0x178] sm:$0xff]
    %v112 = vld [vmem:[#allocation3 + $0x180] sm:$0xff]
    %v113 = vld [vmem:[#allocation3 + $0x188] sm:$0xff]
    %v114 = vld [vmem:[#allocation3 + $0x190] sm:$0xff]
    %v115 = vld [vmem:[#allocation3 + $0x198] sm:$0xff]
    %v116 = vld [vmem:[#allocation3 + $0x1a0] sm:$0xff]
    %v117 = vld [vmem:[#allocation3 + $0x1a8] sm:$0xff]
    %v118 = vld [vmem:[#allocation3 + $0x1b0] sm:$0xff]
    %v119 = vld [vmem:[#allocation3 + $0x1b8] sm:$0xff]
    %v120 = vld [vmem:[#allocation3 + $0x1c0] sm:$0xff]
    %v121 = vld [vmem:[#allocation3 + $0x1c8] sm:$0xff]
    %v122 = vld [vmem:[#allocation3 + $0x1d0] sm:$0xff]
    %v123 = vld [vmem:[#allocation3 + $0x1d8] sm:$0xff]
    %v124 = vld [vmem:[#allocation3 + $0x1e0] sm:$0xff]
    %v125 = vld [vmem:[#allocation3 + $0x1e8] sm:$0xff]
    %v126 = vld [vmem:[#allocation3 + $0x1f0] sm:$0xff]
    %v127 = vld [vmem:[#allocation3 + $0x1f8] sm:$0xff]
    %v128 = vld [vmem:[#allocation3 + $0x200] sm:$0xff]
    %v129 = vld [vmem:[#allocation3 + $0x208] sm:$0xff]
    %v130 = vld [vmem:[#allocation3 + $0x210] sm:$0xff]
    %v131 = vld [vmem:[#allocation3 + $0x218] sm:$0xff]
    %v132 = vld [vmem:[#allocation3 + $0x220] sm:$0xff]
    %v133 = vld [vmem:[#allocation3 + $0x228] sm:$0xff]
    %v134 = vld [vmem:[#allocation3 + $0x230] sm:$0xff]
    %v135 = vld [vmem:[#allocation3 + $0x238] sm:$0xff]
    %v136 = vld [vmem:[#allocation3 + $0x240] sm:$0xff]
    %v137 = vld [vmem:[#allocation3 + $0x248] sm:$0xff]
    %v138 = vld [vmem:[#allocation3 + $0x250] sm:$0xff]
    %v139 = vld [vmem:[#allocation3 + $0x258] sm:$0xff]
    %v140 = vld [vmem:[#allocation3 + $0x260] sm:$0xff]
    %v141 = vld [vmem:[#allocation3 + $0x268] sm:$0xff]
    %v142 = vld [vmem:[#allocation3 + $0x270] sm:$0xff]
    %v143 = vld [vmem:[#allocation3 + $0x278] sm:$0xff]
    %v144 = vld [vmem:[#allocation3 + $0x280] sm:$0xff]
    %v145 = vld [vmem:[#allocation3 + $0x288] sm:$0xff]
    %v146 = vld [vmem:[#allocation3 + $0x290] sm:$0xff]
    %v147 = vld [vmem:[#allocation3 + $0x298] sm:$0xff]
    %v148 = vld [vmem:[#allocation3 + $0x2a0] sm:$0xff]
    %v149 = vld [vmem:[#allocation3 + $0x2a8] sm:$0xff]
    %v150 = vld [vmem:[#allocation3 + $0x2b0] sm:$0xff]
    %v151 = vld [vmem:[#allocation3 + $0x2b8] sm:$0xff]
    %v152 = vld [vmem:[#allocation3 + $0x2c0] sm:$0xff]
    %v153 = vld [vmem:[#allocation3 + $0x2c8] sm:$0xff]
    %v154 = vld [vmem:[#allocation3 + $0x2d0] sm:$0xff]
    %v155 = vld [vmem:[#allocation3 + $0x2d8] sm:$0xff]
    %v156 = vld [vmem:[#allocation3 + $0x2e0] sm:$0xff]
    %v157 = vld [vmem:[#allocation3 + $0x2e8] sm:$0xff]
    %v158 = vld [vmem:[#allocation3 + $0x2f0] sm:$0xff]
    %v159 = vld [vmem:[#allocation3 + $0x2f8] sm:$0xff]
    %v160 = vld [vmem:[#allocation3 + $0x300] sm:$0xff]
    %v161 = vld [vmem:[#allocation3 + $0x308] sm:$0xff]
    %v162 = vld [vmem:[#allocation3 + $0x310] sm:$0xff]
    %v163 = vld [vmem:[#allocation3 + $0x318] sm:$0xff]
    %v164 = vld [vmem:[#allocation3 + $0x320] sm:$0xff]
    %v165 = vld [vmem:[#allocation3 + $0x328] sm:$0xff]
    %v166 = vld [vmem:[#allocation3 + $0x330] sm:$0xff]
    %v167 = vld [vmem:[#allocation3 + $0x338] sm:$0xff]
    %v168 = vld [vmem:[#allocation3 + $0x340] sm:$0xff]
    %v169 = vld [vmem:[#allocation3 + $0x348] sm:$0xff]
    %v170 = vld [vmem:[#allocation3 + $0x350] sm:$0xff]
    %v171 = vld [vmem:[#allocation3 + $0x358] sm:$0xff]
    %v172 = vld [vmem:[#allocation3 + $0x360] sm:$0xff]
    %v173 = vld [vmem:[#allocation3 + $0x368] sm:$0xff]
    %v174 = vld [vmem:[#allocation3 + $0x370] sm:$0xff]
    %v175 = vld [vmem:[#allocation3 + $0x378] sm:$0xff]
    %v176 = vld [vmem:[#allocation3 + $0x380] sm:$0xff]
    %v177 = vld [vmem:[#allocation3 + $0x388] sm:$0xff]
    %v178 = vld [vmem:[#allocation3 + $0x390] sm:$0xff]
    %v179 = vld [vmem:[#allocation3 + $0x398] sm:$0xff]
    %v180 = vld [vmem:[#allocation3 + $0x3a0] sm:$0xff]
    %v181 = vld [vmem:[#allocation3 + $0x3a8] sm:$0xff]
    %v182 = vld [vmem:[#allocation3 + $0x3b0] sm:$0xff]
    %v183 = vld [vmem:[#allocation3 + $0x3b8] sm:$0xff]
    %v184 = vld [vmem:[#allocation3 + $0x3c0] sm:$0xff]
    %v185 = vld [vmem:[#allocation3 + $0x3c8] sm:$0xff]
    %v186 = vld [vmem:[#allocation3 + $0x3d0] sm:$0xff]
    %v187 = vld [vmem:[#allocation3 + $0x3d8] sm:$0xff]
    %v188 = vld [vmem:[#allocation3 + $0x3e0] sm:$0xff]
    %v189 = vld [vmem:[#allocation3 + $0x3e8] sm:$0xff]
    %v190 = vld [vmem:[#allocation3 + $0x3f0] sm:$0xff]
    %v191 = vld [vmem:[#allocation3 + $0x3f8] sm:$0xff]
    %v192 = vpack.c.bf16 %v65, %v64
    %v193 = vpack.c.bf16 %v67, %v66
    %v194 = vpack.c.bf16 %v69, %v68
    %v195 = vpack.c.bf16 %v71, %v70
    %v196 = vpack.c.bf16 %v73, %v72
    %v197 = vpack.c.bf16 %v75, %v74
    %v198 = vpack.c.bf16 %v77, %v76
    %v199 = vpack.c.bf16 %v79, %v78
    %v200 = vpack.c.bf16 %v81, %v80
    %v201 = vpack.c.bf16 %v83, %v82
    %v202 = vpack.c.bf16 %v85, %v84
    %v203 = vpack.c.bf16 %v87, %v86
    %v204 = vpack.c.bf16 %v89, %v88
    %v205 = vpack.c.bf16 %v91, %v90
    %v206 = vpack.c.bf16 %v93, %v92
    %v207 = vpack.c.bf16 %v95, %v94
    %v208 = vpack.c.bf16 %v97, %v96
    %v209 = vpack.c.bf16 %v99, %v98
    %v210 = vpack.c.bf16 %v101, %v100
    %v211 = vpack.c.bf16 %v103, %v102
    %v212 = vpack.c.bf16 %v105, %v104
    %v213 = vpack.c.bf16 %v107, %v106
    %v214 = vpack.c.bf16 %v109, %v108
    %v215 = vpack.c.bf16 %v111, %v110
    %v216 = vpack.c.bf16 %v113, %v112
    %v217 = vpack.c.bf16 %v115, %v114
    %v218 = vpack.c.bf16 %v117, %v116
    %v219 = vpack.c.bf16 %v119, %v118
    %v220 = vpack.c.bf16 %v121, %v120
    %v221 = vpack.c.bf16 %v123, %v122
    %v222 = vpack.c.bf16 %v125, %v124
    %v223 = vpack.c.bf16 %v127, %v126
    %v224 = vpack.c.bf16 %v129, %v128
    %v225 = vpack.c.bf16 %v131, %v130
    %v226 = vpack.c.bf16 %v133, %v132
    %v227 = vpack.c.bf16 %v135, %v134
    %v228 = vpack.c.bf16 %v137, %v136
    %v229 = vpack.c.bf16 %v139, %v138
    %v230 = vpack.c.bf16 %v141, %v140
    %v231 = vpack.c.bf16 %v143, %v142
    %v232 = vpack.c.bf16 %v145, %v144
    %v233 = vpack.c.bf16 %v147, %v146
    %v234 = vpack.c.bf16 %v149, %v148
    %v235 = vpack.c.bf16 %v151, %v150
    %v236 = vpack.c.bf16 %v153, %v152
    %v237 = vpack.c.bf16 %v155, %v154
    %v238 = vpack.c.bf16 %v157, %v156
    %v239 = vpack.c.bf16 %v159, %v158
    %v240 = vpack.c.bf16 %v161, %v160
    %v241 = vpack.c.bf16 %v163, %v162
    %v242 = vpack.c.bf16 %v165, %v164
    %v243 = vpack.c.bf16 %v167, %v166
    %v244 = vpack.c.bf16 %v169, %v168
    %v245 = vpack.c.bf16 %v171, %v170
    %v246 = vpack.c.bf16 %v173, %v172
    %v247 = vpack.c.bf16 %v175, %v174
    %v248 = vpack.c.bf16 %v177, %v176
    %v249 = vpack.c.bf16 %v179, %v178
    %v250 = vpack.c.bf16 %v181, %v180
    %v251 = vpack.c.bf16 %v183, %v182
    %v252 = vpack.c.bf16 %v185, %v184
    %v253 = vpack.c.bf16 %v187, %v186
    %v254 = vpack.c.bf16 %v189, %v188
    %v255 = vpack.c.bf16 %v191, %v190
    %v256 = vld [vmem:[#allocation6] sm:$0xff]
    %v257 = vld [vmem:[#allocation6 + $0x8] sm:$0xff]
    %v258 = vld [vmem:[#allocation6 + $0x10] sm:$0xff]
    %v259 = vld [vmem:[#allocation6 + $0x18] sm:$0xff]
    %v260 = vld [vmem:[#allocation6 + $0x20] sm:$0xff]
    %v261 = vld [vmem:[#allocation6 + $0x28] sm:$0xff]
    %v262 = vld [vmem:[#allocation6 + $0x30] sm:$0xff]
    %v263 = vld [vmem:[#allocation6 + $0x38] sm:$0xff]
    %v264 = vld [vmem:[#allocation6 + $0x40] sm:$0xff]
    %v265 = vld [vmem:[#allocation6 + $0x48] sm:$0xff]
    %v266 = vld [vmem:[#allocation6 + $0x50] sm:$0xff]
    %v267 = vld [vmem:[#allocation6 + $0x58] sm:$0xff]
    %v268 = vld [vmem:[#allocation6 + $0x60] sm:$0xff]
    %v269 = vld [vmem:[#allocation6 + $0x68] sm:$0xff]
    %v270 = vld [vmem:[#allocation6 + $0x70] sm:$0xff]
    %v271 = vld [vmem:[#allocation6 + $0x78] sm:$0xff]
    %v272 = vld [vmem:[#allocation6 + $0x80] sm:$0xff]
    %v273 = vld [vmem:[#allocation6 + $0x88] sm:$0xff]
    %v274 = vld [vmem:[#allocation6 + $0x90] sm:$0xff]
    %v275 = vld [vmem:[#allocation6 + $0x98] sm:$0xff]
    %v276 = vld [vmem:[#allocation6 + $0xa0] sm:$0xff]
    %v277 = vld [vmem:[#allocation6 + $0xa8] sm:$0xff]
    %v278 = vld [vmem:[#allocation6 + $0xb0] sm:$0xff]
    %v279 = vld [vmem:[#allocation6 + $0xb8] sm:$0xff]
    %v280 = vld [vmem:[#allocation6 + $0xc0] sm:$0xff]
    %v281 = vld [vmem:[#allocation6 + $0xc8] sm:$0xff]
    %v282 = vld [vmem:[#allocation6 + $0xd0] sm:$0xff]
    %v283 = vld [vmem:[#allocation6 + $0xd8] sm:$0xff]
    %v284 = vld [vmem:[#allocation6 + $0xe0] sm:$0xff]
    %v285 = vld [vmem:[#allocation6 + $0xe8] sm:$0xff]
    %v286 = vld [vmem:[#allocation6 + $0xf0] sm:$0xff]
    %v287 = vld [vmem:[#allocation6 + $0xf8] sm:$0xff]
    %v288 = vld [vmem:[#allocation6 + $0x100] sm:$0xff]
    %v289 = vld [vmem:[#allocation6 + $0x108] sm:$0xff]
    %v290 = vld [vmem:[#allocation6 + $0x110] sm:$0xff]
    %v291 = vld [vmem:[#allocation6 + $0x118] sm:$0xff]
    %v292 = vld [vmem:[#allocation6 + $0x120] sm:$0xff]
    %v293 = vld [vmem:[#allocation6 + $0x128] sm:$0xff]
    %v294 = vld [vmem:[#allocation6 + $0x130] sm:$0xff]
    %v295 = vld [vmem:[#allocation6 + $0x138] sm:$0xff]
    %v296 = vld [vmem:[#allocation6 + $0x140] sm:$0xff]
    %v297 = vld [vmem:[#allocation6 + $0x148] sm:$0xff]
    %v298 = vld [vmem:[#allocation6 + $0x150] sm:$0xff]
    %v299 = vld [vmem:[#allocation6 + $0x158] sm:$0xff]
    %v300 = vld [vmem:[#allocation6 + $0x160] sm:$0xff]
    %v301 = vld [vmem:[#allocation6 + $0x168] sm:$0xff]
    %v302 = vld [vmem:[#allocation6 + $0x170] sm:$0xff]
    %v303 = vld [vmem:[#allocation6 + $0x178] sm:$0xff]
    %v304 = vld [vmem:[#allocation6 + $0x180] sm:$0xff]
    %v305 = vld [vmem:[#allocation6 + $0x188] sm:$0xff]
    %v306 = vld [vmem:[#allocation6 + $0x190] sm:$0xff]
    %v307 = vld [vmem:[#allocation6 + $0x198] sm:$0xff]
    %v308 = vld [vmem:[#allocation6 + $0x1a0] sm:$0xff]
    %v309 = vld [vmem:[#allocation6 + $0x1a8] sm:$0xff]
    %v310 = vld [vmem:[#allocation6 + $0x1b0] sm:$0xff]
    %v311 = vld [vmem:[#allocation6 + $0x1b8] sm:$0xff]
    %v312 = vld [vmem:[#allocation6 + $0x1c0] sm:$0xff]
    %v313 = vld [vmem:[#allocation6 + $0x1c8] sm:$0xff]
    %v314 = vld [vmem:[#allocation6 + $0x1d0] sm:$0xff]
    %v315 = vld [vmem:[#allocation6 + $0x1d8] sm:$0xff]
    %v316 = vld [vmem:[#allocation6 + $0x1e0] sm:$0xff]
    %v317 = vld [vmem:[#allocation6 + $0x1e8] sm:$0xff]
    %v318 = vld [vmem:[#allocation6 + $0x1f0] sm:$0xff]
    %v319 = vld [vmem:[#allocation6 + $0x1f8] sm:$0xff]
    %v320 = vld [vmem:[#allocation6 + $0x200] sm:$0xff]
    %v321 = vld [vmem:[#allocation6 + $0x208] sm:$0xff]
    %v322 = vld [vmem:[#allocation6 + $0x210] sm:$0xff]
    %v323 = vld [vmem:[#allocation6 + $0x218] sm:$0xff]
    %v324 = vld [vmem:[#allocation6 + $0x220] sm:$0xff]
    %v325 = vld [vmem:[#allocation6 + $0x228] sm:$0xff]
    %v326 = vld [vmem:[#allocation6 + $0x230] sm:$0xff]
    %v327 = vld [vmem:[#allocation6 + $0x238] sm:$0xff]
    %v328 = vld [vmem:[#allocation6 + $0x240] sm:$0xff]
    %v329 = vld [vmem:[#allocation6 + $0x248] sm:$0xff]
    %v330 = vld [vmem:[#allocation6 + $0x250] sm:$0xff]
    %v331 = vld [vmem:[#allocation6 + $0x258] sm:$0xff]
    %v332 = vld [vmem:[#allocation6 + $0x260] sm:$0xff]
    %v333 = vld [vmem:[#allocation6 + $0x268] sm:$0xff]
    %v334 = vld [vmem:[#allocation6 + $0x270] sm:$0xff]
    %v335 = vld [vmem:[#allocation6 + $0x278] sm:$0xff]
    %v336 = vld [vmem:[#allocation6 + $0x280] sm:$0xff]
    %v337 = vld [vmem:[#allocation6 + $0x288] sm:$0xff]
    %v338 = vld [vmem:[#allocation6 + $0x290] sm:$0xff]
    %v339 = vld [vmem:[#allocation6 + $0x298] sm:$0xff]
    %v340 = vld [vmem:[#allocation6 + $0x2a0] sm:$0xff]
    %v341 = vld [vmem:[#allocation6 + $0x2a8] sm:$0xff]
    %v342 = vld [vmem:[#allocation6 + $0x2b0] sm:$0xff]
    %v343 = vld [vmem:[#allocation6 + $0x2b8] sm:$0xff]
    %v344 = vld [vmem:[#allocation6 + $0x2c0] sm:$0xff]
    %v345 = vld [vmem:[#allocation6 + $0x2c8] sm:$0xff]
    %v346 = vld [vmem:[#allocation6 + $0x2d0] sm:$0xff]
    %v347 = vld [vmem:[#allocation6 + $0x2d8] sm:$0xff]
    %v348 = vld [vmem:[#allocation6 + $0x2e0] sm:$0xff]
    %v349 = vld [vmem:[#allocation6 + $0x2e8] sm:$0xff]
    %v350 = vld [vmem:[#allocation6 + $0x2f0] sm:$0xff]
    %v351 = vld [vmem:[#allocation6 + $0x2f8] sm:$0xff]
    %v352 = vld [vmem:[#allocation6 + $0x300] sm:$0xff]
    %v353 = vld [vmem:[#allocation6 + $0x308] sm:$0xff]
    %v354 = vld [vmem:[#allocation6 + $0x310] sm:$0xff]
    %v355 = vld [vmem:[#allocation6 + $0x318] sm:$0xff]
    %v356 = vld [vmem:[#allocation6 + $0x320] sm:$0xff]
    %v357 = vld [vmem:[#allocation6 + $0x328] sm:$0xff]
    %v358 = vld [vmem:[#allocation6 + $0x330] sm:$0xff]
    %v359 = vld [vmem:[#allocation6 + $0x338] sm:$0xff]
    %v360 = vld [vmem:[#allocation6 + $0x340] sm:$0xff]
    %v361 = vld [vmem:[#allocation6 + $0x348] sm:$0xff]
    %v362 = vld [vmem:[#allocation6 + $0x350] sm:$0xff]
    %v363 = vld [vmem:[#allocation6 + $0x358] sm:$0xff]
    %v364 = vld [vmem:[#allocation6 + $0x360] sm:$0xff]
    %v365 = vld [vmem:[#allocation6 + $0x368] sm:$0xff]
    %v366 = vld [vmem:[#allocation6 + $0x370] sm:$0xff]
    %v367 = vld [vmem:[#allocation6 + $0x378] sm:$0xff]
    %v368 = vld [vmem:[#allocation6 + $0x380] sm:$0xff]
    %v369 = vld [vmem:[#allocation6 + $0x388] sm:$0xff]
    %v370 = vld [vmem:[#allocation6 + $0x390] sm:$0xff]
    %v371 = vld [vmem:[#allocation6 + $0x398] sm:$0xff]
    %v372 = vld [vmem:[#allocation6 + $0x3a0] sm:$0xff]
    %v373 = vld [vmem:[#allocation6 + $0x3a8] sm:$0xff]
    %v374 = vld [vmem:[#allocation6 + $0x3b0] sm:$0xff]
    %v375 = vld [vmem:[#allocation6 + $0x3b8] sm:$0xff]
    %v376 = vld [vmem:[#allocation6 + $0x3c0] sm:$0xff]
    %v377 = vld [vmem:[#allocation6 + $0x3c8] sm:$0xff]
    %v378 = vld [vmem:[#allocation6 + $0x3d0] sm:$0xff]
    %v379 = vld [vmem:[#allocation6 + $0x3d8] sm:$0xff]
    %v380 = vld [vmem:[#allocation6 + $0x3e0] sm:$0xff]
    %v381 = vld [vmem:[#allocation6 + $0x3e8] sm:$0xff]
    %v382 = vld [vmem:[#allocation6 + $0x3f0] sm:$0xff]
    %v383 = vld [vmem:[#allocation6 + $0x3f8] sm:$0xff]
    %v384 = vpack.c.bf16 %v257, %v256
    %v385 = vpack.c.bf16 %v259, %v258
    %v386 = vpack.c.bf16 %v261, %v260
    %v387 = vpack.c.bf16 %v263, %v262
    %v388 = vpack.c.bf16 %v265, %v264
    %v389 = vpack.c.bf16 %v267, %v266
    %v390 = vpack.c.bf16 %v269, %v268
    %v391 = vpack.c.bf16 %v271, %v270
    %v392 = vpack.c.bf16 %v273, %v272
    %v393 = vpack.c.bf16 %v275, %v274
    %v394 = vpack.c.bf16 %v277, %v276
    %v395 = vpack.c.bf16 %v279, %v278
    %v396 = vpack.c.bf16 %v281, %v280
    %v397 = vpack.c.bf16 %v283, %v282
    %v398 = vpack.c.bf16 %v285, %v284
    %v399 = vpack.c.bf16 %v287, %v286
    %v400 = vpack.c.bf16 %v289, %v288
    %v401 = vpack.c.bf16 %v291, %v290
    %v402 = vpack.c.bf16 %v293, %v292
    %v403 = vpack.c.bf16 %v295, %v294
    %v404 = vpack.c.bf16 %v297, %v296
    %v405 = vpack.c.bf16 %v299, %v298
    %v406 = vpack.c.bf16 %v301, %v300
    %v407 = vpack.c.bf16 %v303, %v302
    %v408 = vpack.c.bf16 %v305, %v304
    %v409 = vpack.c.bf16 %v307, %v306
    %v410 = vpack.c.bf16 %v309, %v308
    %v411 = vpack.c.bf16 %v311, %v310
    %v412 = vpack.c.bf16 %v313, %v312
    %v413 = vpack.c.bf16 %v315, %v314
    %v414 = vpack.c.bf16 %v317, %v316
    %v415 = vpack.c.bf16 %v319, %v318
    %v416 = vpack.c.bf16 %v321, %v320
    %v417 = vpack.c.bf16 %v323, %v322
    %v418 = vpack.c.bf16 %v325, %v324
    %v419 = vpack.c.bf16 %v327, %v326
    %v420 = vpack.c.bf16 %v329, %v328
    %v421 = vpack.c.bf16 %v331, %v330
    %v422 = vpack.c.bf16 %v333, %v332
    %v423 = vpack.c.bf16 %v335, %v334
    %v424 = vpack.c.bf16 %v337, %v336
    %v425 = vpack.c.bf16 %v339, %v338
    %v426 = vpack.c.bf16 %v341, %v340
    %v427 = vpack.c.bf16 %v343, %v342
    %v428 = vpack.c.bf16 %v345, %v344
    %v429 = vpack.c.bf16 %v347, %v346
    %v430 = vpack.c.bf16 %v349, %v348
    %v431 = vpack.c.bf16 %v351, %v350
    %v432 = vpack.c.bf16 %v353, %v352
    %v433 = vpack.c.bf16 %v355, %v354
    %v434 = vpack.c.bf16 %v357, %v356
    %v435 = vpack.c.bf16 %v359, %v358
    %v436 = vpack.c.bf16 %v361, %v360
    %v437 = vpack.c.bf16 %v363, %v362
    %v438 = vpack.c.bf16 %v365, %v364
    %v439 = vpack.c.bf16 %v367, %v366
    %v440 = vpack.c.bf16 %v369, %v368
    %v441 = vpack.c.bf16 %v371, %v370
    %v442 = vpack.c.bf16 %v373, %v372
    %v443 = vpack.c.bf16 %v375, %v374
    %v444 = vpack.c.bf16 %v377, %v376
    %v445 = vpack.c.bf16 %v379, %v378
    %v446 = vpack.c.bf16 %v381, %v380
    %v447 = vpack.c.bf16 %v383, %v382
    %v448 = vld [vmem:[%s2] sm:$0xf]
    %v449 = vld [vmem:[%s2 + $0x4] sm:$0xf]
    %v450 = vld [vmem:[%s2 + $0x8] sm:$0xf]
    %v451 = vld [vmem:[%s2 + $0xc] sm:$0xf]
    %v452 = vld [vmem:[%s2 + $0x10] sm:$0xf]
    %v453 = vld [vmem:[%s2 + $0x14] sm:$0xf]
    %v454 = vld [vmem:[%s2 + $0x18] sm:$0xf]
    %v455 = vld [vmem:[%s2 + $0x1c] sm:$0xf]
    %v456 = vld [vmem:[%s2 + $0x20] sm:$0xf]
    %v457 = vld [vmem:[%s2 + $0x24] sm:$0xf]
    %v458 = vld [vmem:[%s2 + $0x28] sm:$0xf]
    %v459 = vld [vmem:[%s2 + $0x2c] sm:$0xf]
    %v460 = vld [vmem:[%s2 + $0x30] sm:$0xf]
    %v461 = vld [vmem:[%s2 + $0x34] sm:$0xf]
    %v462 = vld [vmem:[%s2 + $0x38] sm:$0xf]
    %v463 = vld [vmem:[%s2 + $0x3c] sm:$0xf]
    %v464 = vld [vmem:[%s3] sm:$0xf]
    %v465 = vld [vmem:[%s3 + $0x4] sm:$0xf]
    %v466 = vld [vmem:[%s3 + $0x8] sm:$0xf]
    %v467 = vld [vmem:[%s3 + $0xc] sm:$0xf]
    %v468 = vld [vmem:[%s3 + $0x10] sm:$0xf]
    %v469 = vld [vmem:[%s3 + $0x14] sm:$0xf]
    %v470 = vld [vmem:[%s3 + $0x18] sm:$0xf]
    %v471 = vld [vmem:[%s3 + $0x1c] sm:$0xf]
    %v472 = vld [vmem:[%s3 + $0x20] sm:$0xf]
    %v473 = vld [vmem:[%s3 + $0x24] sm:$0xf]
    %v474 = vld [vmem:[%s3 + $0x28] sm:$0xf]
    %v475 = vld [vmem:[%s3 + $0x2c] sm:$0xf]
    %v476 = vld [vmem:[%s3 + $0x30] sm:$0xf]
    %v477 = vld [vmem:[%s3 + $0x34] sm:$0xf]
    %v478 = vld [vmem:[%s3 + $0x38] sm:$0xf]
    %v479 = vld [vmem:[%s3 + $0x3c] sm:$0xf]
    %v496 = vunpack.c.l.b16 %v464
    %v497 = vunpack.c.l.b16 %v465
    %v498 = vunpack.c.l.b16 %v466
    %v499 = vunpack.c.l.b16 %v467
    %v500 = vunpack.c.l.b16 %v468
    %v501 = vunpack.c.l.b16 %v469
    %v502 = vunpack.c.l.b16 %v470
    %v503 = vunpack.c.l.b16 %v471
    %v504 = vunpack.c.l.b16 %v472
    %v505 = vunpack.c.l.b16 %v473
    %v506 = vunpack.c.l.b16 %v474
    %v507 = vunpack.c.l.b16 %v475
    %v508 = vunpack.c.l.b16 %v476
    %v509 = vunpack.c.l.b16 %v477
    %v510 = vunpack.c.l.b16 %v478
    %v511 = vunpack.c.l.b16 %v479
    %v512 = vpack.c.b16 %v497, %v496
    %v513 = vpack.c.b16 %v499, %v498
    %v514 = vpack.c.b16 %v501, %v500
    %v515 = vpack.c.b16 %v503, %v502
    %v516 = vpack.c.b16 %v505, %v504
    %v517 = vpack.c.b16 %v507, %v506
    %v518 = vpack.c.b16 %v509, %v508
    %v519 = vpack.c.b16 %v511, %v510
    %528 = vmatprep.subr.bf16.mxu0 0
    %529 = vmatpush1.bf16.msra.mxu0 %v519
    %530 = vmatprep.subr.bf16.mxu0 0
    %531 = vmatpush1.bf16.msra.mxu0 %v518
    %532 = vmatprep.subr.bf16.mxu0 0
    %533 = vmatpush1.bf16.msra.mxu0 %v517
    %534 = vmatprep.subr.bf16.mxu0 0
    %535 = vmatpush1.bf16.msra.mxu0 %v516
    %536 = vmatprep.subr.bf16.mxu0 0
    %537 = vmatpush1.bf16.msra.mxu0 %v515
    %538 = vmatprep.subr.bf16.mxu0 0
    %539 = vmatpush1.bf16.msra.mxu0 %v514
    %540 = vmatprep.subr.bf16.mxu0 0
    %541 = vmatpush1.bf16.msra.mxu0 %v513
    %542 = vmatprep.subr.bf16.mxu0 0
    %543 = vmatpush1.bf16.msra.mxu0 %v512
    %544 = vmatprep.subr.bf16.mxu0 0
    %545 = vmatpush2.bf16.msra.mxu0 0
    %546 = vmatprep.subr.bf16.mxu0 0
    %547 = vmatpush2.bf16.msra.mxu0 0
    %548 = vmatprep.subr.bf16.mxu0 0
    %549 = vmatpush2.bf16.msra.mxu0 0
    %550 = vmatprep.subr.bf16.mxu0 0
    %551 = vmatpush2.bf16.msra.mxu0 0
    %552 = vmatprep.subr.bf16.mxu0 0
    %553 = vmatpush2.bf16.msra.mxu0 0
    %554 = vmatprep.subr.bf16.mxu0 0
    %555 = vmatpush2.bf16.msra.mxu0 0
    %556 = vmatprep.subr.bf16.mxu0 0
    %557 = vmatpush2.bf16.msra.mxu0 0
    %558 = vmatprep.subr.bf16.mxu0 0
    %559 = vmatpush2.bf16.msra.mxu0 0
    %560 = vmatprep.mubr.bf16.mxu0 0
    %561 = vmatmul.mubr.bf16.gmra.mxu0 %v384
    %v562 = vpop.f32.mrf.mxu0
    %v563 = vadd.f32 0.0, %v562
    %v564 = vpop.f32.mrf.mxu0
    %v565 = vpop.f32.mrf.mxu0
    %v566 = vadd.f32 0.0, %v565
    %v567 = vpop.f32.mrf.mxu0
    %568 = vmatprep.mubr.bf16.mxu0 0
    %569 = vmatmul.mubr.bf16.gmra.mxu0 %v385
    %v570 = vpop.f32.mrf.mxu0
    %v571 = vadd.f32 0.0, %v570
    %v572 = vpop.f32.mrf.mxu0
    %v573 = vpop.f32.mrf.mxu0
    %v574 = vadd.f32 0.0, %v573
    %v575 = vpop.f32.mrf.mxu0
    %576 = vmatprep.mubr.bf16.mxu0 0
    %577 = vmatmul.mubr.bf16.gmra.mxu0 %v386
    %v578 = vpop.f32.mrf.mxu0
    %v579 = vadd.f32 0.0, %v578
    %v580 = vpop.f32.mrf.mxu0
    %v581 = vpop.f32.mrf.mxu0
    %v582 = vadd.f32 0.0, %v581
    %v583 = vpop.f32.mrf.mxu0
    %584 = vmatprep.mubr.bf16.mxu0 0
    %585 = vmatmul.mubr.bf16.gmra.mxu0 %v387
    %v586 = vpop.f32.mrf.mxu0
    %v587 = vadd.f32 0.0, %v586
    %v588 = vpop.f32.mrf.mxu0
    %v589 = vpop.f32.mrf.mxu0
    %v590 = vadd.f32 0.0, %v589
    %v591 = vpop.f32.mrf.mxu0
    %592 = vmatprep.mubr.bf16.mxu0 0
    %593 = vmatmul.mubr.bf16.gmra.mxu0 %v388
    %v594 = vpop.f32.mrf.mxu0
    %v595 = vadd.f32 0.0, %v594
    %v596 = vpop.f32.mrf.mxu0
    %v597 = vpop.f32.mrf.mxu0
    %v598 = vadd.f32 0.0, %v597
    %v599 = vpop.f32.mrf.mxu0
    %600 = vmatprep.mubr.bf16.mxu0 0
    %601 = vmatmul.mubr.bf16.gmra.mxu0 %v389
    %v602 = vpop.f32.mrf.mxu0
    %v603 = vadd.f32 0.0, %v602
    %v604 = vpop.f32.mrf.mxu0
    %v605 = vpop.f32.mrf.mxu0
    %v606 = vadd.f32 0.0, %v605
    %v607 = vpop.f32.mrf.mxu0
    %608 = vmatprep.mubr.bf16.mxu0 0
    %609 = vmatmul.mubr.bf16.gmra.mxu0 %v390
    %v610 = vpop.f32.mrf.mxu0
    %v611 = vadd.f32 0.0, %v610
    %v612 = vpop.f32.mrf.mxu0
    %v613 = vpop.f32.mrf.mxu0
    %v614 = vadd.f32 0.0, %v613
    %v615 = vpop.f32.mrf.mxu0
    %616 = vmatprep.mubr.bf16.mxu0 0
    %617 = vmatmul.mubr.bf16.gmra.mxu0 %v391
    %v618 = vpop.f32.mrf.mxu0
    %v619 = vadd.f32 0.0, %v618
    %v620 = vpop.f32.mrf.mxu0
    %v621 = vpop.f32.mrf.mxu0
    %v622 = vadd.f32 0.0, %v621
    %v623 = vpop.f32.mrf.mxu0
    %624 = vmatprep.mubr.bf16.mxu0 0
    %625 = vmatmul.mubr.bf16.gmra.mxu0 %v392
    %v626 = vpop.f32.mrf.mxu0
    %v627 = vadd.f32 0.0, %v626
    %v628 = vpop.f32.mrf.mxu0
    %v629 = vpop.f32.mrf.mxu0
    %v630 = vadd.f32 0.0, %v629
    %v631 = vpop.f32.mrf.mxu0
    %632 = vmatprep.mubr.bf16.mxu0 0
    %633 = vmatmul.mubr.bf16.gmra.mxu0 %v393
    %v634 = vpop.f32.mrf.mxu0
    %v635 = vadd.f32 0.0, %v634
    %v636 = vpop.f32.mrf.mxu0
    %v637 = vpop.f32.mrf.mxu0
    %v638 = vadd.f32 0.0, %v637
    %v639 = vpop.f32.mrf.mxu0
    %640 = vmatprep.mubr.bf16.mxu0 0
    %641 = vmatmul.mubr.bf16.gmra.mxu0 %v394
    %v642 = vpop.f32.mrf.mxu0
    %v643 = vadd.f32 0.0, %v642
    %v644 = vpop.f32.mrf.mxu0
    %v645 = vpop.f32.mrf.mxu0
    %v646 = vadd.f32 0.0, %v645
    %v647 = vpop.f32.mrf.mxu0
    %648 = vmatprep.mubr.bf16.mxu0 0
    %649 = vmatmul.mubr.bf16.gmra.mxu0 %v395
    %v650 = vpop.f32.mrf.mxu0
    %v651 = vadd.f32 0.0, %v650
    %v652 = vpop.f32.mrf.mxu0
    %v653 = vpop.f32.mrf.mxu0
    %v654 = vadd.f32 0.0, %v653
    %v655 = vpop.f32.mrf.mxu0
    %656 = vmatprep.mubr.bf16.mxu0 0
    %657 = vmatmul.mubr.bf16.gmra.mxu0 %v396
    %v658 = vpop.f32.mrf.mxu0
    %v659 = vadd.f32 0.0, %v658
    %v660 = vpop.f32.mrf.mxu0
    %v661 = vpop.f32.mrf.mxu0
    %v662 = vadd.f32 0.0, %v661
    %v663 = vpop.f32.mrf.mxu0
    %664 = vmatprep.mubr.bf16.mxu0 0
    %665 = vmatmul.mubr.bf16.gmra.mxu0 %v397
    %v666 = vpop.f32.mrf.mxu0
    %v667 = vadd.f32 0.0, %v666
    %v668 = vpop.f32.mrf.mxu0
    %v669 = vpop.f32.mrf.mxu0
    %v670 = vadd.f32 0.0, %v669
    %v671 = vpop.f32.mrf.mxu0
    %672 = vmatprep.mubr.bf16.mxu0 0
    %673 = vmatmul.mubr.bf16.gmra.mxu0 %v398
    %v674 = vpop.f32.mrf.mxu0
    %v675 = vadd.f32 0.0, %v674
    %v676 = vpop.f32.mrf.mxu0
    %v677 = vpop.f32.mrf.mxu0
    %v678 = vadd.f32 0.0, %v677
    %v679 = vpop.f32.mrf.mxu0
    %680 = vmatprep.mubr.bf16.mxu0 0
    %681 = vmatmul.mubr.bf16.gmra.mxu0 %v399
    %v682 = vpop.f32.mrf.mxu0
    %v683 = vadd.f32 0.0, %v682
    %v684 = vpop.f32.mrf.mxu0
    %v685 = vpop.f32.mrf.mxu0
    %v686 = vadd.f32 0.0, %v685
    %v687 = vpop.f32.mrf.mxu0
    %688 = vmatprep.mubr.bf16.mxu0 0
    %689 = vmatmul.mubr.bf16.gmra.mxu0 %v400
    %v690 = vpop.f32.mrf.mxu0
    %v691 = vadd.f32 0.0, %v690
    %v692 = vpop.f32.mrf.mxu0
    %v693 = vpop.f32.mrf.mxu0
    %v694 = vadd.f32 0.0, %v693
    %v695 = vpop.f32.mrf.mxu0
    %696 = vmatprep.mubr.bf16.mxu0 0
    %697 = vmatmul.mubr.bf16.gmra.mxu0 %v401
    %v698 = vpop.f32.mrf.mxu0
    %v699 = vadd.f32 0.0, %v698
    %v700 = vpop.f32.mrf.mxu0
    %v701 = vpop.f32.mrf.mxu0
    %v702 = vadd.f32 0.0, %v701
    %v703 = vpop.f32.mrf.mxu0
    %704 = vmatprep.mubr.bf16.mxu0 0
    %705 = vmatmul.mubr.bf16.gmra.mxu0 %v402
    %v706 = vpop.f32.mrf.mxu0
    %v707 = vadd.f32 0.0, %v706
    %v708 = vpop.f32.mrf.mxu0
    %v709 = vpop.f32.mrf.mxu0
    %v710 = vadd.f32 0.0, %v709
    %v711 = vpop.f32.mrf.mxu0
    %712 = vmatprep.mubr.bf16.mxu0 0
    %713 = vmatmul.mubr.bf16.gmra.mxu0 %v403
    %v714 = vpop.f32.mrf.mxu0
    %v715 = vadd.f32 0.0, %v714
    %v716 = vpop.f32.mrf.mxu0
    %v717 = vpop.f32.mrf.mxu0
    %v718 = vadd.f32 0.0, %v717
    %v719 = vpop.f32.mrf.mxu0
    %720 = vmatprep.mubr.bf16.mxu0 0
    %721 = vmatmul.mubr.bf16.gmra.mxu0 %v404
    %v722 = vpop.f32.mrf.mxu0
    %v723 = vadd.f32 0.0, %v722
    %v724 = vpop.f32.mrf.mxu0
    %v725 = vpop.f32.mrf.mxu0
    %v726 = vadd.f32 0.0, %v725
    %v727 = vpop.f32.mrf.mxu0
    %728 = vmatprep.mubr.bf16.mxu0 0
    %729 = vmatmul.mubr.bf16.gmra.mxu0 %v405
    %v730 = vpop.f32.mrf.mxu0
    %v731 = vadd.f32 0.0, %v730
    %v732 = vpop.f32.mrf.mxu0
    %v733 = vpop.f32.mrf.mxu0
    %v734 = vadd.f32 0.0, %v733
    %v735 = vpop.f32.mrf.mxu0
    %736 = vmatprep.mubr.bf16.mxu0 0
    %737 = vmatmul.mubr.bf16.gmra.mxu0 %v406
    %v738 = vpop.f32.mrf.mxu0
    %v739 = vadd.f32 0.0, %v738
    %v740 = vpop.f32.mrf.mxu0
    %v741 = vpop.f32.mrf.mxu0
    %v742 = vadd.f32 0.0, %v741
    %v743 = vpop.f32.mrf.mxu0
    %744 = vmatprep.mubr.bf16.mxu0 0
    %745 = vmatmul.mubr.bf16.gmra.mxu0 %v407
    %v746 = vpop.f32.mrf.mxu0
    %v747 = vadd.f32 0.0, %v746
    %v748 = vpop.f32.mrf.mxu0
    %v749 = vpop.f32.mrf.mxu0
    %v750 = vadd.f32 0.0, %v749
    %v751 = vpop.f32.mrf.mxu0
    %752 = vmatprep.mubr.bf16.mxu0 0
    %753 = vmatmul.mubr.bf16.gmra.mxu0 %v408
    %v754 = vpop.f32.mrf.mxu0
    %v755 = vadd.f32 0.0, %v754
    %v756 = vpop.f32.mrf.mxu0
    %v757 = vpop.f32.mrf.mxu0
    %v758 = vadd.f32 0.0, %v757
    %v759 = vpop.f32.mrf.mxu0
    %760 = vmatprep.mubr.bf16.mxu0 0
    %761 = vmatmul.mubr.bf16.gmra.mxu0 %v409
    %v762 = vpop.f32.mrf.mxu0
    %v763 = vadd.f32 0.0, %v762
    %v764 = vpop.f32.mrf.mxu0
    %v765 = vpop.f32.mrf.mxu0
    %v766 = vadd.f32 0.0, %v765
    %v767 = vpop.f32.mrf.mxu0
    %768 = vmatprep.mubr.bf16.mxu0 0
    %769 = vmatmul.mubr.bf16.gmra.mxu0 %v410
    %v770 = vpop.f32.mrf.mxu0
    %v771 = vadd.f32 0.0, %v770
    %v772 = vpop.f32.mrf.mxu0
    %v773 = vpop.f32.mrf.mxu0
    %v774 = vadd.f32 0.0, %v773
    %v775 = vpop.f32.mrf.mxu0
    %776 = vmatprep.mubr.bf16.mxu0 0
    %777 = vmatmul.mubr.bf16.gmra.mxu0 %v411
    %v778 = vpop.f32.mrf.mxu0
    %v779 = vadd.f32 0.0, %v778
    %v780 = vpop.f32.mrf.mxu0
    %v781 = vpop.f32.mrf.mxu0
    %v782 = vadd.f32 0.0, %v781
    %v783 = vpop.f32.mrf.mxu0
    %784 = vmatprep.mubr.bf16.mxu0 0
    %785 = vmatmul.mubr.bf16.gmra.mxu0 %v412
    %v786 = vpop.f32.mrf.mxu0
    %v787 = vadd.f32 0.0, %v786
    %v788 = vpop.f32.mrf.mxu0
    %v789 = vpop.f32.mrf.mxu0
    %v790 = vadd.f32 0.0, %v789
    %v791 = vpop.f32.mrf.mxu0
    %792 = vmatprep.mubr.bf16.mxu0 0
    %793 = vmatmul.mubr.bf16.gmra.mxu0 %v413
    %v794 = vpop.f32.mrf.mxu0
    %v795 = vadd.f32 0.0, %v794
    %v796 = vpop.f32.mrf.mxu0
    %v797 = vpop.f32.mrf.mxu0
    %v798 = vadd.f32 0.0, %v797
    %v799 = vpop.f32.mrf.mxu0
    %800 = vmatprep.mubr.bf16.mxu0 0
    %801 = vmatmul.mubr.bf16.gmra.mxu0 %v414
    %v802 = vpop.f32.mrf.mxu0
    %v803 = vadd.f32 0.0, %v802
    %v804 = vpop.f32.mrf.mxu0
    %v805 = vpop.f32.mrf.mxu0
    %v806 = vadd.f32 0.0, %v805
    %v807 = vpop.f32.mrf.mxu0
    %808 = vmatprep.mubr.bf16.mxu0 0
    %809 = vmatmul.mubr.bf16.gmra.mxu0 %v415
    %v810 = vpop.f32.mrf.mxu0
    %v811 = vadd.f32 0.0, %v810
    %v812 = vpop.f32.mrf.mxu0
    %v813 = vpop.f32.mrf.mxu0
    %v814 = vadd.f32 0.0, %v813
    %v815 = vpop.f32.mrf.mxu0
    %816 = vmatprep.mubr.bf16.mxu0 0
    %817 = vmatmul.mubr.bf16.gmra.mxu0 %v416
    %v818 = vpop.f32.mrf.mxu0
    %v819 = vadd.f32 0.0, %v818
    %v820 = vpop.f32.mrf.mxu0
    %v821 = vpop.f32.mrf.mxu0
    %v822 = vadd.f32 0.0, %v821
    %v823 = vpop.f32.mrf.mxu0
    %824 = vmatprep.mubr.bf16.mxu0 0
    %825 = vmatmul.mubr.bf16.gmra.mxu0 %v417
    %v826 = vpop.f32.mrf.mxu0
    %v827 = vadd.f32 0.0, %v826
    %v828 = vpop.f32.mrf.mxu0
    %v829 = vpop.f32.mrf.mxu0
    %v830 = vadd.f32 0.0, %v829
    %v831 = vpop.f32.mrf.mxu0
    %832 = vmatprep.mubr.bf16.mxu0 0
    %833 = vmatmul.mubr.bf16.gmra.mxu0 %v418
    %v834 = vpop.f32.mrf.mxu0
    %v835 = vadd.f32 0.0, %v834
    %v836 = vpop.f32.mrf.mxu0
    %v837 = vpop.f32.mrf.mxu0
    %v838 = vadd.f32 0.0, %v837
    %v839 = vpop.f32.mrf.mxu0
    %840 = vmatprep.mubr.bf16.mxu0 0
    %841 = vmatmul.mubr.bf16.gmra.mxu0 %v419
    %v842 = vpop.f32.mrf.mxu0
    %v843 = vadd.f32 0.0, %v842
    %v844 = vpop.f32.mrf.mxu0
    %v845 = vpop.f32.mrf.mxu0
    %v846 = vadd.f32 0.0, %v845
    %v847 = vpop.f32.mrf.mxu0
    %848 = vmatprep.mubr.bf16.mxu0 0
    %849 = vmatmul.mubr.bf16.gmra.mxu0 %v420
    %v850 = vpop.f32.mrf.mxu0
    %v851 = vadd.f32 0.0, %v850
    %v852 = vpop.f32.mrf.mxu0
    %v853 = vpop.f32.mrf.mxu0
    %v854 = vadd.f32 0.0, %v853
    %v855 = vpop.f32.mrf.mxu0
    %856 = vmatprep.mubr.bf16.mxu0 0
    %857 = vmatmul.mubr.bf16.gmra.mxu0 %v421
    %v858 = vpop.f32.mrf.mxu0
    %v859 = vadd.f32 0.0, %v858
    %v860 = vpop.f32.mrf.mxu0
    %v861 = vpop.f32.mrf.mxu0
    %v862 = vadd.f32 0.0, %v861
    %v863 = vpop.f32.mrf.mxu0
    %864 = vmatprep.mubr.bf16.mxu0 0
    %865 = vmatmul.mubr.bf16.gmra.mxu0 %v422
    %v866 = vpop.f32.mrf.mxu0
    %v867 = vadd.f32 0.0, %v866
    %v868 = vpop.f32.mrf.mxu0
    %v869 = vpop.f32.mrf.mxu0
    %v870 = vadd.f32 0.0, %v869
    %v871 = vpop.f32.mrf.mxu0
    %872 = vmatprep.mubr.bf16.mxu0 0
    %873 = vmatmul.mubr.bf16.gmra.mxu0 %v423
    %v874 = vpop.f32.mrf.mxu0
    %v875 = vadd.f32 0.0, %v874
    %v876 = vpop.f32.mrf.mxu0
    %v877 = vpop.f32.mrf.mxu0
    %v878 = vadd.f32 0.0, %v877
    %v879 = vpop.f32.mrf.mxu0
    %880 = vmatprep.mubr.bf16.mxu0 0
    %881 = vmatmul.mubr.bf16.gmra.mxu0 %v424
    %v882 = vpop.f32.mrf.mxu0
    %v883 = vadd.f32 0.0, %v882
    %v884 = vpop.f32.mrf.mxu0
    %v885 = vpop.f32.mrf.mxu0
    %v886 = vadd.f32 0.0, %v885
    %v887 = vpop.f32.mrf.mxu0
    %888 = vmatprep.mubr.bf16.mxu0 0
    %889 = vmatmul.mubr.bf16.gmra.mxu0 %v425
    %v890 = vpop.f32.mrf.mxu0
    %v891 = vadd.f32 0.0, %v890
    %v892 = vpop.f32.mrf.mxu0
    %v893 = vpop.f32.mrf.mxu0
    %v894 = vadd.f32 0.0, %v893
    %v895 = vpop.f32.mrf.mxu0
    %896 = vmatprep.mubr.bf16.mxu0 0
    %897 = vmatmul.mubr.bf16.gmra.mxu0 %v426
    %v898 = vpop.f32.mrf.mxu0
    %v899 = vadd.f32 0.0, %v898
    %v900 = vpop.f32.mrf.mxu0
    %v901 = vpop.f32.mrf.mxu0
    %v902 = vadd.f32 0.0, %v901
    %v903 = vpop.f32.mrf.mxu0
    %904 = vmatprep.mubr.bf16.mxu0 0
    %905 = vmatmul.mubr.bf16.gmra.mxu0 %v427
    %v906 = vpop.f32.mrf.mxu0
    %v907 = vadd.f32 0.0, %v906
    %v908 = vpop.f32.mrf.mxu0
    %v909 = vpop.f32.mrf.mxu0
    %v910 = vadd.f32 0.0, %v909
    %v911 = vpop.f32.mrf.mxu0
    %912 = vmatprep.mubr.bf16.mxu0 0
    %913 = vmatmul.mubr.bf16.gmra.mxu0 %v428
    %v914 = vpop.f32.mrf.mxu0
    %v915 = vadd.f32 0.0, %v914
    %v916 = vpop.f32.mrf.mxu0
    %v917 = vpop.f32.mrf.mxu0
    %v918 = vadd.f32 0.0, %v917
    %v919 = vpop.f32.mrf.mxu0
    %920 = vmatprep.mubr.bf16.mxu0 0
    %921 = vmatmul.mubr.bf16.gmra.mxu0 %v429
    %v922 = vpop.f32.mrf.mxu0
    %v923 = vadd.f32 0.0, %v922
    %v924 = vpop.f32.mrf.mxu0
    %v925 = vpop.f32.mrf.mxu0
    %v926 = vadd.f32 0.0, %v925
    %v927 = vpop.f32.mrf.mxu0
    %928 = vmatprep.mubr.bf16.mxu0 0
    %929 = vmatmul.mubr.bf16.gmra.mxu0 %v430
    %v930 = vpop.f32.mrf.mxu0
    %v931 = vadd.f32 0.0, %v930
    %v932 = vpop.f32.mrf.mxu0
    %v933 = vpop.f32.mrf.mxu0
    %v934 = vadd.f32 0.0, %v933
    %v935 = vpop.f32.mrf.mxu0
    %936 = vmatprep.mubr.bf16.mxu0 0
    %937 = vmatmul.mubr.bf16.gmra.mxu0 %v431
    %v938 = vpop.f32.mrf.mxu0
    %v939 = vadd.f32 0.0, %v938
    %v940 = vpop.f32.mrf.mxu0
    %v941 = vpop.f32.mrf.mxu0
    %v942 = vadd.f32 0.0, %v941
    %v943 = vpop.f32.mrf.mxu0
    %944 = vmatprep.mubr.bf16.mxu0 0
    %945 = vmatmul.mubr.bf16.gmra.mxu0 %v432
    %v946 = vpop.f32.mrf.mxu0
    %v947 = vadd.f32 0.0, %v946
    %v948 = vpop.f32.mrf.mxu0
    %v949 = vpop.f32.mrf.mxu0
    %v950 = vadd.f32 0.0, %v949
    %v951 = vpop.f32.mrf.mxu0
    %952 = vmatprep.mubr.bf16.mxu0 0
    %953 = vmatmul.mubr.bf16.gmra.mxu0 %v433
    %v954 = vpop.f32.mrf.mxu0
    %v955 = vadd.f32 0.0, %v954
    %v956 = vpop.f32.mrf.mxu0
    %v957 = vpop.f32.mrf.mxu0
    %v958 = vadd.f32 0.0, %v957
    %v959 = vpop.f32.mrf.mxu0
    %960 = vmatprep.mubr.bf16.mxu0 0
    %961 = vmatmul.mubr.bf16.gmra.mxu0 %v434
    %v962 = vpop.f32.mrf.mxu0
    %v963 = vadd.f32 0.0, %v962
    %v964 = vpop.f32.mrf.mxu0
    %v965 = vpop.f32.mrf.mxu0
    %v966 = vadd.f32 0.0, %v965
    %v967 = vpop.f32.mrf.mxu0
    %968 = vmatprep.mubr.bf16.mxu0 0
    %969 = vmatmul.mubr.bf16.gmra.mxu0 %v435
    %v970 = vpop.f32.mrf.mxu0
    %v971 = vadd.f32 0.0, %v970
    %v972 = vpop.f32.mrf.mxu0
    %v973 = vpop.f32.mrf.mxu0
    %v974 = vadd.f32 0.0, %v973
    %v975 = vpop.f32.mrf.mxu0
    %976 = vmatprep.mubr.bf16.mxu0 0
    %977 = vmatmul.mubr.bf16.gmra.mxu0 %v436
    %v978 = vpop.f32.mrf.mxu0
    %v979 = vadd.f32 0.0, %v978
    %v980 = vpop.f32.mrf.mxu0
    %v981 = vpop.f32.mrf.mxu0
    %v982 = vadd.f32 0.0, %v981
    %v983 = vpop.f32.mrf.mxu0
    %984 = vmatprep.mubr.bf16.mxu0 0
    %985 = vmatmul.mubr.bf16.gmra.mxu0 %v437
    %v986 = vpop.f32.mrf.mxu0
    %v987 = vadd.f32 0.0, %v986
    %v988 = vpop.f32.mrf.mxu0
    %v989 = vpop.f32.mrf.mxu0
    %v990 = vadd.f32 0.0, %v989
    %v991 = vpop.f32.mrf.mxu0
    %992 = vmatprep.mubr.bf16.mxu0 0
    %993 = vmatmul.mubr.bf16.gmra.mxu0 %v438
    %v994 = vpop.f32.mrf.mxu0
    %v995 = vadd.f32 0.0, %v994
    %v996 = vpop.f32.mrf.mxu0
    %v997 = vpop.f32.mrf.mxu0
    %v998 = vadd.f32 0.0, %v997
    %v999 = vpop.f32.mrf.mxu0
    %1000 = vmatprep.mubr.bf16.mxu0 0
    %1001 = vmatmul.mubr.bf16.gmra.mxu0 %v439
    %v1002 = vpop.f32.mrf.mxu0
    %v1003 = vadd.f32 0.0, %v1002
    %v1004 = vpop.f32.mrf.mxu0
    %v1005 = vpop.f32.mrf.mxu0
    %v1006 = vadd.f32 0.0, %v1005
    %v1007 = vpop.f32.mrf.mxu0
    %1008 = vmatprep.mubr.bf16.mxu0 0
    %1009 = vmatmul.mubr.bf16.gmra.mxu0 %v440
    %v1010 = vpop.f32.mrf.mxu0
    %v1011 = vadd.f32 0.0, %v1010
    %v1012 = vpop.f32.mrf.mxu0
    %v1013 = vpop.f32.mrf.mxu0
    %v1014 = vadd.f32 0.0, %v1013
    %v1015 = vpop.f32.mrf.mxu0
    %1016 = vmatprep.mubr.bf16.mxu0 0
    %1017 = vmatmul.mubr.bf16.gmra.mxu0 %v441
    %v1018 = vpop.f32.mrf.mxu0
    %v1019 = vadd.f32 0.0, %v1018
    %v1020 = vpop.f32.mrf.mxu0
    %v1021 = vpop.f32.mrf.mxu0
    %v1022 = vadd.f32 0.0, %v1021
    %v1023 = vpop.f32.mrf.mxu0
    %1024 = vmatprep.mubr.bf16.mxu0 0
    %1025 = vmatmul.mubr.bf16.gmra.mxu0 %v442
    %v1026 = vpop.f32.mrf.mxu0
    %v1027 = vadd.f32 0.0, %v1026
    %v1028 = vpop.f32.mrf.mxu0
    %v1029 = vpop.f32.mrf.mxu0
    %v1030 = vadd.f32 0.0, %v1029
    %v1031 = vpop.f32.mrf.mxu0
    %1032 = vmatprep.mubr.bf16.mxu0 0
    %1033 = vmatmul.mubr.bf16.gmra.mxu0 %v443
    %v1034 = vpop.f32.mrf.mxu0
    %v1035 = vadd.f32 0.0, %v1034
    %v1036 = vpop.f32.mrf.mxu0
    %v1037 = vpop.f32.mrf.mxu0
    %v1038 = vadd.f32 0.0, %v1037
    %v1039 = vpop.f32.mrf.mxu0
    %1040 = vmatprep.mubr.bf16.mxu0 0
    %1041 = vmatmul.mubr.bf16.gmra.mxu0 %v444
    %v1042 = vpop.f32.mrf.mxu0
    %v1043 = vadd.f32 0.0, %v1042
    %v1044 = vpop.f32.mrf.mxu0
    %v1045 = vpop.f32.mrf.mxu0
    %v1046 = vadd.f32 0.0, %v1045
    %v1047 = vpop.f32.mrf.mxu0
    %1048 = vmatprep.mubr.bf16.mxu0 0
    %1049 = vmatmul.mubr.bf16.gmra.mxu0 %v445
    %v1050 = vpop.f32.mrf.mxu0
    %v1051 = vadd.f32 0.0, %v1050
    %v1052 = vpop.f32.mrf.mxu0
    %v1053 = vpop.f32.mrf.mxu0
    %v1054 = vadd.f32 0.0, %v1053
    %v1055 = vpop.f32.mrf.mxu0
    %1056 = vmatprep.mubr.bf16.mxu0 0
    %1057 = vmatmul.mubr.bf16.gmra.mxu0 %v446
    %v1058 = vpop.f32.mrf.mxu0
    %v1059 = vadd.f32 0.0, %v1058
    %v1060 = vpop.f32.mrf.mxu0
    %v1061 = vpop.f32.mrf.mxu0
    %v1062 = vadd.f32 0.0, %v1061
    %v1063 = vpop.f32.mrf.mxu0
    %1064 = vmatprep.mubr.bf16.mxu0 0
    %1065 = vmatmul.mubr.bf16.gmra.mxu0 %v447
    %v1066 = vpop.f32.mrf.mxu0
    %v1067 = vadd.f32 0.0, %v1066
    %v1068 = vpop.f32.mrf.mxu0
    %v1069 = vpop.f32.mrf.mxu0
    %v1070 = vadd.f32 0.0, %v1069
    %v1071 = vpop.f32.mrf.mxu0
    %1072 = vdwg.mxu0
    %v1089 = vunpack.c.l.b16 %v448
    %v1090 = vunpack.c.l.b16 %v449
    %v1091 = vunpack.c.l.b16 %v450
    %v1092 = vunpack.c.l.b16 %v451
    %v1093 = vunpack.c.l.b16 %v452
    %v1094 = vunpack.c.l.b16 %v453
    %v1095 = vunpack.c.l.b16 %v454
    %v1096 = vunpack.c.l.b16 %v455
    %v1097 = vunpack.c.l.b16 %v456
    %v1098 = vunpack.c.l.b16 %v457
    %v1099 = vunpack.c.l.b16 %v458
    %v1100 = vunpack.c.l.b16 %v459
    %v1101 = vunpack.c.l.b16 %v460
    %v1102 = vunpack.c.l.b16 %v461
    %v1103 = vunpack.c.l.b16 %v462
    %v1104 = vunpack.c.l.b16 %v463
    %v1105 = vpack.c.b16 %v1090, %v1089
    %v1106 = vpack.c.b16 %v1092, %v1091
    %v1107 = vpack.c.b16 %v1094, %v1093
    %v1108 = vpack.c.b16 %v1096, %v1095
    %v1109 = vpack.c.b16 %v1098, %v1097
    %v1110 = vpack.c.b16 %v1100, %v1099
    %v1111 = vpack.c.b16 %v1102, %v1101
    %v1112 = vpack.c.b16 %v1104, %v1103
    %1121 = vmatprep.subr.bf16.mxu0 0
    %1122 = vmatpush1.bf16.msra.mxu0 %v1112
    %1123 = vmatprep.subr.bf16.mxu0 0
    %1124 = vmatpush1.bf16.msra.mxu0 %v1111
    %1125 = vmatprep.subr.bf16.mxu0 0
    %1126 = vmatpush1.bf16.msra.mxu0 %v1110
    %1127 = vmatprep.subr.bf16.mxu0 0
    %1128 = vmatpush1.bf16.msra.mxu0 %v1109
    %1129 = vmatprep.subr.bf16.mxu0 0
    %1130 = vmatpush1.bf16.msra.mxu0 %v1108
    %1131 = vmatprep.subr.bf16.mxu0 0
    %1132 = vmatpush1.bf16.msra.mxu0 %v1107
    %1133 = vmatprep.subr.bf16.mxu0 0
    %1134 = vmatpush1.bf16.msra.mxu0 %v1106
    %1135 = vmatprep.subr.bf16.mxu0 0
    %1136 = vmatpush1.bf16.msra.mxu0 %v1105
    %1137 = vmatprep.subr.bf16.mxu0 0
    %1138 = vmatpush2.bf16.msra.mxu0 0
    %1139 = vmatprep.subr.bf16.mxu0 0
    %1140 = vmatpush2.bf16.msra.mxu0 0
    %1141 = vmatprep.subr.bf16.mxu0 0
    %1142 = vmatpush2.bf16.msra.mxu0 0
    %1143 = vmatprep.subr.bf16.mxu0 0
    %1144 = vmatpush2.bf16.msra.mxu0 0
    %1145 = vmatprep.subr.bf16.mxu0 0
    %1146 = vmatpush2.bf16.msra.mxu0 0
    %1147 = vmatprep.subr.bf16.mxu0 0
    %1148 = vmatpush2.bf16.msra.mxu0 0
    %1149 = vmatprep.subr.bf16.mxu0 0
    %1150 = vmatpush2.bf16.msra.mxu0 0
    %1151 = vmatprep.subr.bf16.mxu0 0
    %1152 = vmatpush2.bf16.msra.mxu0 0
    %1153 = vmatprep.mubr.bf16.mxu0 0
    %1154 = vmatmul.mubr.bf16.gmra.mxu0 %v192
    %v1155 = vpop.f32.mrf.mxu0
    %v1156 = vadd.f32 %v563, %v1155
    %v1157 = vpop.f32.mrf.mxu0
    %v1158 = vpop.f32.mrf.mxu0
    %v1159 = vadd.f32 %v566, %v1158
    %v1160 = vpop.f32.mrf.mxu0
    %1161 = vmatprep.mubr.bf16.mxu0 0
    %1162 = vmatmul.mubr.bf16.gmra.mxu0 %v193
    %v1163 = vpop.f32.mrf.mxu0
    %v1164 = vadd.f32 %v571, %v1163
    %v1165 = vpop.f32.mrf.mxu0
    %v1166 = vpop.f32.mrf.mxu0
    %v1167 = vadd.f32 %v574, %v1166
    %v1168 = vpop.f32.mrf.mxu0
    %1169 = vmatprep.mubr.bf16.mxu0 0
    %1170 = vmatmul.mubr.bf16.gmra.mxu0 %v194
    %v1171 = vpop.f32.mrf.mxu0
    %v1172 = vadd.f32 %v579, %v1171
    %v1173 = vpop.f32.mrf.mxu0
    %v1174 = vpop.f32.mrf.mxu0
    %v1175 = vadd.f32 %v582, %v1174
    %v1176 = vpop.f32.mrf.mxu0
    %1177 = vmatprep.mubr.bf16.mxu0 0
    %1178 = vmatmul.mubr.bf16.gmra.mxu0 %v195
    %v1179 = vpop.f32.mrf.mxu0
    %v1180 = vadd.f32 %v587, %v1179
    %v1181 = vpop.f32.mrf.mxu0
    %v1182 = vpop.f32.mrf.mxu0
    %v1183 = vadd.f32 %v590, %v1182
    %v1184 = vpop.f32.mrf.mxu0
    %1185 = vmatprep.mubr.bf16.mxu0 0
    %1186 = vmatmul.mubr.bf16.gmra.mxu0 %v196
    %v1187 = vpop.f32.mrf.mxu0
    %v1188 = vadd.f32 %v595, %v1187
    %v1189 = vpop.f32.mrf.mxu0
    %v1190 = vpop.f32.mrf.mxu0
    %v1191 = vadd.f32 %v598, %v1190
    %v1192 = vpop.f32.mrf.mxu0
    %1193 = vmatprep.mubr.bf16.mxu0 0
    %1194 = vmatmul.mubr.bf16.gmra.mxu0 %v197
    %v1195 = vpop.f32.mrf.mxu0
    %v1196 = vadd.f32 %v603, %v1195
    %v1197 = vpop.f32.mrf.mxu0
    %v1198 = vpop.f32.mrf.mxu0
    %v1199 = vadd.f32 %v606, %v1198
    %v1200 = vpop.f32.mrf.mxu0
    %1201 = vmatprep.mubr.bf16.mxu0 0
    %1202 = vmatmul.mubr.bf16.gmra.mxu0 %v198
    %v1203 = vpop.f32.mrf.mxu0
    %v1204 = vadd.f32 %v611, %v1203
    %v1205 = vpop.f32.mrf.mxu0
    %v1206 = vpop.f32.mrf.mxu0
    %v1207 = vadd.f32 %v614, %v1206
    %v1208 = vpop.f32.mrf.mxu0
    %1209 = vmatprep.mubr.bf16.mxu0 0
    %1210 = vmatmul.mubr.bf16.gmra.mxu0 %v199
    %v1211 = vpop.f32.mrf.mxu0
    %v1212 = vadd.f32 %v619, %v1211
    %v1213 = vpop.f32.mrf.mxu0
    %v1214 = vpop.f32.mrf.mxu0
    %v1215 = vadd.f32 %v622, %v1214
    %v1216 = vpop.f32.mrf.mxu0
    %1217 = vmatprep.mubr.bf16.mxu0 0
    %1218 = vmatmul.mubr.bf16.gmra.mxu0 %v200
    %v1219 = vpop.f32.mrf.mxu0
    %v1220 = vadd.f32 %v627, %v1219
    %v1221 = vpop.f32.mrf.mxu0
    %v1222 = vpop.f32.mrf.mxu0
    %v1223 = vadd.f32 %v630, %v1222
    %v1224 = vpop.f32.mrf.mxu0
    %1225 = vmatprep.mubr.bf16.mxu0 0
    %1226 = vmatmul.mubr.bf16.gmra.mxu0 %v201
    %v1227 = vpop.f32.mrf.mxu0
    %v1228 = vadd.f32 %v635, %v1227
    %v1229 = vpop.f32.mrf.mxu0
    %v1230 = vpop.f32.mrf.mxu0
    %v1231 = vadd.f32 %v638, %v1230
    %v1232 = vpop.f32.mrf.mxu0
    %1233 = vmatprep.mubr.bf16.mxu0 0
    %1234 = vmatmul.mubr.bf16.gmra.mxu0 %v202
    %v1235 = vpop.f32.mrf.mxu0
    %v1236 = vadd.f32 %v643, %v1235
    %v1237 = vpop.f32.mrf.mxu0
    %v1238 = vpop.f32.mrf.mxu0
    %v1239 = vadd.f32 %v646, %v1238
    %v1240 = vpop.f32.mrf.mxu0
    %1241 = vmatprep.mubr.bf16.mxu0 0
    %1242 = vmatmul.mubr.bf16.gmra.mxu0 %v203
    %v1243 = vpop.f32.mrf.mxu0
    %v1244 = vadd.f32 %v651, %v1243
    %v1245 = vpop.f32.mrf.mxu0
    %v1246 = vpop.f32.mrf.mxu0
    %v1247 = vadd.f32 %v654, %v1246
    %v1248 = vpop.f32.mrf.mxu0
    %1249 = vmatprep.mubr.bf16.mxu0 0
    %1250 = vmatmul.mubr.bf16.gmra.mxu0 %v204
    %v1251 = vpop.f32.mrf.mxu0
    %v1252 = vadd.f32 %v659, %v1251
    %v1253 = vpop.f32.mrf.mxu0
    %v1254 = vpop.f32.mrf.mxu0
    %v1255 = vadd.f32 %v662, %v1254
    %v1256 = vpop.f32.mrf.mxu0
    %1257 = vmatprep.mubr.bf16.mxu0 0
    %1258 = vmatmul.mubr.bf16.gmra.mxu0 %v205
    %v1259 = vpop.f32.mrf.mxu0
    %v1260 = vadd.f32 %v667, %v1259
    %v1261 = vpop.f32.mrf.mxu0
    %v1262 = vpop.f32.mrf.mxu0
    %v1263 = vadd.f32 %v670, %v1262
    %v1264 = vpop.f32.mrf.mxu0
    %1265 = vmatprep.mubr.bf16.mxu0 0
    %1266 = vmatmul.mubr.bf16.gmra.mxu0 %v206
    %v1267 = vpop.f32.mrf.mxu0
    %v1268 = vadd.f32 %v675, %v1267
    %v1269 = vpop.f32.mrf.mxu0
    %v1270 = vpop.f32.mrf.mxu0
    %v1271 = vadd.f32 %v678, %v1270
    %v1272 = vpop.f32.mrf.mxu0
    %1273 = vmatprep.mubr.bf16.mxu0 0
    %1274 = vmatmul.mubr.bf16.gmra.mxu0 %v207
    %v1275 = vpop.f32.mrf.mxu0
    %v1276 = vadd.f32 %v683, %v1275
    %v1277 = vpop.f32.mrf.mxu0
    %v1278 = vpop.f32.mrf.mxu0
    %v1279 = vadd.f32 %v686, %v1278
    %v1280 = vpop.f32.mrf.mxu0
    %1281 = vmatprep.mubr.bf16.mxu0 0
    %1282 = vmatmul.mubr.bf16.gmra.mxu0 %v208
    %v1283 = vpop.f32.mrf.mxu0
    %v1284 = vadd.f32 %v691, %v1283
    %v1285 = vpop.f32.mrf.mxu0
    %v1286 = vpop.f32.mrf.mxu0
    %v1287 = vadd.f32 %v694, %v1286
    %v1288 = vpop.f32.mrf.mxu0
    %1289 = vmatprep.mubr.bf16.mxu0 0
    %1290 = vmatmul.mubr.bf16.gmra.mxu0 %v209
    %v1291 = vpop.f32.mrf.mxu0
    %v1292 = vadd.f32 %v699, %v1291
    %v1293 = vpop.f32.mrf.mxu0
    %v1294 = vpop.f32.mrf.mxu0
    %v1295 = vadd.f32 %v702, %v1294
    %v1296 = vpop.f32.mrf.mxu0
    %1297 = vmatprep.mubr.bf16.mxu0 0
    %1298 = vmatmul.mubr.bf16.gmra.mxu0 %v210
    %v1299 = vpop.f32.mrf.mxu0
    %v1300 = vadd.f32 %v707, %v1299
    %v1301 = vpop.f32.mrf.mxu0
    %v1302 = vpop.f32.mrf.mxu0
    %v1303 = vadd.f32 %v710, %v1302
    %v1304 = vpop.f32.mrf.mxu0
    %1305 = vmatprep.mubr.bf16.mxu0 0
    %1306 = vmatmul.mubr.bf16.gmra.mxu0 %v211
    %v1307 = vpop.f32.mrf.mxu0
    %v1308 = vadd.f32 %v715, %v1307
    %v1309 = vpop.f32.mrf.mxu0
    %v1310 = vpop.f32.mrf.mxu0
    %v1311 = vadd.f32 %v718, %v1310
    %v1312 = vpop.f32.mrf.mxu0
    %1313 = vmatprep.mubr.bf16.mxu0 0
    %1314 = vmatmul.mubr.bf16.gmra.mxu0 %v212
    %v1315 = vpop.f32.mrf.mxu0
    %v1316 = vadd.f32 %v723, %v1315
    %v1317 = vpop.f32.mrf.mxu0
    %v1318 = vpop.f32.mrf.mxu0
    %v1319 = vadd.f32 %v726, %v1318
    %v1320 = vpop.f32.mrf.mxu0
    %1321 = vmatprep.mubr.bf16.mxu0 0
    %1322 = vmatmul.mubr.bf16.gmra.mxu0 %v213
    %v1323 = vpop.f32.mrf.mxu0
    %v1324 = vadd.f32 %v731, %v1323
    %v1325 = vpop.f32.mrf.mxu0
    %v1326 = vpop.f32.mrf.mxu0
    %v1327 = vadd.f32 %v734, %v1326
    %v1328 = vpop.f32.mrf.mxu0
    %1329 = vmatprep.mubr.bf16.mxu0 0
    %1330 = vmatmul.mubr.bf16.gmra.mxu0 %v214
    %v1331 = vpop.f32.mrf.mxu0
    %v1332 = vadd.f32 %v739, %v1331
    %v1333 = vpop.f32.mrf.mxu0
    %v1334 = vpop.f32.mrf.mxu0
    %v1335 = vadd.f32 %v742, %v1334
    %v1336 = vpop.f32.mrf.mxu0
    %1337 = vmatprep.mubr.bf16.mxu0 0
    %1338 = vmatmul.mubr.bf16.gmra.mxu0 %v215
    %v1339 = vpop.f32.mrf.mxu0
    %v1340 = vadd.f32 %v747, %v1339
    %v1341 = vpop.f32.mrf.mxu0
    %v1342 = vpop.f32.mrf.mxu0
    %v1343 = vadd.f32 %v750, %v1342
    %v1344 = vpop.f32.mrf.mxu0
    %1345 = vmatprep.mubr.bf16.mxu0 0
    %1346 = vmatmul.mubr.bf16.gmra.mxu0 %v216
    %v1347 = vpop.f32.mrf.mxu0
    %v1348 = vadd.f32 %v755, %v1347
    %v1349 = vpop.f32.mrf.mxu0
    %v1350 = vpop.f32.mrf.mxu0
    %v1351 = vadd.f32 %v758, %v1350
    %v1352 = vpop.f32.mrf.mxu0
    %1353 = vmatprep.mubr.bf16.mxu0 0
    %1354 = vmatmul.mubr.bf16.gmra.mxu0 %v217
    %v1355 = vpop.f32.mrf.mxu0
    %v1356 = vadd.f32 %v763, %v1355
    %v1357 = vpop.f32.mrf.mxu0
    %v1358 = vpop.f32.mrf.mxu0
    %v1359 = vadd.f32 %v766, %v1358
    %v1360 = vpop.f32.mrf.mxu0
    %1361 = vmatprep.mubr.bf16.mxu0 0
    %1362 = vmatmul.mubr.bf16.gmra.mxu0 %v218
    %v1363 = vpop.f32.mrf.mxu0
    %v1364 = vadd.f32 %v771, %v1363
    %v1365 = vpop.f32.mrf.mxu0
    %v1366 = vpop.f32.mrf.mxu0
    %v1367 = vadd.f32 %v774, %v1366
    %v1368 = vpop.f32.mrf.mxu0
    %1369 = vmatprep.mubr.bf16.mxu0 0
    %1370 = vmatmul.mubr.bf16.gmra.mxu0 %v219
    %v1371 = vpop.f32.mrf.mxu0
    %v1372 = vadd.f32 %v779, %v1371
    %v1373 = vpop.f32.mrf.mxu0
    %v1374 = vpop.f32.mrf.mxu0
    %v1375 = vadd.f32 %v782, %v1374
    %v1376 = vpop.f32.mrf.mxu0
    %1377 = vmatprep.mubr.bf16.mxu0 0
    %1378 = vmatmul.mubr.bf16.gmra.mxu0 %v220
    %v1379 = vpop.f32.mrf.mxu0
    %v1380 = vadd.f32 %v787, %v1379
    %v1381 = vpop.f32.mrf.mxu0
    %v1382 = vpop.f32.mrf.mxu0
    %v1383 = vadd.f32 %v790, %v1382
    %v1384 = vpop.f32.mrf.mxu0
    %1385 = vmatprep.mubr.bf16.mxu0 0
    %1386 = vmatmul.mubr.bf16.gmra.mxu0 %v221
    %v1387 = vpop.f32.mrf.mxu0
    %v1388 = vadd.f32 %v795, %v1387
    %v1389 = vpop.f32.mrf.mxu0
    %v1390 = vpop.f32.mrf.mxu0
    %v1391 = vadd.f32 %v798, %v1390
    %v1392 = vpop.f32.mrf.mxu0
    %1393 = vmatprep.mubr.bf16.mxu0 0
    %1394 = vmatmul.mubr.bf16.gmra.mxu0 %v222
    %v1395 = vpop.f32.mrf.mxu0
    %v1396 = vadd.f32 %v803, %v1395
    %v1397 = vpop.f32.mrf.mxu0
    %v1398 = vpop.f32.mrf.mxu0
    %v1399 = vadd.f32 %v806, %v1398
    %v1400 = vpop.f32.mrf.mxu0
    %1401 = vmatprep.mubr.bf16.mxu0 0
    %1402 = vmatmul.mubr.bf16.gmra.mxu0 %v223
    %v1403 = vpop.f32.mrf.mxu0
    %v1404 = vadd.f32 %v811, %v1403
    %v1405 = vpop.f32.mrf.mxu0
    %v1406 = vpop.f32.mrf.mxu0
    %v1407 = vadd.f32 %v814, %v1406
    %v1408 = vpop.f32.mrf.mxu0
    %1409 = vmatprep.mubr.bf16.mxu0 0
    %1410 = vmatmul.mubr.bf16.gmra.mxu0 %v224
    %v1411 = vpop.f32.mrf.mxu0
    %v1412 = vadd.f32 %v819, %v1411
    %v1413 = vpop.f32.mrf.mxu0
    %v1414 = vpop.f32.mrf.mxu0
    %v1415 = vadd.f32 %v822, %v1414
    %v1416 = vpop.f32.mrf.mxu0
    %1417 = vmatprep.mubr.bf16.mxu0 0
    %1418 = vmatmul.mubr.bf16.gmra.mxu0 %v225
    %v1419 = vpop.f32.mrf.mxu0
    %v1420 = vadd.f32 %v827, %v1419
    %v1421 = vpop.f32.mrf.mxu0
    %v1422 = vpop.f32.mrf.mxu0
    %v1423 = vadd.f32 %v830, %v1422
    %v1424 = vpop.f32.mrf.mxu0
    %1425 = vmatprep.mubr.bf16.mxu0 0
    %1426 = vmatmul.mubr.bf16.gmra.mxu0 %v226
    %v1427 = vpop.f32.mrf.mxu0
    %v1428 = vadd.f32 %v835, %v1427
    %v1429 = vpop.f32.mrf.mxu0
    %v1430 = vpop.f32.mrf.mxu0
    %v1431 = vadd.f32 %v838, %v1430
    %v1432 = vpop.f32.mrf.mxu0
    %1433 = vmatprep.mubr.bf16.mxu0 0
    %1434 = vmatmul.mubr.bf16.gmra.mxu0 %v227
    %v1435 = vpop.f32.mrf.mxu0
    %v1436 = vadd.f32 %v843, %v1435
    %v1437 = vpop.f32.mrf.mxu0
    %v1438 = vpop.f32.mrf.mxu0
    %v1439 = vadd.f32 %v846, %v1438
    %v1440 = vpop.f32.mrf.mxu0
    %1441 = vmatprep.mubr.bf16.mxu0 0
    %1442 = vmatmul.mubr.bf16.gmra.mxu0 %v228
    %v1443 = vpop.f32.mrf.mxu0
    %v1444 = vadd.f32 %v851, %v1443
    %v1445 = vpop.f32.mrf.mxu0
    %v1446 = vpop.f32.mrf.mxu0
    %v1447 = vadd.f32 %v854, %v1446
    %v1448 = vpop.f32.mrf.mxu0
    %1449 = vmatprep.mubr.bf16.mxu0 0
    %1450 = vmatmul.mubr.bf16.gmra.mxu0 %v229
    %v1451 = vpop.f32.mrf.mxu0
    %v1452 = vadd.f32 %v859, %v1451
    %v1453 = vpop.f32.mrf.mxu0
    %v1454 = vpop.f32.mrf.mxu0
    %v1455 = vadd.f32 %v862, %v1454
    %v1456 = vpop.f32.mrf.mxu0
    %1457 = vmatprep.mubr.bf16.mxu0 0
    %1458 = vmatmul.mubr.bf16.gmra.mxu0 %v230
    %v1459 = vpop.f32.mrf.mxu0
    %v1460 = vadd.f32 %v867, %v1459
    %v1461 = vpop.f32.mrf.mxu0
    %v1462 = vpop.f32.mrf.mxu0
    %v1463 = vadd.f32 %v870, %v1462
    %v1464 = vpop.f32.mrf.mxu0
    %1465 = vmatprep.mubr.bf16.mxu0 0
    %1466 = vmatmul.mubr.bf16.gmra.mxu0 %v231
    %v1467 = vpop.f32.mrf.mxu0
    %v1468 = vadd.f32 %v875, %v1467
    %v1469 = vpop.f32.mrf.mxu0
    %v1470 = vpop.f32.mrf.mxu0
    %v1471 = vadd.f32 %v878, %v1470
    %v1472 = vpop.f32.mrf.mxu0
    %1473 = vmatprep.mubr.bf16.mxu0 0
    %1474 = vmatmul.mubr.bf16.gmra.mxu0 %v232
    %v1475 = vpop.f32.mrf.mxu0
    %v1476 = vadd.f32 %v883, %v1475
    %v1477 = vpop.f32.mrf.mxu0
    %v1478 = vpop.f32.mrf.mxu0
    %v1479 = vadd.f32 %v886, %v1478
    %v1480 = vpop.f32.mrf.mxu0
    %1481 = vmatprep.mubr.bf16.mxu0 0
    %1482 = vmatmul.mubr.bf16.gmra.mxu0 %v233
    %v1483 = vpop.f32.mrf.mxu0
    %v1484 = vadd.f32 %v891, %v1483
    %v1485 = vpop.f32.mrf.mxu0
    %v1486 = vpop.f32.mrf.mxu0
    %v1487 = vadd.f32 %v894, %v1486
    %v1488 = vpop.f32.mrf.mxu0
    %1489 = vmatprep.mubr.bf16.mxu0 0
    %1490 = vmatmul.mubr.bf16.gmra.mxu0 %v234
    %v1491 = vpop.f32.mrf.mxu0
    %v1492 = vadd.f32 %v899, %v1491
    %v1493 = vpop.f32.mrf.mxu0
    %v1494 = vpop.f32.mrf.mxu0
    %v1495 = vadd.f32 %v902, %v1494
    %v1496 = vpop.f32.mrf.mxu0
    %1497 = vmatprep.mubr.bf16.mxu0 0
    %1498 = vmatmul.mubr.bf16.gmra.mxu0 %v235
    %v1499 = vpop.f32.mrf.mxu0
    %v1500 = vadd.f32 %v907, %v1499
    %v1501 = vpop.f32.mrf.mxu0
    %v1502 = vpop.f32.mrf.mxu0
    %v1503 = vadd.f32 %v910, %v1502
    %v1504 = vpop.f32.mrf.mxu0
    %1505 = vmatprep.mubr.bf16.mxu0 0
    %1506 = vmatmul.mubr.bf16.gmra.mxu0 %v236
    %v1507 = vpop.f32.mrf.mxu0
    %v1508 = vadd.f32 %v915, %v1507
    %v1509 = vpop.f32.mrf.mxu0
    %v1510 = vpop.f32.mrf.mxu0
    %v1511 = vadd.f32 %v918, %v1510
    %v1512 = vpop.f32.mrf.mxu0
    %1513 = vmatprep.mubr.bf16.mxu0 0
    %1514 = vmatmul.mubr.bf16.gmra.mxu0 %v237
    %v1515 = vpop.f32.mrf.mxu0
    %v1516 = vadd.f32 %v923, %v1515
    %v1517 = vpop.f32.mrf.mxu0
    %v1518 = vpop.f32.mrf.mxu0
    %v1519 = vadd.f32 %v926, %v1518
    %v1520 = vpop.f32.mrf.mxu0
    %1521 = vmatprep.mubr.bf16.mxu0 0
    %1522 = vmatmul.mubr.bf16.gmra.mxu0 %v238
    %v1523 = vpop.f32.mrf.mxu0
    %v1524 = vadd.f32 %v931, %v1523
    %v1525 = vpop.f32.mrf.mxu0
    %v1526 = vpop.f32.mrf.mxu0
    %v1527 = vadd.f32 %v934, %v1526
    %v1528 = vpop.f32.mrf.mxu0
    %1529 = vmatprep.mubr.bf16.mxu0 0
    %1530 = vmatmul.mubr.bf16.gmra.mxu0 %v239
    %v1531 = vpop.f32.mrf.mxu0
    %v1532 = vadd.f32 %v939, %v1531
    %v1533 = vpop.f32.mrf.mxu0
    %v1534 = vpop.f32.mrf.mxu0
    %v1535 = vadd.f32 %v942, %v1534
    %v1536 = vpop.f32.mrf.mxu0
    %1537 = vmatprep.mubr.bf16.mxu0 0
    %1538 = vmatmul.mubr.bf16.gmra.mxu0 %v240
    %v1539 = vpop.f32.mrf.mxu0
    %v1540 = vadd.f32 %v947, %v1539
    %v1541 = vpop.f32.mrf.mxu0
    %v1542 = vpop.f32.mrf.mxu0
    %v1543 = vadd.f32 %v950, %v1542
    %v1544 = vpop.f32.mrf.mxu0
    %1545 = vmatprep.mubr.bf16.mxu0 0
    %1546 = vmatmul.mubr.bf16.gmra.mxu0 %v241
    %v1547 = vpop.f32.mrf.mxu0
    %v1548 = vadd.f32 %v955, %v1547
    %v1549 = vpop.f32.mrf.mxu0
    %v1550 = vpop.f32.mrf.mxu0
    %v1551 = vadd.f32 %v958, %v1550
    %v1552 = vpop.f32.mrf.mxu0
    %1553 = vmatprep.mubr.bf16.mxu0 0
    %1554 = vmatmul.mubr.bf16.gmra.mxu0 %v242
    %v1555 = vpop.f32.mrf.mxu0
    %v1556 = vadd.f32 %v963, %v1555
    %v1557 = vpop.f32.mrf.mxu0
    %v1558 = vpop.f32.mrf.mxu0
    %v1559 = vadd.f32 %v966, %v1558
    %v1560 = vpop.f32.mrf.mxu0
    %1561 = vmatprep.mubr.bf16.mxu0 0
    %1562 = vmatmul.mubr.bf16.gmra.mxu0 %v243
    %v1563 = vpop.f32.mrf.mxu0
    %v1564 = vadd.f32 %v971, %v1563
    %v1565 = vpop.f32.mrf.mxu0
    %v1566 = vpop.f32.mrf.mxu0
    %v1567 = vadd.f32 %v974, %v1566
    %v1568 = vpop.f32.mrf.mxu0
    %1569 = vmatprep.mubr.bf16.mxu0 0
    %1570 = vmatmul.mubr.bf16.gmra.mxu0 %v244
    %v1571 = vpop.f32.mrf.mxu0
    %v1572 = vadd.f32 %v979, %v1571
    %v1573 = vpop.f32.mrf.mxu0
    %v1574 = vpop.f32.mrf.mxu0
    %v1575 = vadd.f32 %v982, %v1574
    %v1576 = vpop.f32.mrf.mxu0
    %1577 = vmatprep.mubr.bf16.mxu0 0
    %1578 = vmatmul.mubr.bf16.gmra.mxu0 %v245
    %v1579 = vpop.f32.mrf.mxu0
    %v1580 = vadd.f32 %v987, %v1579
    %v1581 = vpop.f32.mrf.mxu0
    %v1582 = vpop.f32.mrf.mxu0
    %v1583 = vadd.f32 %v990, %v1582
    %v1584 = vpop.f32.mrf.mxu0
    %1585 = vmatprep.mubr.bf16.mxu0 0
    %1586 = vmatmul.mubr.bf16.gmra.mxu0 %v246
    %v1587 = vpop.f32.mrf.mxu0
    %v1588 = vadd.f32 %v995, %v1587
    %v1589 = vpop.f32.mrf.mxu0
    %v1590 = vpop.f32.mrf.mxu0
    %v1591 = vadd.f32 %v998, %v1590
    %v1592 = vpop.f32.mrf.mxu0
    %1593 = vmatprep.mubr.bf16.mxu0 0
    %1594 = vmatmul.mubr.bf16.gmra.mxu0 %v247
    %v1595 = vpop.f32.mrf.mxu0
    %v1596 = vadd.f32 %v1003, %v1595
    %v1597 = vpop.f32.mrf.mxu0
    %v1598 = vpop.f32.mrf.mxu0
    %v1599 = vadd.f32 %v1006, %v1598
    %v1600 = vpop.f32.mrf.mxu0
    %1601 = vmatprep.mubr.bf16.mxu0 0
    %1602 = vmatmul.mubr.bf16.gmra.mxu0 %v248
    %v1603 = vpop.f32.mrf.mxu0
    %v1604 = vadd.f32 %v1011, %v1603
    %v1605 = vpop.f32.mrf.mxu0
    %v1606 = vpop.f32.mrf.mxu0
    %v1607 = vadd.f32 %v1014, %v1606
    %v1608 = vpop.f32.mrf.mxu0
    %1609 = vmatprep.mubr.bf16.mxu0 0
    %1610 = vmatmul.mubr.bf16.gmra.mxu0 %v249
    %v1611 = vpop.f32.mrf.mxu0
    %v1612 = vadd.f32 %v1019, %v1611
    %v1613 = vpop.f32.mrf.mxu0
    %v1614 = vpop.f32.mrf.mxu0
    %v1615 = vadd.f32 %v1022, %v1614
    %v1616 = vpop.f32.mrf.mxu0
    %1617 = vmatprep.mubr.bf16.mxu0 0
    %1618 = vmatmul.mubr.bf16.gmra.mxu0 %v250
    %v1619 = vpop.f32.mrf.mxu0
    %v1620 = vadd.f32 %v1027, %v1619
    %v1621 = vpop.f32.mrf.mxu0
    %v1622 = vpop.f32.mrf.mxu0
    %v1623 = vadd.f32 %v1030, %v1622
    %v1624 = vpop.f32.mrf.mxu0
    %1625 = vmatprep.mubr.bf16.mxu0 0
    %1626 = vmatmul.mubr.bf16.gmra.mxu0 %v251
    %v1627 = vpop.f32.mrf.mxu0
    %v1628 = vadd.f32 %v1035, %v1627
    %v1629 = vpop.f32.mrf.mxu0
    %v1630 = vpop.f32.mrf.mxu0
    %v1631 = vadd.f32 %v1038, %v1630
    %v1632 = vpop.f32.mrf.mxu0
    %1633 = vmatprep.mubr.bf16.mxu0 0
    %1634 = vmatmul.mubr.bf16.gmra.mxu0 %v252
    %v1635 = vpop.f32.mrf.mxu0
    %v1636 = vadd.f32 %v1043, %v1635
    %v1637 = vpop.f32.mrf.mxu0
    %v1638 = vpop.f32.mrf.mxu0
    %v1639 = vadd.f32 %v1046, %v1638
    %v1640 = vpop.f32.mrf.mxu0
    %1641 = vmatprep.mubr.bf16.mxu0 0
    %1642 = vmatmul.mubr.bf16.gmra.mxu0 %v253
    %v1643 = vpop.f32.mrf.mxu0
    %v1644 = vadd.f32 %v1051, %v1643
    %v1645 = vpop.f32.mrf.mxu0
    %v1646 = vpop.f32.mrf.mxu0
    %v1647 = vadd.f32 %v1054, %v1646
    %v1648 = vpop.f32.mrf.mxu0
    %1649 = vmatprep.mubr.bf16.mxu0 0
    %1650 = vmatmul.mubr.bf16.gmra.mxu0 %v254
    %v1651 = vpop.f32.mrf.mxu0
    %v1652 = vadd.f32 %v1059, %v1651
    %v1653 = vpop.f32.mrf.mxu0
    %v1654 = vpop.f32.mrf.mxu0
    %v1655 = vadd.f32 %v1062, %v1654
    %v1656 = vpop.f32.mrf.mxu0
    %1657 = vmatprep.mubr.bf16.mxu0 0
    %1658 = vmatmul.mubr.bf16.gmra.mxu0 %v255
    %v1659 = vpop.f32.mrf.mxu0
    %v1660 = vadd.f32 %v1067, %v1659
    %v1661 = vpop.f32.mrf.mxu0
    %v1662 = vpop.f32.mrf.mxu0
    %v1663 = vadd.f32 %v1070, %v1662
    %v1664 = vpop.f32.mrf.mxu0
    %1665 = vdwg.mxu0
    %v1666 = vld [vmem:[%s4] sm:$0x1]
    %v1668 = vlaneseq
    %v1669 = vshrl.u32 %v1668, 7
    %v1670 = vsub.s32 0, %v1669
    %v1671 = vrot.slane %v1666, %v1670
    %v1673 = vadd.f32 %v1156, %v1671
    %v1674 = vadd.f32 %v1159, %v1671
    %v1675 = vadd.f32 %v1164, %v1671
    %v1676 = vadd.f32 %v1167, %v1671
    %v1677 = vadd.f32 %v1172, %v1671
    %v1678 = vadd.f32 %v1175, %v1671
    %v1679 = vadd.f32 %v1180, %v1671
    %v1680 = vadd.f32 %v1183, %v1671
    %v1681 = vadd.f32 %v1188, %v1671
    %v1682 = vadd.f32 %v1191, %v1671
    %v1683 = vadd.f32 %v1196, %v1671
    %v1684 = vadd.f32 %v1199, %v1671
    %v1685 = vadd.f32 %v1204, %v1671
    %v1686 = vadd.f32 %v1207, %v1671
    %v1687 = vadd.f32 %v1212, %v1671
    %v1688 = vadd.f32 %v1215, %v1671
    %v1689 = vadd.f32 %v1220, %v1671
    %v1690 = vadd.f32 %v1223, %v1671
    %v1691 = vadd.f32 %v1228, %v1671
    %v1692 = vadd.f32 %v1231, %v1671
    %v1693 = vadd.f32 %v1236, %v1671
    %v1694 = vadd.f32 %v1239, %v1671
    %v1695 = vadd.f32 %v1244, %v1671
    %v1696 = vadd.f32 %v1247, %v1671
    %v1697 = vadd.f32 %v1252, %v1671
    %v1698 = vadd.f32 %v1255, %v1671
    %v1699 = vadd.f32 %v1260, %v1671
    %v1700 = vadd.f32 %v1263, %v1671
    %v1701 = vadd.f32 %v1268, %v1671
    %v1702 = vadd.f32 %v1271, %v1671
    %v1703 = vadd.f32 %v1276, %v1671
    %v1704 = vadd.f32 %v1279, %v1671
    %v1705 = vadd.f32 %v1284, %v1671
    %v1706 = vadd.f32 %v1287, %v1671
    %v1707 = vadd.f32 %v1292, %v1671
    %v1708 = vadd.f32 %v1295, %v1671
    %v1709 = vadd.f32 %v1300, %v1671
    %v1710 = vadd.f32 %v1303, %v1671
    %v1711 = vadd.f32 %v1308, %v1671
    %v1712 = vadd.f32 %v1311, %v1671
    %v1713 = vadd.f32 %v1316, %v1671
    %v1714 = vadd.f32 %v1319, %v1671
    %v1715 = vadd.f32 %v1324, %v1671
    %v1716 = vadd.f32 %v1327, %v1671
    %v1717 = vadd.f32 %v1332, %v1671
    %v1718 = vadd.f32 %v1335, %v1671
    %v1719 = vadd.f32 %v1340, %v1671
    %v1720 = vadd.f32 %v1343, %v1671
    %v1721 = vadd.f32 %v1348, %v1671
    %v1722 = vadd.f32 %v1351, %v1671
    %v1723 = vadd.f32 %v1356, %v1671
    %v1724 = vadd.f32 %v1359, %v1671
    %v1725 = vadd.f32 %v1364, %v1671
    %v1726 = vadd.f32 %v1367, %v1671
    %v1727 = vadd.f32 %v1372, %v1671
    %v1728 = vadd.f32 %v1375, %v1671
    %v1729 = vadd.f32 %v1380, %v1671
    %v1730 = vadd.f32 %v1383, %v1671
    %v1731 = vadd.f32 %v1388, %v1671
    %v1732 = vadd.f32 %v1391, %v1671
    %v1733 = vadd.f32 %v1396, %v1671
    %v1734 = vadd.f32 %v1399, %v1671
    %v1735 = vadd.f32 %v1404, %v1671
    %v1736 = vadd.f32 %v1407, %v1671
    %v1737 = vadd.f32 %v1412, %v1671
    %v1738 = vadd.f32 %v1415, %v1671
    %v1739 = vadd.f32 %v1420, %v1671
    %v1740 = vadd.f32 %v1423, %v1671
    %v1741 = vadd.f32 %v1428, %v1671
    %v1742 = vadd.f32 %v1431, %v1671
    %v1743 = vadd.f32 %v1436, %v1671
    %v1744 = vadd.f32 %v1439, %v1671
    %v1745 = vadd.f32 %v1444, %v1671
    %v1746 = vadd.f32 %v1447, %v1671
    %v1747 = vadd.f32 %v1452, %v1671
    %v1748 = vadd.f32 %v1455, %v1671
    %v1749 = vadd.f32 %v1460, %v1671
    %v1750 = vadd.f32 %v1463, %v1671
    %v1751 = vadd.f32 %v1468, %v1671
    %v1752 = vadd.f32 %v1471, %v1671
    %v1753 = vadd.f32 %v1476, %v1671
    %v1754 = vadd.f32 %v1479, %v1671
    %v1755 = vadd.f32 %v1484, %v1671
    %v1756 = vadd.f32 %v1487, %v1671
    %v1757 = vadd.f32 %v1492, %v1671
    %v1758 = vadd.f32 %v1495, %v1671
    %v1759 = vadd.f32 %v1500, %v1671
    %v1760 = vadd.f32 %v1503, %v1671
    %v1761 = vadd.f32 %v1508, %v1671
    %v1762 = vadd.f32 %v1511, %v1671
    %v1763 = vadd.f32 %v1516, %v1671
    %v1764 = vadd.f32 %v1519, %v1671
    %v1765 = vadd.f32 %v1524, %v1671
    %v1766 = vadd.f32 %v1527, %v1671
    %v1767 = vadd.f32 %v1532, %v1671
    %v1768 = vadd.f32 %v1535, %v1671
    %v1769 = vadd.f32 %v1540, %v1671
    %v1770 = vadd.f32 %v1543, %v1671
    %v1771 = vadd.f32 %v1548, %v1671
    %v1772 = vadd.f32 %v1551, %v1671
    %v1773 = vadd.f32 %v1556, %v1671
    %v1774 = vadd.f32 %v1559, %v1671
    %v1775 = vadd.f32 %v1564, %v1671
    %v1776 = vadd.f32 %v1567, %v1671
    %v1777 = vadd.f32 %v1572, %v1671
    %v1778 = vadd.f32 %v1575, %v1671
    %v1779 = vadd.f32 %v1580, %v1671
    %v1780 = vadd.f32 %v1583, %v1671
    %v1781 = vadd.f32 %v1588, %v1671
    %v1782 = vadd.f32 %v1591, %v1671
    %v1783 = vadd.f32 %v1596, %v1671
    %v1784 = vadd.f32 %v1599, %v1671
    %v1785 = vadd.f32 %v1604, %v1671
    %v1786 = vadd.f32 %v1607, %v1671
    %v1787 = vadd.f32 %v1612, %v1671
    %v1788 = vadd.f32 %v1615, %v1671
    %v1789 = vadd.f32 %v1620, %v1671
    %v1790 = vadd.f32 %v1623, %v1671
    %v1791 = vadd.f32 %v1628, %v1671
    %v1792 = vadd.f32 %v1631, %v1671
    %v1793 = vadd.f32 %v1636, %v1671
    %v1794 = vadd.f32 %v1639, %v1671
    %v1795 = vadd.f32 %v1644, %v1671
    %v1796 = vadd.f32 %v1647, %v1671
    %v1797 = vadd.f32 %v1652, %v1671
    %v1798 = vadd.f32 %v1655, %v1671
    %v1799 = vadd.f32 %v1660, %v1671
    %v1800 = vadd.f32 %v1663, %v1671
    %v1801 = vmax.f32 %v1673, 0.0
    %v1802 = vmax.f32 %v1674, 0.0
    %v1803 = vmax.f32 %v1675, 0.0
    %v1804 = vmax.f32 %v1676, 0.0
    %v1805 = vmax.f32 %v1677, 0.0
    %v1806 = vmax.f32 %v1678, 0.0
    %v1807 = vmax.f32 %v1679, 0.0
    %v1808 = vmax.f32 %v1680, 0.0
    %v1809 = vmax.f32 %v1681, 0.0
    %v1810 = vmax.f32 %v1682, 0.0
    %v1811 = vmax.f32 %v1683, 0.0
    %v1812 = vmax.f32 %v1684, 0.0
    %v1813 = vmax.f32 %v1685, 0.0
    %v1814 = vmax.f32 %v1686, 0.0
    %v1815 = vmax.f32 %v1687, 0.0
    %v1816 = vmax.f32 %v1688, 0.0
    %v1817 = vmax.f32 %v1689, 0.0
    %v1818 = vmax.f32 %v1690, 0.0
    %v1819 = vmax.f32 %v1691, 0.0
    %v1820 = vmax.f32 %v1692, 0.0
    %v1821 = vmax.f32 %v1693, 0.0
    %v1822 = vmax.f32 %v1694, 0.0
    %v1823 = vmax.f32 %v1695, 0.0
    %v1824 = vmax.f32 %v1696, 0.0
    %v1825 = vmax.f32 %v1697, 0.0
    %v1826 = vmax.f32 %v1698, 0.0
    %v1827 = vmax.f32 %v1699, 0.0
    %v1828 = vmax.f32 %v1700, 0.0
    %v1829 = vmax.f32 %v1701, 0.0
    %v1830 = vmax.f32 %v1702, 0.0
    %v1831 = vmax.f32 %v1703, 0.0
    %v1832 = vmax.f32 %v1704, 0.0
    %v1833 = vmax.f32 %v1705, 0.0
    %v1834 = vmax.f32 %v1706, 0.0
    %v1835 = vmax.f32 %v1707, 0.0
    %v1836 = vmax.f32 %v1708, 0.0
    %v1837 = vmax.f32 %v1709, 0.0
    %v1838 = vmax.f32 %v1710, 0.0
    %v1839 = vmax.f32 %v1711, 0.0
    %v1840 = vmax.f32 %v1712, 0.0
    %v1841 = vmax.f32 %v1713, 0.0
    %v1842 = vmax.f32 %v1714, 0.0
    %v1843 = vmax.f32 %v1715, 0.0
    %v1844 = vmax.f32 %v1716, 0.0
    %v1845 = vmax.f32 %v1717, 0.0
    %v1846 = vmax.f32 %v1718, 0.0
    %v1847 = vmax.f32 %v1719, 0.0
    %v1848 = vmax.f32 %v1720, 0.0
    %v1849 = vmax.f32 %v1721, 0.0
    %v1850 = vmax.f32 %v1722, 0.0
    %v1851 = vmax.f32 %v1723, 0.0
    %v1852 = vmax.f32 %v1724, 0.0
    %v1853 = vmax.f32 %v1725, 0.0
    %v1854 = vmax.f32 %v1726, 0.0
    %v1855 = vmax.f32 %v1727, 0.0
    %v1856 = vmax.f32 %v1728, 0.0
    %v1857 = vmax.f32 %v1729, 0.0
    %v1858 = vmax.f32 %v1730, 0.0
    %v1859 = vmax.f32 %v1731, 0.0
    %v1860 = vmax.f32 %v1732, 0.0
    %v1861 = vmax.f32 %v1733, 0.0
    %v1862 = vmax.f32 %v1734, 0.0
    %v1863 = vmax.f32 %v1735, 0.0
    %v1864 = vmax.f32 %v1736, 0.0
    %v1865 = vmax.f32 %v1737, 0.0
    %v1866 = vmax.f32 %v1738, 0.0
    %v1867 = vmax.f32 %v1739, 0.0
    %v1868 = vmax.f32 %v1740, 0.0
    %v1869 = vmax.f32 %v1741, 0.0
    %v1870 = vmax.f32 %v1742, 0.0
    %v1871 = vmax.f32 %v1743, 0.0
    %v1872 = vmax.f32 %v1744, 0.0
    %v1873 = vmax.f32 %v1745, 0.0
    %v1874 = vmax.f32 %v1746, 0.0
    %v1875 = vmax.f32 %v1747, 0.0
    %v1876 = vmax.f32 %v1748, 0.0
    %v1877 = vmax.f32 %v1749, 0.0
    %v1878 = vmax.f32 %v1750, 0.0
    %v1879 = vmax.f32 %v1751, 0.0
    %v1880 = vmax.f32 %v1752, 0.0
    %v1881 = vmax.f32 %v1753, 0.0
    %v1882 = vmax.f32 %v1754, 0.0
    %v1883 = vmax.f32 %v1755, 0.0
    %v1884 = vmax.f32 %v1756, 0.0
    %v1885 = vmax.f32 %v1757, 0.0
    %v1886 = vmax.f32 %v1758, 0.0
    %v1887 = vmax.f32 %v1759, 0.0
    %v1888 = vmax.f32 %v1760, 0.0
    %v1889 = vmax.f32 %v1761, 0.0
    %v1890 = vmax.f32 %v1762, 0.0
    %v1891 = vmax.f32 %v1763, 0.0
    %v1892 = vmax.f32 %v1764, 0.0
    %v1893 = vmax.f32 %v1765, 0.0
    %v1894 = vmax.f32 %v1766, 0.0
    %v1895 = vmax.f32 %v1767, 0.0
    %v1896 = vmax.f32 %v1768, 0.0
    %v1897 = vmax.f32 %v1769, 0.0
    %v1898 = vmax.f32 %v1770, 0.0
    %v1899 = vmax.f32 %v1771, 0.0
    %v1900 = vmax.f32 %v1772, 0.0
    %v1901 = vmax.f32 %v1773, 0.0
    %v1902 = vmax.f32 %v1774, 0.0
    %v1903 = vmax.f32 %v1775, 0.0
    %v1904 = vmax.f32 %v1776, 0.0
    %v1905 = vmax.f32 %v1777, 0.0
    %v1906 = vmax.f32 %v1778, 0.0
    %v1907 = vmax.f32 %v1779, 0.0
    %v1908 = vmax.f32 %v1780, 0.0
    %v1909 = vmax.f32 %v1781, 0.0
    %v1910 = vmax.f32 %v1782, 0.0
    %v1911 = vmax.f32 %v1783, 0.0
    %v1912 = vmax.f32 %v1784, 0.0
    %v1913 = vmax.f32 %v1785, 0.0
    %v1914 = vmax.f32 %v1786, 0.0
    %v1915 = vmax.f32 %v1787, 0.0
    %v1916 = vmax.f32 %v1788, 0.0
    %v1917 = vmax.f32 %v1789, 0.0
    %v1918 = vmax.f32 %v1790, 0.0
    %v1919 = vmax.f32 %v1791, 0.0
    %v1920 = vmax.f32 %v1792, 0.0
    %v1921 = vmax.f32 %v1793, 0.0
    %v1922 = vmax.f32 %v1794, 0.0
    %v1923 = vmax.f32 %v1795, 0.0
    %v1924 = vmax.f32 %v1796, 0.0
    %v1925 = vmax.f32 %v1797, 0.0
    %v1926 = vmax.f32 %v1798, 0.0
    %v1927 = vmax.f32 %v1799, 0.0
    %v1928 = vmax.f32 %v1800, 0.0
    %v1929 = vpack.c.bf16 %v1802, %v1801
    %v1930 = vpack.c.bf16 %v1804, %v1803
    %v1931 = vpack.c.bf16 %v1806, %v1805
    %v1932 = vpack.c.bf16 %v1808, %v1807
    %v1933 = vpack.c.bf16 %v1810, %v1809
    %v1934 = vpack.c.bf16 %v1812, %v1811
    %v1935 = vpack.c.bf16 %v1814, %v1813
    %v1936 = vpack.c.bf16 %v1816, %v1815
    %v1937 = vpack.c.bf16 %v1818, %v1817
    %v1938 = vpack.c.bf16 %v1820, %v1819
    %v1939 = vpack.c.bf16 %v1822, %v1821
    %v1940 = vpack.c.bf16 %v1824, %v1823
    %v1941 = vpack.c.bf16 %v1826, %v1825
    %v1942 = vpack.c.bf16 %v1828, %v1827
    %v1943 = vpack.c.bf16 %v1830, %v1829
    %v1944 = vpack.c.bf16 %v1832, %v1831
    %v1945 = vpack.c.bf16 %v1834, %v1833
    %v1946 = vpack.c.bf16 %v1836, %v1835
    %v1947 = vpack.c.bf16 %v1838, %v1837
    %v1948 = vpack.c.bf16 %v1840, %v1839
    %v1949 = vpack.c.bf16 %v1842, %v1841
    %v1950 = vpack.c.bf16 %v1844, %v1843
    %v1951 = vpack.c.bf16 %v1846, %v1845
    %v1952 = vpack.c.bf16 %v1848, %v1847
    %v1953 = vpack.c.bf16 %v1850, %v1849
    %v1954 = vpack.c.bf16 %v1852, %v1851
    %v1955 = vpack.c.bf16 %v1854, %v1853
    %v1956 = vpack.c.bf16 %v1856, %v1855
    %v1957 = vpack.c.bf16 %v1858, %v1857
    %v1958 = vpack.c.bf16 %v1860, %v1859
    %v1959 = vpack.c.bf16 %v1862, %v1861
    %v1960 = vpack.c.bf16 %v1864, %v1863
    %v1961 = vpack.c.bf16 %v1866, %v1865
    %v1962 = vpack.c.bf16 %v1868, %v1867
    %v1963 = vpack.c.bf16 %v1870, %v1869
    %v1964 = vpack.c.bf16 %v1872, %v1871
    %v1965 = vpack.c.bf16 %v1874, %v1873
    %v1966 = vpack.c.bf16 %v1876, %v1875
    %v1967 = vpack.c.bf16 %v1878, %v1877
    %v1968 = vpack.c.bf16 %v1880, %v1879
    %v1969 = vpack.c.bf16 %v1882, %v1881
    %v1970 = vpack.c.bf16 %v1884, %v1883
    %v1971 = vpack.c.bf16 %v1886, %v1885
    %v1972 = vpack.c.bf16 %v1888, %v1887
    %v1973 = vpack.c.bf16 %v1890, %v1889
    %v1974 = vpack.c.bf16 %v1892, %v1891
    %v1975 = vpack.c.bf16 %v1894, %v1893
    %v1976 = vpack.c.bf16 %v1896, %v1895
    %v1977 = vpack.c.bf16 %v1898, %v1897
    %v1978 = vpack.c.bf16 %v1900, %v1899
    %v1979 = vpack.c.bf16 %v1902, %v1901
    %v1980 = vpack.c.bf16 %v1904, %v1903
    %v1981 = vpack.c.bf16 %v1906, %v1905
    %v1982 = vpack.c.bf16 %v1908, %v1907
    %v1983 = vpack.c.bf16 %v1910, %v1909
    %v1984 = vpack.c.bf16 %v1912, %v1911
    %v1985 = vpack.c.bf16 %v1914, %v1913
    %v1986 = vpack.c.bf16 %v1916, %v1915
    %v1987 = vpack.c.bf16 %v1918, %v1917
    %v1988 = vpack.c.bf16 %v1920, %v1919
    %v1989 = vpack.c.bf16 %v1922, %v1921
    %v1990 = vpack.c.bf16 %v1924, %v1923
    %v1991 = vpack.c.bf16 %v1926, %v1925
    %v1992 = vpack.c.bf16 %v1928, %v1927
    %v1993 = vld [vmem:[%s5] sm:$0xf]
    %v1994 = vld [vmem:[%s5 + $0x4] sm:$0xf]
    %v1995 = vld [vmem:[%s5 + $0x8] sm:$0xf]
    %v1996 = vld [vmem:[%s5 + $0xc] sm:$0xf]
    %v1997 = vld [vmem:[%s5 + $0x10] sm:$0xf]
    %v1998 = vld [vmem:[%s5 + $0x14] sm:$0xf]
    %v1999 = vld [vmem:[%s5 + $0x18] sm:$0xf]
    %v2000 = vld [vmem:[%s5 + $0x1c] sm:$0xf]
    %v2001 = vld [vmem:[%s6] sm:$0x1]
    %v2003 = vlaneseq
    %v2004 = vshrl.u32 %v2003, 7
    %v2005 = vsub.s32 0, %v2004
    %v2006 = vrot.slane %v2001, %v2005
    %v2016 = vunpack.c.l.b16 %v1993
    %v2017 = vunpack.c.l.b16 %v1994
    %v2018 = vunpack.c.l.b16 %v1995
    %v2019 = vunpack.c.l.b16 %v1996
    %v2020 = vunpack.c.l.b16 %v1997
    %v2021 = vunpack.c.l.b16 %v1998
    %v2022 = vunpack.c.l.b16 %v1999
    %v2023 = vunpack.c.l.b16 %v2000
    %v2024 = vpack.c.b16 %v2017, %v2016
    %v2025 = vpack.c.b16 %v2019, %v2018
    %v2026 = vpack.c.b16 %v2021, %v2020
    %v2027 = vpack.c.b16 %v2023, %v2022
    %vm2032 = vcmask 523264
    %v2034 = vsel %vm2032, %v1929, 0
    %v2037 = vsel %vm2032, %v1930, 0
    %v2040 = vsel %vm2032, %v1931, 0
    %v2043 = vsel %vm2032, %v1932, 0
    %v2046 = vsel %vm2032, %v1933, 0
    %v2049 = vsel %vm2032, %v1934, 0
    %v2052 = vsel %vm2032, %v1935, 0
    %v2055 = vsel %vm2032, %v1936, 0
    %v2058 = vsel %vm2032, %v1937, 0
    %v2061 = vsel %vm2032, %v1938, 0
    %v2064 = vsel %vm2032, %v1939, 0
    %v2067 = vsel %vm2032, %v1940, 0
    %v2070 = vsel %vm2032, %v1941, 0
    %v2073 = vsel %vm2032, %v1942, 0
    %v2076 = vsel %vm2032, %v1943, 0
    %v2079 = vsel %vm2032, %v1944, 0
    %v2082 = vsel %vm2032, %v1945, 0
    %v2085 = vsel %vm2032, %v1946, 0
    %v2088 = vsel %vm2032, %v1947, 0
    %v2091 = vsel %vm2032, %v1948, 0
    %v2094 = vsel %vm2032, %v1949, 0
    %v2097 = vsel %vm2032, %v1950, 0
    %v2100 = vsel %vm2032, %v1951, 0
    %v2103 = vsel %vm2032, %v1952, 0
    %v2106 = vsel %vm2032, %v1953, 0
    %v2109 = vsel %vm2032, %v1954, 0
    %v2112 = vsel %vm2032, %v1955, 0
    %v2115 = vsel %vm2032, %v1956, 0
    %v2118 = vsel %vm2032, %v1957, 0
    %v2121 = vsel %vm2032, %v1958, 0
    %v2124 = vsel %vm2032, %v1959, 0
    %v2127 = vsel %vm2032, %v1960, 0
    %v2130 = vsel %vm2032, %v1961, 0
    %v2133 = vsel %vm2032, %v1962, 0
    %v2136 = vsel %vm2032, %v1963, 0
    %v2139 = vsel %vm2032, %v1964, 0
    %v2142 = vsel %vm2032, %v1965, 0
    %v2145 = vsel %vm2032, %v1966, 0
    %v2148 = vsel %vm2032, %v1967, 0
    %v2151 = vsel %vm2032, %v1968, 0
    %v2154 = vsel %vm2032, %v1969, 0
    %v2157 = vsel %vm2032, %v1970, 0
    %v2160 = vsel %vm2032, %v1971, 0
    %v2163 = vsel %vm2032, %v1972, 0
    %v2166 = vsel %vm2032, %v1973, 0
    %v2169 = vsel %vm2032, %v1974, 0
    %v2172 = vsel %vm2032, %v1975, 0
    %v2175 = vsel %vm2032, %v1976, 0
    %v2178 = vsel %vm2032, %v1977, 0
    %v2181 = vsel %vm2032, %v1978, 0
    %v2184 = vsel %vm2032, %v1979, 0
    %v2187 = vsel %vm2032, %v1980, 0
    %v2190 = vsel %vm2032, %v1981, 0
    %v2193 = vsel %vm2032, %v1982, 0
    %v2196 = vsel %vm2032, %v1983, 0
    %v2199 = vsel %vm2032, %v1984, 0
    %v2202 = vsel %vm2032, %v1985, 0
    %v2205 = vsel %vm2032, %v1986, 0
    %v2208 = vsel %vm2032, %v1987, 0
    %v2211 = vsel %vm2032, %v1988, 0
    %v2214 = vsel %vm2032, %v1989, 0
    %v2217 = vsel %vm2032, %v1990, 0
    %v2220 = vsel %vm2032, %v1991, 0
    %v2223 = vsel %vm2032, %v1992, 0
    %2225 = vmatprep.subr.bf16.mxu0 0
    %2226 = vmatpush1.bf16.msra.mxu0 0
    %2227 = vmatprep.subr.bf16.mxu0 0
    %2228 = vmatpush1.bf16.msra.mxu0 0
    %2229 = vmatprep.subr.bf16.mxu0 0
    %2230 = vmatpush1.bf16.msra.mxu0 0
    %2231 = vmatprep.subr.bf16.mxu0 0
    %2232 = vmatpush1.bf16.msra.mxu0 0
    %2233 = vmatprep.subr.bf16.mxu0 0
    %2234 = vmatpush1.bf16.msra.mxu0 %v2027
    %2235 = vmatprep.subr.bf16.mxu0 0
    %2236 = vmatpush1.bf16.msra.mxu0 %v2026
    %2237 = vmatprep.subr.bf16.mxu0 0
    %2238 = vmatpush1.bf16.msra.mxu0 %v2025
    %2239 = vmatprep.subr.bf16.mxu0 0
    %2240 = vmatpush1.bf16.msra.mxu0 %v2024
    %2241 = vmatprep.subr.bf16.mxu0 0
    %2242 = vmatpush2.bf16.msra.mxu0 0
    %2243 = vmatprep.subr.bf16.mxu0 0
    %2244 = vmatpush2.bf16.msra.mxu0 0
    %2245 = vmatprep.subr.bf16.mxu0 0
    %2246 = vmatpush2.bf16.msra.mxu0 0
    %2247 = vmatprep.subr.bf16.mxu0 0
    %2248 = vmatpush2.bf16.msra.mxu0 0
    %2249 = vmatprep.subr.bf16.mxu0 0
    %2250 = vmatpush2.bf16.msra.mxu0 0
    %2251 = vmatprep.subr.bf16.mxu0 0
    %2252 = vmatpush2.bf16.msra.mxu0 0
    %2253 = vmatprep.subr.bf16.mxu0 0
    %2254 = vmatpush2.bf16.msra.mxu0 0
    %2255 = vmatprep.subr.bf16.mxu0 0
    %2256 = vmatpush2.bf16.msra.mxu0 0
    %2257 = vmatprep.mubr.bf16.mxu0 0
    %2258 = vmatmul.mubr.bf16.gmra.mxu0 %v2034
    %v2259 = vpop.f32.mrf.mxu0
    %v2260 = vadd.f32 %v2006, %v2259
    %v2261 = vpop.f32.mrf.mxu0
    %v2262 = vpop.f32.mrf.mxu0
    %v2263 = vadd.f32 %v2006, %v2262
    %v2264 = vpop.f32.mrf.mxu0
    %2265 = vmatprep.mubr.bf16.mxu0 0
    %2266 = vmatmul.mubr.bf16.gmra.mxu0 %v2037
    %v2267 = vpop.f32.mrf.mxu0
    %v2268 = vadd.f32 %v2006, %v2267
    %v2269 = vpop.f32.mrf.mxu0
    %v2270 = vpop.f32.mrf.mxu0
    %v2271 = vadd.f32 %v2006, %v2270
    %v2272 = vpop.f32.mrf.mxu0
    %2273 = vmatprep.mubr.bf16.mxu0 0
    %2274 = vmatmul.mubr.bf16.gmra.mxu0 %v2040
    %v2275 = vpop.f32.mrf.mxu0
    %v2276 = vadd.f32 %v2006, %v2275
    %v2277 = vpop.f32.mrf.mxu0
    %v2278 = vpop.f32.mrf.mxu0
    %v2279 = vadd.f32 %v2006, %v2278
    %v2280 = vpop.f32.mrf.mxu0
    %2281 = vmatprep.mubr.bf16.mxu0 0
    %2282 = vmatmul.mubr.bf16.gmra.mxu0 %v2043
    %v2283 = vpop.f32.mrf.mxu0
    %v2284 = vadd.f32 %v2006, %v2283
    %v2285 = vpop.f32.mrf.mxu0
    %v2286 = vpop.f32.mrf.mxu0
    %v2287 = vadd.f32 %v2006, %v2286
    %v2288 = vpop.f32.mrf.mxu0
    %2289 = vmatprep.mubr.bf16.mxu0 0
    %2290 = vmatmul.mubr.bf16.gmra.mxu0 %v2046
    %v2291 = vpop.f32.mrf.mxu0
    %v2292 = vadd.f32 %v2006, %v2291
    %v2293 = vpop.f32.mrf.mxu0
    %v2294 = vpop.f32.mrf.mxu0
    %v2295 = vadd.f32 %v2006, %v2294
    %v2296 = vpop.f32.mrf.mxu0
    %2297 = vmatprep.mubr.bf16.mxu0 0
    %2298 = vmatmul.mubr.bf16.gmra.mxu0 %v2049
    %v2299 = vpop.f32.mrf.mxu0
    %v2300 = vadd.f32 %v2006, %v2299
    %v2301 = vpop.f32.mrf.mxu0
    %v2302 = vpop.f32.mrf.mxu0
    %v2303 = vadd.f32 %v2006, %v2302
    %v2304 = vpop.f32.mrf.mxu0
    %2305 = vmatprep.mubr.bf16.mxu0 0
    %2306 = vmatmul.mubr.bf16.gmra.mxu0 %v2052
    %v2307 = vpop.f32.mrf.mxu0
    %v2308 = vadd.f32 %v2006, %v2307
    %v2309 = vpop.f32.mrf.mxu0
    %v2310 = vpop.f32.mrf.mxu0
    %v2311 = vadd.f32 %v2006, %v2310
    %v2312 = vpop.f32.mrf.mxu0
    %2313 = vmatprep.mubr.bf16.mxu0 0
    %2314 = vmatmul.mubr.bf16.gmra.mxu0 %v2055
    %v2315 = vpop.f32.mrf.mxu0
    %v2316 = vadd.f32 %v2006, %v2315
    %v2317 = vpop.f32.mrf.mxu0
    %v2318 = vpop.f32.mrf.mxu0
    %v2319 = vadd.f32 %v2006, %v2318
    %v2320 = vpop.f32.mrf.mxu0
    %2321 = vmatprep.mubr.bf16.mxu0 0
    %2322 = vmatmul.mubr.bf16.gmra.mxu0 %v2058
    %v2323 = vpop.f32.mrf.mxu0
    %v2324 = vadd.f32 %v2006, %v2323
    %v2325 = vpop.f32.mrf.mxu0
    %v2326 = vpop.f32.mrf.mxu0
    %v2327 = vadd.f32 %v2006, %v2326
    %v2328 = vpop.f32.mrf.mxu0
    %2329 = vmatprep.mubr.bf16.mxu0 0
    %2330 = vmatmul.mubr.bf16.gmra.mxu0 %v2061
    %v2331 = vpop.f32.mrf.mxu0
    %v2332 = vadd.f32 %v2006, %v2331
    %v2333 = vpop.f32.mrf.mxu0
    %v2334 = vpop.f32.mrf.mxu0
    %v2335 = vadd.f32 %v2006, %v2334
    %v2336 = vpop.f32.mrf.mxu0
    %2337 = vmatprep.mubr.bf16.mxu0 0
    %2338 = vmatmul.mubr.bf16.gmra.mxu0 %v2064
    %v2339 = vpop.f32.mrf.mxu0
    %v2340 = vadd.f32 %v2006, %v2339
    %v2341 = vpop.f32.mrf.mxu0
    %v2342 = vpop.f32.mrf.mxu0
    %v2343 = vadd.f32 %v2006, %v2342
    %v2344 = vpop.f32.mrf.mxu0
    %2345 = vmatprep.mubr.bf16.mxu0 0
    %2346 = vmatmul.mubr.bf16.gmra.mxu0 %v2067
    %v2347 = vpop.f32.mrf.mxu0
    %v2348 = vadd.f32 %v2006, %v2347
    %v2349 = vpop.f32.mrf.mxu0
    %v2350 = vpop.f32.mrf.mxu0
    %v2351 = vadd.f32 %v2006, %v2350
    %v2352 = vpop.f32.mrf.mxu0
    %2353 = vmatprep.mubr.bf16.mxu0 0
    %2354 = vmatmul.mubr.bf16.gmra.mxu0 %v2070
    %v2355 = vpop.f32.mrf.mxu0
    %v2356 = vadd.f32 %v2006, %v2355
    %v2357 = vpop.f32.mrf.mxu0
    %v2358 = vpop.f32.mrf.mxu0
    %v2359 = vadd.f32 %v2006, %v2358
    %v2360 = vpop.f32.mrf.mxu0
    %2361 = vmatprep.mubr.bf16.mxu0 0
    %2362 = vmatmul.mubr.bf16.gmra.mxu0 %v2073
    %v2363 = vpop.f32.mrf.mxu0
    %v2364 = vadd.f32 %v2006, %v2363
    %v2365 = vpop.f32.mrf.mxu0
    %v2366 = vpop.f32.mrf.mxu0
    %v2367 = vadd.f32 %v2006, %v2366
    %v2368 = vpop.f32.mrf.mxu0
    %2369 = vmatprep.mubr.bf16.mxu0 0
    %2370 = vmatmul.mubr.bf16.gmra.mxu0 %v2076
    %v2371 = vpop.f32.mrf.mxu0
    %v2372 = vadd.f32 %v2006, %v2371
    %v2373 = vpop.f32.mrf.mxu0
    %v2374 = vpop.f32.mrf.mxu0
    %v2375 = vadd.f32 %v2006, %v2374
    %v2376 = vpop.f32.mrf.mxu0
    %2377 = vmatprep.mubr.bf16.mxu0 0
    %2378 = vmatmul.mubr.bf16.gmra.mxu0 %v2079
    %v2379 = vpop.f32.mrf.mxu0
    %v2380 = vadd.f32 %v2006, %v2379
    %v2381 = vpop.f32.mrf.mxu0
    %v2382 = vpop.f32.mrf.mxu0
    %v2383 = vadd.f32 %v2006, %v2382
    %v2384 = vpop.f32.mrf.mxu0
    %2385 = vmatprep.mubr.bf16.mxu0 0
    %2386 = vmatmul.mubr.bf16.gmra.mxu0 %v2082
    %v2387 = vpop.f32.mrf.mxu0
    %v2388 = vadd.f32 %v2006, %v2387
    %v2389 = vpop.f32.mrf.mxu0
    %v2390 = vpop.f32.mrf.mxu0
    %v2391 = vadd.f32 %v2006, %v2390
    %v2392 = vpop.f32.mrf.mxu0
    %2393 = vmatprep.mubr.bf16.mxu0 0
    %2394 = vmatmul.mubr.bf16.gmra.mxu0 %v2085
    %v2395 = vpop.f32.mrf.mxu0
    %v2396 = vadd.f32 %v2006, %v2395
    %v2397 = vpop.f32.mrf.mxu0
    %v2398 = vpop.f32.mrf.mxu0
    %v2399 = vadd.f32 %v2006, %v2398
    %v2400 = vpop.f32.mrf.mxu0
    %2401 = vmatprep.mubr.bf16.mxu0 0
    %2402 = vmatmul.mubr.bf16.gmra.mxu0 %v2088
    %v2403 = vpop.f32.mrf.mxu0
    %v2404 = vadd.f32 %v2006, %v2403
    %v2405 = vpop.f32.mrf.mxu0
    %v2406 = vpop.f32.mrf.mxu0
    %v2407 = vadd.f32 %v2006, %v2406
    %v2408 = vpop.f32.mrf.mxu0
    %2409 = vmatprep.mubr.bf16.mxu0 0
    %2410 = vmatmul.mubr.bf16.gmra.mxu0 %v2091
    %v2411 = vpop.f32.mrf.mxu0
    %v2412 = vadd.f32 %v2006, %v2411
    %v2413 = vpop.f32.mrf.mxu0
    %v2414 = vpop.f32.mrf.mxu0
    %v2415 = vadd.f32 %v2006, %v2414
    %v2416 = vpop.f32.mrf.mxu0
    %2417 = vmatprep.mubr.bf16.mxu0 0
    %2418 = vmatmul.mubr.bf16.gmra.mxu0 %v2094
    %v2419 = vpop.f32.mrf.mxu0
    %v2420 = vadd.f32 %v2006, %v2419
    %v2421 = vpop.f32.mrf.mxu0
    %v2422 = vpop.f32.mrf.mxu0
    %v2423 = vadd.f32 %v2006, %v2422
    %v2424 = vpop.f32.mrf.mxu0
    %2425 = vmatprep.mubr.bf16.mxu0 0
    %2426 = vmatmul.mubr.bf16.gmra.mxu0 %v2097
    %v2427 = vpop.f32.mrf.mxu0
    %v2428 = vadd.f32 %v2006, %v2427
    %v2429 = vpop.f32.mrf.mxu0
    %v2430 = vpop.f32.mrf.mxu0
    %v2431 = vadd.f32 %v2006, %v2430
    %v2432 = vpop.f32.mrf.mxu0
    %2433 = vmatprep.mubr.bf16.mxu0 0
    %2434 = vmatmul.mubr.bf16.gmra.mxu0 %v2100
    %v2435 = vpop.f32.mrf.mxu0
    %v2436 = vadd.f32 %v2006, %v2435
    %v2437 = vpop.f32.mrf.mxu0
    %v2438 = vpop.f32.mrf.mxu0
    %v2439 = vadd.f32 %v2006, %v2438
    %v2440 = vpop.f32.mrf.mxu0
    %2441 = vmatprep.mubr.bf16.mxu0 0
    %2442 = vmatmul.mubr.bf16.gmra.mxu0 %v2103
    %v2443 = vpop.f32.mrf.mxu0
    %v2444 = vadd.f32 %v2006, %v2443
    %v2445 = vpop.f32.mrf.mxu0
    %v2446 = vpop.f32.mrf.mxu0
    %v2447 = vadd.f32 %v2006, %v2446
    %v2448 = vpop.f32.mrf.mxu0
    %2449 = vmatprep.mubr.bf16.mxu0 0
    %2450 = vmatmul.mubr.bf16.gmra.mxu0 %v2106
    %v2451 = vpop.f32.mrf.mxu0
    %v2452 = vadd.f32 %v2006, %v2451
    %v2453 = vpop.f32.mrf.mxu0
    %v2454 = vpop.f32.mrf.mxu0
    %v2455 = vadd.f32 %v2006, %v2454
    %v2456 = vpop.f32.mrf.mxu0
    %2457 = vmatprep.mubr.bf16.mxu0 0
    %2458 = vmatmul.mubr.bf16.gmra.mxu0 %v2109
    %v2459 = vpop.f32.mrf.mxu0
    %v2460 = vadd.f32 %v2006, %v2459
    %v2461 = vpop.f32.mrf.mxu0
    %v2462 = vpop.f32.mrf.mxu0
    %v2463 = vadd.f32 %v2006, %v2462
    %v2464 = vpop.f32.mrf.mxu0
    %2465 = vmatprep.mubr.bf16.mxu0 0
    %2466 = vmatmul.mubr.bf16.gmra.mxu0 %v2112
    %v2467 = vpop.f32.mrf.mxu0
    %v2468 = vadd.f32 %v2006, %v2467
    %v2469 = vpop.f32.mrf.mxu0
    %v2470 = vpop.f32.mrf.mxu0
    %v2471 = vadd.f32 %v2006, %v2470
    %v2472 = vpop.f32.mrf.mxu0
    %2473 = vmatprep.mubr.bf16.mxu0 0
    %2474 = vmatmul.mubr.bf16.gmra.mxu0 %v2115
    %v2475 = vpop.f32.mrf.mxu0
    %v2476 = vadd.f32 %v2006, %v2475
    %v2477 = vpop.f32.mrf.mxu0
    %v2478 = vpop.f32.mrf.mxu0
    %v2479 = vadd.f32 %v2006, %v2478
    %v2480 = vpop.f32.mrf.mxu0
    %2481 = vmatprep.mubr.bf16.mxu0 0
    %2482 = vmatmul.mubr.bf16.gmra.mxu0 %v2118
    %v2483 = vpop.f32.mrf.mxu0
    %v2484 = vadd.f32 %v2006, %v2483
    %v2485 = vpop.f32.mrf.mxu0
    %v2486 = vpop.f32.mrf.mxu0
    %v2487 = vadd.f32 %v2006, %v2486
    %v2488 = vpop.f32.mrf.mxu0
    %2489 = vmatprep.mubr.bf16.mxu0 0
    %2490 = vmatmul.mubr.bf16.gmra.mxu0 %v2121
    %v2491 = vpop.f32.mrf.mxu0
    %v2492 = vadd.f32 %v2006, %v2491
    %v2493 = vpop.f32.mrf.mxu0
    %v2494 = vpop.f32.mrf.mxu0
    %v2495 = vadd.f32 %v2006, %v2494
    %v2496 = vpop.f32.mrf.mxu0
    %2497 = vmatprep.mubr.bf16.mxu0 0
    %2498 = vmatmul.mubr.bf16.gmra.mxu0 %v2124
    %v2499 = vpop.f32.mrf.mxu0
    %v2500 = vadd.f32 %v2006, %v2499
    %v2501 = vpop.f32.mrf.mxu0
    %v2502 = vpop.f32.mrf.mxu0
    %v2503 = vadd.f32 %v2006, %v2502
    %v2504 = vpop.f32.mrf.mxu0
    %2505 = vmatprep.mubr.bf16.mxu0 0
    %2506 = vmatmul.mubr.bf16.gmra.mxu0 %v2127
    %v2507 = vpop.f32.mrf.mxu0
    %v2508 = vadd.f32 %v2006, %v2507
    %v2509 = vpop.f32.mrf.mxu0
    %v2510 = vpop.f32.mrf.mxu0
    %v2511 = vadd.f32 %v2006, %v2510
    %v2512 = vpop.f32.mrf.mxu0
    %2513 = vmatprep.mubr.bf16.mxu0 0
    %2514 = vmatmul.mubr.bf16.gmra.mxu0 %v2130
    %v2515 = vpop.f32.mrf.mxu0
    %v2516 = vadd.f32 %v2006, %v2515
    %v2517 = vpop.f32.mrf.mxu0
    %v2518 = vpop.f32.mrf.mxu0
    %v2519 = vadd.f32 %v2006, %v2518
    %v2520 = vpop.f32.mrf.mxu0
    %2521 = vmatprep.mubr.bf16.mxu0 0
    %2522 = vmatmul.mubr.bf16.gmra.mxu0 %v2133
    %v2523 = vpop.f32.mrf.mxu0
    %v2524 = vadd.f32 %v2006, %v2523
    %v2525 = vpop.f32.mrf.mxu0
    %v2526 = vpop.f32.mrf.mxu0
    %v2527 = vadd.f32 %v2006, %v2526
    %v2528 = vpop.f32.mrf.mxu0
    %2529 = vmatprep.mubr.bf16.mxu0 0
    %2530 = vmatmul.mubr.bf16.gmra.mxu0 %v2136
    %v2531 = vpop.f32.mrf.mxu0
    %v2532 = vadd.f32 %v2006, %v2531
    %v2533 = vpop.f32.mrf.mxu0
    %v2534 = vpop.f32.mrf.mxu0
    %v2535 = vadd.f32 %v2006, %v2534
    %v2536 = vpop.f32.mrf.mxu0
    %2537 = vmatprep.mubr.bf16.mxu0 0
    %2538 = vmatmul.mubr.bf16.gmra.mxu0 %v2139
    %v2539 = vpop.f32.mrf.mxu0
    %v2540 = vadd.f32 %v2006, %v2539
    %v2541 = vpop.f32.mrf.mxu0
    %v2542 = vpop.f32.mrf.mxu0
    %v2543 = vadd.f32 %v2006, %v2542
    %v2544 = vpop.f32.mrf.mxu0
    %2545 = vmatprep.mubr.bf16.mxu0 0
    %2546 = vmatmul.mubr.bf16.gmra.mxu0 %v2142
    %v2547 = vpop.f32.mrf.mxu0
    %v2548 = vadd.f32 %v2006, %v2547
    %v2549 = vpop.f32.mrf.mxu0
    %v2550 = vpop.f32.mrf.mxu0
    %v2551 = vadd.f32 %v2006, %v2550
    %v2552 = vpop.f32.mrf.mxu0
    %2553 = vmatprep.mubr.bf16.mxu0 0
    %2554 = vmatmul.mubr.bf16.gmra.mxu0 %v2145
    %v2555 = vpop.f32.mrf.mxu0
    %v2556 = vadd.f32 %v2006, %v2555
    %v2557 = vpop.f32.mrf.mxu0
    %v2558 = vpop.f32.mrf.mxu0
    %v2559 = vadd.f32 %v2006, %v2558
    %v2560 = vpop.f32.mrf.mxu0
    %2561 = vmatprep.mubr.bf16.mxu0 0
    %2562 = vmatmul.mubr.bf16.gmra.mxu0 %v2148
    %v2563 = vpop.f32.mrf.mxu0
    %v2564 = vadd.f32 %v2006, %v2563
    %v2565 = vpop.f32.mrf.mxu0
    %v2566 = vpop.f32.mrf.mxu0
    %v2567 = vadd.f32 %v2006, %v2566
    %v2568 = vpop.f32.mrf.mxu0
    %2569 = vmatprep.mubr.bf16.mxu0 0
    %2570 = vmatmul.mubr.bf16.gmra.mxu0 %v2151
    %v2571 = vpop.f32.mrf.mxu0
    %v2572 = vadd.f32 %v2006, %v2571
    %v2573 = vpop.f32.mrf.mxu0
    %v2574 = vpop.f32.mrf.mxu0
    %v2575 = vadd.f32 %v2006, %v2574
    %v2576 = vpop.f32.mrf.mxu0
    %2577 = vmatprep.mubr.bf16.mxu0 0
    %2578 = vmatmul.mubr.bf16.gmra.mxu0 %v2154
    %v2579 = vpop.f32.mrf.mxu0
    %v2580 = vadd.f32 %v2006, %v2579
    %v2581 = vpop.f32.mrf.mxu0
    %v2582 = vpop.f32.mrf.mxu0
    %v2583 = vadd.f32 %v2006, %v2582
    %v2584 = vpop.f32.mrf.mxu0
    %2585 = vmatprep.mubr.bf16.mxu0 0
    %2586 = vmatmul.mubr.bf16.gmra.mxu0 %v2157
    %v2587 = vpop.f32.mrf.mxu0
    %v2588 = vadd.f32 %v2006, %v2587
    %v2589 = vpop.f32.mrf.mxu0
    %v2590 = vpop.f32.mrf.mxu0
    %v2591 = vadd.f32 %v2006, %v2590
    %v2592 = vpop.f32.mrf.mxu0
    %2593 = vmatprep.mubr.bf16.mxu0 0
    %2594 = vmatmul.mubr.bf16.gmra.mxu0 %v2160
    %v2595 = vpop.f32.mrf.mxu0
    %v2596 = vadd.f32 %v2006, %v2595
    %v2597 = vpop.f32.mrf.mxu0
    %v2598 = vpop.f32.mrf.mxu0
    %v2599 = vadd.f32 %v2006, %v2598
    %v2600 = vpop.f32.mrf.mxu0
    %2601 = vmatprep.mubr.bf16.mxu0 0
    %2602 = vmatmul.mubr.bf16.gmra.mxu0 %v2163
    %v2603 = vpop.f32.mrf.mxu0
    %v2604 = vadd.f32 %v2006, %v2603
    %v2605 = vpop.f32.mrf.mxu0
    %v2606 = vpop.f32.mrf.mxu0
    %v2607 = vadd.f32 %v2006, %v2606
    %v2608 = vpop.f32.mrf.mxu0
    %2609 = vmatprep.mubr.bf16.mxu0 0
    %2610 = vmatmul.mubr.bf16.gmra.mxu0 %v2166
    %v2611 = vpop.f32.mrf.mxu0
    %v2612 = vadd.f32 %v2006, %v2611
    %v2613 = vpop.f32.mrf.mxu0
    %v2614 = vpop.f32.mrf.mxu0
    %v2615 = vadd.f32 %v2006, %v2614
    %v2616 = vpop.f32.mrf.mxu0
    %2617 = vmatprep.mubr.bf16.mxu0 0
    %2618 = vmatmul.mubr.bf16.gmra.mxu0 %v2169
    %v2619 = vpop.f32.mrf.mxu0
    %v2620 = vadd.f32 %v2006, %v2619
    %v2621 = vpop.f32.mrf.mxu0
    %v2622 = vpop.f32.mrf.mxu0
    %v2623 = vadd.f32 %v2006, %v2622
    %v2624 = vpop.f32.mrf.mxu0
    %2625 = vmatprep.mubr.bf16.mxu0 0
    %2626 = vmatmul.mubr.bf16.gmra.mxu0 %v2172
    %v2627 = vpop.f32.mrf.mxu0
    %v2628 = vadd.f32 %v2006, %v2627
    %v2629 = vpop.f32.mrf.mxu0
    %v2630 = vpop.f32.mrf.mxu0
    %v2631 = vadd.f32 %v2006, %v2630
    %v2632 = vpop.f32.mrf.mxu0
    %2633 = vmatprep.mubr.bf16.mxu0 0
    %2634 = vmatmul.mubr.bf16.gmra.mxu0 %v2175
    %v2635 = vpop.f32.mrf.mxu0
    %v2636 = vadd.f32 %v2006, %v2635
    %v2637 = vpop.f32.mrf.mxu0
    %v2638 = vpop.f32.mrf.mxu0
    %v2639 = vadd.f32 %v2006, %v2638
    %v2640 = vpop.f32.mrf.mxu0
    %2641 = vmatprep.mubr.bf16.mxu0 0
    %2642 = vmatmul.mubr.bf16.gmra.mxu0 %v2178
    %v2643 = vpop.f32.mrf.mxu0
    %v2644 = vadd.f32 %v2006, %v2643
    %v2645 = vpop.f32.mrf.mxu0
    %v2646 = vpop.f32.mrf.mxu0
    %v2647 = vadd.f32 %v2006, %v2646
    %v2648 = vpop.f32.mrf.mxu0
    %2649 = vmatprep.mubr.bf16.mxu0 0
    %2650 = vmatmul.mubr.bf16.gmra.mxu0 %v2181
    %v2651 = vpop.f32.mrf.mxu0
    %v2652 = vadd.f32 %v2006, %v2651
    %v2653 = vpop.f32.mrf.mxu0
    %v2654 = vpop.f32.mrf.mxu0
    %v2655 = vadd.f32 %v2006, %v2654
    %v2656 = vpop.f32.mrf.mxu0
    %2657 = vmatprep.mubr.bf16.mxu0 0
    %2658 = vmatmul.mubr.bf16.gmra.mxu0 %v2184
    %v2659 = vpop.f32.mrf.mxu0
    %v2660 = vadd.f32 %v2006, %v2659
    %v2661 = vpop.f32.mrf.mxu0
    %v2662 = vpop.f32.mrf.mxu0
    %v2663 = vadd.f32 %v2006, %v2662
    %v2664 = vpop.f32.mrf.mxu0
    %2665 = vmatprep.mubr.bf16.mxu0 0
    %2666 = vmatmul.mubr.bf16.gmra.mxu0 %v2187
    %v2667 = vpop.f32.mrf.mxu0
    %v2668 = vadd.f32 %v2006, %v2667
    %v2669 = vpop.f32.mrf.mxu0
    %v2670 = vpop.f32.mrf.mxu0
    %v2671 = vadd.f32 %v2006, %v2670
    %v2672 = vpop.f32.mrf.mxu0
    %2673 = vmatprep.mubr.bf16.mxu0 0
    %2674 = vmatmul.mubr.bf16.gmra.mxu0 %v2190
    %v2675 = vpop.f32.mrf.mxu0
    %v2676 = vadd.f32 %v2006, %v2675
    %v2677 = vpop.f32.mrf.mxu0
    %v2678 = vpop.f32.mrf.mxu0
    %v2679 = vadd.f32 %v2006, %v2678
    %v2680 = vpop.f32.mrf.mxu0
    %2681 = vmatprep.mubr.bf16.mxu0 0
    %2682 = vmatmul.mubr.bf16.gmra.mxu0 %v2193
    %v2683 = vpop.f32.mrf.mxu0
    %v2684 = vadd.f32 %v2006, %v2683
    %v2685 = vpop.f32.mrf.mxu0
    %v2686 = vpop.f32.mrf.mxu0
    %v2687 = vadd.f32 %v2006, %v2686
    %v2688 = vpop.f32.mrf.mxu0
    %2689 = vmatprep.mubr.bf16.mxu0 0
    %2690 = vmatmul.mubr.bf16.gmra.mxu0 %v2196
    %v2691 = vpop.f32.mrf.mxu0
    %v2692 = vadd.f32 %v2006, %v2691
    %v2693 = vpop.f32.mrf.mxu0
    %v2694 = vpop.f32.mrf.mxu0
    %v2695 = vadd.f32 %v2006, %v2694
    %v2696 = vpop.f32.mrf.mxu0
    %2697 = vmatprep.mubr.bf16.mxu0 0
    %2698 = vmatmul.mubr.bf16.gmra.mxu0 %v2199
    %v2699 = vpop.f32.mrf.mxu0
    %v2700 = vadd.f32 %v2006, %v2699
    %v2701 = vpop.f32.mrf.mxu0
    %v2702 = vpop.f32.mrf.mxu0
    %v2703 = vadd.f32 %v2006, %v2702
    %v2704 = vpop.f32.mrf.mxu0
    %2705 = vmatprep.mubr.bf16.mxu0 0
    %2706 = vmatmul.mubr.bf16.gmra.mxu0 %v2202
    %v2707 = vpop.f32.mrf.mxu0
    %v2708 = vadd.f32 %v2006, %v2707
    %v2709 = vpop.f32.mrf.mxu0
    %v2710 = vpop.f32.mrf.mxu0
    %v2711 = vadd.f32 %v2006, %v2710
    %v2712 = vpop.f32.mrf.mxu0
    %2713 = vmatprep.mubr.bf16.mxu0 0
    %2714 = vmatmul.mubr.bf16.gmra.mxu0 %v2205
    %v2715 = vpop.f32.mrf.mxu0
    %v2716 = vadd.f32 %v2006, %v2715
    %v2717 = vpop.f32.mrf.mxu0
    %v2718 = vpop.f32.mrf.mxu0
    %v2719 = vadd.f32 %v2006, %v2718
    %v2720 = vpop.f32.mrf.mxu0
    %2721 = vmatprep.mubr.bf16.mxu0 0
    %2722 = vmatmul.mubr.bf16.gmra.mxu0 %v2208
    %v2723 = vpop.f32.mrf.mxu0
    %v2724 = vadd.f32 %v2006, %v2723
    %v2725 = vpop.f32.mrf.mxu0
    %v2726 = vpop.f32.mrf.mxu0
    %v2727 = vadd.f32 %v2006, %v2726
    %v2728 = vpop.f32.mrf.mxu0
    %2729 = vmatprep.mubr.bf16.mxu0 0
    %2730 = vmatmul.mubr.bf16.gmra.mxu0 %v2211
    %v2731 = vpop.f32.mrf.mxu0
    %v2732 = vadd.f32 %v2006, %v2731
    %v2733 = vpop.f32.mrf.mxu0
    %v2734 = vpop.f32.mrf.mxu0
    %v2735 = vadd.f32 %v2006, %v2734
    %v2736 = vpop.f32.mrf.mxu0
    %2737 = vmatprep.mubr.bf16.mxu0 0
    %2738 = vmatmul.mubr.bf16.gmra.mxu0 %v2214
    %v2739 = vpop.f32.mrf.mxu0
    %v2740 = vadd.f32 %v2006, %v2739
    %v2741 = vpop.f32.mrf.mxu0
    %v2742 = vpop.f32.mrf.mxu0
    %v2743 = vadd.f32 %v2006, %v2742
    %v2744 = vpop.f32.mrf.mxu0
    %2745 = vmatprep.mubr.bf16.mxu0 0
    %2746 = vmatmul.mubr.bf16.gmra.mxu0 %v2217
    %v2747 = vpop.f32.mrf.mxu0
    %v2748 = vadd.f32 %v2006, %v2747
    %v2749 = vpop.f32.mrf.mxu0
    %v2750 = vpop.f32.mrf.mxu0
    %v2751 = vadd.f32 %v2006, %v2750
    %v2752 = vpop.f32.mrf.mxu0
    %2753 = vmatprep.mubr.bf16.mxu0 0
    %2754 = vmatmul.mubr.bf16.gmra.mxu0 %v2220
    %v2755 = vpop.f32.mrf.mxu0
    %v2756 = vadd.f32 %v2006, %v2755
    %v2757 = vpop.f32.mrf.mxu0
    %v2758 = vpop.f32.mrf.mxu0
    %v2759 = vadd.f32 %v2006, %v2758
    %v2760 = vpop.f32.mrf.mxu0
    %2761 = vmatprep.mubr.bf16.mxu0 0
    %2762 = vmatmul.mubr.bf16.gmra.mxu0 %v2223
    %v2763 = vpop.f32.mrf.mxu0
    %v2764 = vadd.f32 %v2006, %v2763
    %v2765 = vpop.f32.mrf.mxu0
    %v2766 = vpop.f32.mrf.mxu0
    %v2767 = vadd.f32 %v2006, %v2766
    %v2768 = vpop.f32.mrf.mxu0
    %2769 = vdwg.mxu0
    %v2770 = vmax.f32 %v2260, 0.0
    %v2771 = vmax.f32 %v2263, 0.0
    %v2772 = vmax.f32 %v2268, 0.0
    %v2773 = vmax.f32 %v2271, 0.0
    %v2774 = vmax.f32 %v2276, 0.0
    %v2775 = vmax.f32 %v2279, 0.0
    %v2776 = vmax.f32 %v2284, 0.0
    %v2777 = vmax.f32 %v2287, 0.0
    %v2778 = vmax.f32 %v2292, 0.0
    %v2779 = vmax.f32 %v2295, 0.0
    %v2780 = vmax.f32 %v2300, 0.0
    %v2781 = vmax.f32 %v2303, 0.0
    %v2782 = vmax.f32 %v2308, 0.0
    %v2783 = vmax.f32 %v2311, 0.0
    %v2784 = vmax.f32 %v2316, 0.0
    %v2785 = vmax.f32 %v2319, 0.0
    %v2786 = vmax.f32 %v2324, 0.0
    %v2787 = vmax.f32 %v2327, 0.0
    %v2788 = vmax.f32 %v2332, 0.0
    %v2789 = vmax.f32 %v2335, 0.0
    %v2790 = vmax.f32 %v2340, 0.0
    %v2791 = vmax.f32 %v2343, 0.0
    %v2792 = vmax.f32 %v2348, 0.0
    %v2793 = vmax.f32 %v2351, 0.0
    %v2794 = vmax.f32 %v2356, 0.0
    %v2795 = vmax.f32 %v2359, 0.0
    %v2796 = vmax.f32 %v2364, 0.0
    %v2797 = vmax.f32 %v2367, 0.0
    %v2798 = vmax.f32 %v2372, 0.0
    %v2799 = vmax.f32 %v2375, 0.0
    %v2800 = vmax.f32 %v2380, 0.0
    %v2801 = vmax.f32 %v2383, 0.0
    %v2802 = vmax.f32 %v2388, 0.0
    %v2803 = vmax.f32 %v2391, 0.0
    %v2804 = vmax.f32 %v2396, 0.0
    %v2805 = vmax.f32 %v2399, 0.0
    %v2806 = vmax.f32 %v2404, 0.0
    %v2807 = vmax.f32 %v2407, 0.0
    %v2808 = vmax.f32 %v2412, 0.0
    %v2809 = vmax.f32 %v2415, 0.0
    %v2810 = vmax.f32 %v2420, 0.0
    %v2811 = vmax.f32 %v2423, 0.0
    %v2812 = vmax.f32 %v2428, 0.0
    %v2813 = vmax.f32 %v2431, 0.0
    %v2814 = vmax.f32 %v2436, 0.0
    %v2815 = vmax.f32 %v2439, 0.0
    %v2816 = vmax.f32 %v2444, 0.0
    %v2817 = vmax.f32 %v2447, 0.0
    %v2818 = vmax.f32 %v2452, 0.0
    %v2819 = vmax.f32 %v2455, 0.0
    %v2820 = vmax.f32 %v2460, 0.0
    %v2821 = vmax.f32 %v2463, 0.0
    %v2822 = vmax.f32 %v2468, 0.0
    %v2823 = vmax.f32 %v2471, 0.0
    %v2824 = vmax.f32 %v2476, 0.0
    %v2825 = vmax.f32 %v2479, 0.0
    %v2826 = vmax.f32 %v2484, 0.0
    %v2827 = vmax.f32 %v2487, 0.0
    %v2828 = vmax.f32 %v2492, 0.0
    %v2829 = vmax.f32 %v2495, 0.0
    %v2830 = vmax.f32 %v2500, 0.0
    %v2831 = vmax.f32 %v2503, 0.0
    %v2832 = vmax.f32 %v2508, 0.0
    %v2833 = vmax.f32 %v2511, 0.0
    %v2834 = vmax.f32 %v2516, 0.0
    %v2835 = vmax.f32 %v2519, 0.0
    %v2836 = vmax.f32 %v2524, 0.0
    %v2837 = vmax.f32 %v2527, 0.0
    %v2838 = vmax.f32 %v2532, 0.0
    %v2839 = vmax.f32 %v2535, 0.0
    %v2840 = vmax.f32 %v2540, 0.0
    %v2841 = vmax.f32 %v2543, 0.0
    %v2842 = vmax.f32 %v2548, 0.0
    %v2843 = vmax.f32 %v2551, 0.0
    %v2844 = vmax.f32 %v2556, 0.0
    %v2845 = vmax.f32 %v2559, 0.0
    %v2846 = vmax.f32 %v2564, 0.0
    %v2847 = vmax.f32 %v2567, 0.0
    %v2848 = vmax.f32 %v2572, 0.0
    %v2849 = vmax.f32 %v2575, 0.0
    %v2850 = vmax.f32 %v2580, 0.0
    %v2851 = vmax.f32 %v2583, 0.0
    %v2852 = vmax.f32 %v2588, 0.0
    %v2853 = vmax.f32 %v2591, 0.0
    %v2854 = vmax.f32 %v2596, 0.0
    %v2855 = vmax.f32 %v2599, 0.0
    %v2856 = vmax.f32 %v2604, 0.0
    %v2857 = vmax.f32 %v2607, 0.0
    %v2858 = vmax.f32 %v2612, 0.0
    %v2859 = vmax.f32 %v2615, 0.0
    %v2860 = vmax.f32 %v2620, 0.0
    %v2861 = vmax.f32 %v2623, 0.0
    %v2862 = vmax.f32 %v2628, 0.0
    %v2863 = vmax.f32 %v2631, 0.0
    %v2864 = vmax.f32 %v2636, 0.0
    %v2865 = vmax.f32 %v2639, 0.0
    %v2866 = vmax.f32 %v2644, 0.0
    %v2867 = vmax.f32 %v2647, 0.0
    %v2868 = vmax.f32 %v2652, 0.0
    %v2869 = vmax.f32 %v2655, 0.0
    %v2870 = vmax.f32 %v2660, 0.0
    %v2871 = vmax.f32 %v2663, 0.0
    %v2872 = vmax.f32 %v2668, 0.0
    %v2873 = vmax.f32 %v2671, 0.0
    %v2874 = vmax.f32 %v2676, 0.0
    %v2875 = vmax.f32 %v2679, 0.0
    %v2876 = vmax.f32 %v2684, 0.0
    %v2877 = vmax.f32 %v2687, 0.0
    %v2878 = vmax.f32 %v2692, 0.0
    %v2879 = vmax.f32 %v2695, 0.0
    %v2880 = vmax.f32 %v2700, 0.0
    %v2881 = vmax.f32 %v2703, 0.0
    %v2882 = vmax.f32 %v2708, 0.0
    %v2883 = vmax.f32 %v2711, 0.0
    %v2884 = vmax.f32 %v2716, 0.0
    %v2885 = vmax.f32 %v2719, 0.0
    %v2886 = vmax.f32 %v2724, 0.0
    %v2887 = vmax.f32 %v2727, 0.0
    %v2888 = vmax.f32 %v2732, 0.0
    %v2889 = vmax.f32 %v2735, 0.0
    %v2890 = vmax.f32 %v2740, 0.0
    %v2891 = vmax.f32 %v2743, 0.0
    %v2892 = vmax.f32 %v2748, 0.0
    %v2893 = vmax.f32 %v2751, 0.0
    %v2894 = vmax.f32 %v2756, 0.0
    %v2895 = vmax.f32 %v2759, 0.0
    %v2896 = vmax.f32 %v2764, 0.0
    %v2897 = vmax.f32 %v2767, 0.0
    %v2898 = vld [vmem:[%s7] sm:$0xff]
    %vm2899 = vcmask 261120
    %v2901 = vsel %vm2899, %v2898, 0
    %v2904 = vsel %vm2899, %v2770, 0
    %v2907 = vsel %vm2899, %v2771, 0
    %v2910 = vsel %vm2899, %v2772, 0
    %v2913 = vsel %vm2899, %v2773, 0
    %v2916 = vsel %vm2899, %v2774, 0
    %v2919 = vsel %vm2899, %v2775, 0
    %v2922 = vsel %vm2899, %v2776, 0
    %v2925 = vsel %vm2899, %v2777, 0
    %v2928 = vsel %vm2899, %v2778, 0
    %v2931 = vsel %vm2899, %v2779, 0
    %v2934 = vsel %vm2899, %v2780, 0
    %v2937 = vsel %vm2899, %v2781, 0
    %v2940 = vsel %vm2899, %v2782, 0
    %v2943 = vsel %vm2899, %v2783, 0
    %v2946 = vsel %vm2899, %v2784, 0
    %v2949 = vsel %vm2899, %v2785, 0
    %v2952 = vsel %vm2899, %v2786, 0
    %v2955 = vsel %vm2899, %v2787, 0
    %v2958 = vsel %vm2899, %v2788, 0
    %v2961 = vsel %vm2899, %v2789, 0
    %v2964 = vsel %vm2899, %v2790, 0
    %v2967 = vsel %vm2899, %v2791, 0
    %v2970 = vsel %vm2899, %v2792, 0
    %v2973 = vsel %vm2899, %v2793, 0
    %v2976 = vsel %vm2899, %v2794, 0
    %v2979 = vsel %vm2899, %v2795, 0
    %v2982 = vsel %vm2899, %v2796, 0
    %v2985 = vsel %vm2899, %v2797, 0
    %v2988 = vsel %vm2899, %v2798, 0
    %v2991 = vsel %vm2899, %v2799, 0
    %v2994 = vsel %vm2899, %v2800, 0
    %v2997 = vsel %vm2899, %v2801, 0
    %v3000 = vsel %vm2899, %v2802, 0
    %v3003 = vsel %vm2899, %v2803, 0
    %v3006 = vsel %vm2899, %v2804, 0
    %v3009 = vsel %vm2899, %v2805, 0
    %v3012 = vsel %vm2899, %v2806, 0
    %v3015 = vsel %vm2899, %v2807, 0
    %v3018 = vsel %vm2899, %v2808, 0
    %v3021 = vsel %vm2899, %v2809, 0
    %v3024 = vsel %vm2899, %v2810, 0
    %v3027 = vsel %vm2899, %v2811, 0
    %v3030 = vsel %vm2899, %v2812, 0
    %v3033 = vsel %vm2899, %v2813, 0
    %v3036 = vsel %vm2899, %v2814, 0
    %v3039 = vsel %vm2899, %v2815, 0
    %v3042 = vsel %vm2899, %v2816, 0
    %v3045 = vsel %vm2899, %v2817, 0
    %v3048 = vsel %vm2899, %v2818, 0
    %v3051 = vsel %vm2899, %v2819, 0
    %v3054 = vsel %vm2899, %v2820, 0
    %v3057 = vsel %vm2899, %v2821, 0
    %v3060 = vsel %vm2899, %v2822, 0
    %v3063 = vsel %vm2899, %v2823, 0
    %v3066 = vsel %vm2899, %v2824, 0
    %v3069 = vsel %vm2899, %v2825, 0
    %v3072 = vsel %vm2899, %v2826, 0
    %v3075 = vsel %vm2899, %v2827, 0
    %v3078 = vsel %vm2899, %v2828, 0
    %v3081 = vsel %vm2899, %v2829, 0
    %v3084 = vsel %vm2899, %v2830, 0
    %v3087 = vsel %vm2899, %v2831, 0
    %v3090 = vsel %vm2899, %v2832, 0
    %v3093 = vsel %vm2899, %v2833, 0
    %v3096 = vsel %vm2899, %v2834, 0
    %v3099 = vsel %vm2899, %v2835, 0
    %v3102 = vsel %vm2899, %v2836, 0
    %v3105 = vsel %vm2899, %v2837, 0
    %v3108 = vsel %vm2899, %v2838, 0
    %v3111 = vsel %vm2899, %v2839, 0
    %v3114 = vsel %vm2899, %v2840, 0
    %v3117 = vsel %vm2899, %v2841, 0
    %v3120 = vsel %vm2899, %v2842, 0
    %v3123 = vsel %vm2899, %v2843, 0
    %v3126 = vsel %vm2899, %v2844, 0
    %v3129 = vsel %vm2899, %v2845, 0
    %v3132 = vsel %vm2899, %v2846, 0
    %v3135 = vsel %vm2899, %v2847, 0
    %v3138 = vsel %vm2899, %v2848, 0
    %v3141 = vsel %vm2899, %v2849, 0
    %v3144 = vsel %vm2899, %v2850, 0
    %v3147 = vsel %vm2899, %v2851, 0
    %v3150 = vsel %vm2899, %v2852, 0
    %v3153 = vsel %vm2899, %v2853, 0
    %v3156 = vsel %vm2899, %v2854, 0
    %v3159 = vsel %vm2899, %v2855, 0
    %v3162 = vsel %vm2899, %v2856, 0
    %v3165 = vsel %vm2899, %v2857, 0
    %v3168 = vsel %vm2899, %v2858, 0
    %v3171 = vsel %vm2899, %v2859, 0
    %v3174 = vsel %vm2899, %v2860, 0
    %v3177 = vsel %vm2899, %v2861, 0
    %v3180 = vsel %vm2899, %v2862, 0
    %v3183 = vsel %vm2899, %v2863, 0
    %v3186 = vsel %vm2899, %v2864, 0
    %v3189 = vsel %vm2899, %v2865, 0
    %v3192 = vsel %vm2899, %v2866, 0
    %v3195 = vsel %vm2899, %v2867, 0
    %v3198 = vsel %vm2899, %v2868, 0
    %v3201 = vsel %vm2899, %v2869, 0
    %v3204 = vsel %vm2899, %v2870, 0
    %v3207 = vsel %vm2899, %v2871, 0
    %v3210 = vsel %vm2899, %v2872, 0
    %v3213 = vsel %vm2899, %v2873, 0
    %v3216 = vsel %vm2899, %v2874, 0
    %v3219 = vsel %vm2899, %v2875, 0
    %v3222 = vsel %vm2899, %v2876, 0
    %v3225 = vsel %vm2899, %v2877, 0
    %v3228 = vsel %vm2899, %v2878, 0
    %v3231 = vsel %vm2899, %v2879, 0
    %v3234 = vsel %vm2899, %v2880, 0
    %v3237 = vsel %vm2899, %v2881, 0
    %v3240 = vsel %vm2899, %v2882, 0
    %v3243 = vsel %vm2899, %v2883, 0
    %v3246 = vsel %vm2899, %v2884, 0
    %v3249 = vsel %vm2899, %v2885, 0
    %v3252 = vsel %vm2899, %v2886, 0
    %v3255 = vsel %vm2899, %v2887, 0
    %v3258 = vsel %vm2899, %v2888, 0
    %v3261 = vsel %vm2899, %v2889, 0
    %v3264 = vsel %vm2899, %v2890, 0
    %v3267 = vsel %vm2899, %v2891, 0
    %v3270 = vsel %vm2899, %v2892, 0
    %v3273 = vsel %vm2899, %v2893, 0
    %v3276 = vsel %vm2899, %v2894, 0
    %v3279 = vsel %vm2899, %v2895, 0
    %v3282 = vsel %vm2899, %v2896, 0
    %v3285 = vsel %vm2899, %v2897, 0
    %3287 = vmatprep.subr.mxu0 0.0
    %3288 = vmatpush1.xpose.msra.mxu0 %v2949
    %3289 = vmatprep.subr.mxu0 0.0
    %3290 = vmatpush1.xpose.msra.mxu0 %v2946
    %3291 = vmatprep.subr.mxu0 0.0
    %3292 = vmatpush1.xpose.msra.mxu0 %v2943
    %3293 = vmatprep.subr.mxu0 0.0
    %3294 = vmatpush1.xpose.msra.mxu0 %v2940
    %3295 = vmatprep.subr.mxu0 0.0
    %3296 = vmatpush1.xpose.msra.mxu0 %v2937
    %3297 = vmatprep.subr.mxu0 0.0
    %3298 = vmatpush1.xpose.msra.mxu0 %v2934
    %3299 = vmatprep.subr.mxu0 0.0
    %3300 = vmatpush1.xpose.msra.mxu0 %v2931
    %3301 = vmatprep.subr.mxu0 0.0
    %3302 = vmatpush1.xpose.msra.mxu0 %v2928
    %3303 = vmatprep.subr.mxu0 0.0
    %3304 = vmatpush1.xpose.msra.mxu0 %v2925
    %3305 = vmatprep.subr.mxu0 0.0
    %3306 = vmatpush1.xpose.msra.mxu0 %v2922
    %3307 = vmatprep.subr.mxu0 0.0
    %3308 = vmatpush1.xpose.msra.mxu0 %v2919
    %3309 = vmatprep.subr.mxu0 0.0
    %3310 = vmatpush1.xpose.msra.mxu0 %v2916
    %3311 = vmatprep.subr.mxu0 0.0
    %3312 = vmatpush1.xpose.msra.mxu0 %v2913
    %3313 = vmatprep.subr.mxu0 0.0
    %3314 = vmatpush1.xpose.msra.mxu0 %v2910
    %3315 = vmatprep.subr.mxu0 0.0
    %3316 = vmatpush1.xpose.msra.mxu0 %v2907
    %3317 = vmatprep.subr.mxu0 0.0
    %3318 = vmatpush1.xpose.msra.mxu0 %v2904
    %3319 = vmatprep.subr.mxu0 0.0
    %3320 = vmatpush2.xpose.msra.mxu0 %v2997
    %3321 = vmatprep.subr.mxu0 0.0
    %3322 = vmatpush2.xpose.msra.mxu0 %v2994
    %3323 = vmatprep.subr.mxu0 0.0
    %3324 = vmatpush2.xpose.msra.mxu0 %v2991
    %3325 = vmatprep.subr.mxu0 0.0
    %3326 = vmatpush2.xpose.msra.mxu0 %v2988
    %3327 = vmatprep.subr.mxu0 0.0
    %3328 = vmatpush2.xpose.msra.mxu0 %v2985
    %3329 = vmatprep.subr.mxu0 0.0
    %3330 = vmatpush2.xpose.msra.mxu0 %v2982
    %3331 = vmatprep.subr.mxu0 0.0
    %3332 = vmatpush2.xpose.msra.mxu0 %v2979
    %3333 = vmatprep.subr.mxu0 0.0
    %3334 = vmatpush2.xpose.msra.mxu0 %v2976
    %3335 = vmatprep.subr.mxu0 0.0
    %3336 = vmatpush2.xpose.msra.mxu0 %v2973
    %3337 = vmatprep.subr.mxu0 0.0
    %3338 = vmatpush2.xpose.msra.mxu0 %v2970
    %3339 = vmatprep.subr.mxu0 0.0
    %3340 = vmatpush2.xpose.msra.mxu0 %v2967
    %3341 = vmatprep.subr.mxu0 0.0
    %3342 = vmatpush2.xpose.msra.mxu0 %v2964
    %3343 = vmatprep.subr.mxu0 0.0
    %3344 = vmatpush2.xpose.msra.mxu0 %v2961
    %3345 = vmatprep.subr.mxu0 0.0
    %3346 = vmatpush2.xpose.msra.mxu0 %v2958
    %3347 = vmatprep.subr.mxu0 0.0
    %3348 = vmatpush2.xpose.msra.mxu0 %v2955
    %3349 = vmatprep.subr.mxu0 0.0
    %3350 = vmatpush2.xpose.msra.mxu0 %v2952
    %3351 = vmatprep.mubr.f32.mxu0 0.0
    %3352 = vmatmul.mubr.f32.gmra.mxu0 %v2901
    %v3353 = vpop.f32.mrf.mxu0
    %v3354 = vadd.f32 0.0, %v3353
    %v3355 = vpop.f32.mrf.mxu0
    %v3356 = vadd.f32 0.0, %v3355
    %3357 = vdwg.mxu0
    %3358 = vmatprep.subr.mxu0 0.0
    %3359 = vmatpush1.xpose.msra.mxu0 %v3045
    %3360 = vmatprep.subr.mxu0 0.0
    %3361 = vmatpush1.xpose.msra.mxu0 %v3042
    %3362 = vmatprep.subr.mxu0 0.0
    %3363 = vmatpush1.xpose.msra.mxu0 %v3039
    %3364 = vmatprep.subr.mxu0 0.0
    %3365 = vmatpush1.xpose.msra.mxu0 %v3036
    %3366 = vmatprep.subr.mxu0 0.0
    %3367 = vmatpush1.xpose.msra.mxu0 %v3033
    %3368 = vmatprep.subr.mxu0 0.0
    %3369 = vmatpush1.xpose.msra.mxu0 %v3030
    %3370 = vmatprep.subr.mxu0 0.0
    %3371 = vmatpush1.xpose.msra.mxu0 %v3027
    %3372 = vmatprep.subr.mxu0 0.0
    %3373 = vmatpush1.xpose.msra.mxu0 %v3024
    %3374 = vmatprep.subr.mxu0 0.0
    %3375 = vmatpush1.xpose.msra.mxu0 %v3021
    %3376 = vmatprep.subr.mxu0 0.0
    %3377 = vmatpush1.xpose.msra.mxu0 %v3018
    %3378 = vmatprep.subr.mxu0 0.0
    %3379 = vmatpush1.xpose.msra.mxu0 %v3015
    %3380 = vmatprep.subr.mxu0 0.0
    %3381 = vmatpush1.xpose.msra.mxu0 %v3012
    %3382 = vmatprep.subr.mxu0 0.0
    %3383 = vmatpush1.xpose.msra.mxu0 %v3009
    %3384 = vmatprep.subr.mxu0 0.0
    %3385 = vmatpush1.xpose.msra.mxu0 %v3006
    %3386 = vmatprep.subr.mxu0 0.0
    %3387 = vmatpush1.xpose.msra.mxu0 %v3003
    %3388 = vmatprep.subr.mxu0 0.0
    %3389 = vmatpush1.xpose.msra.mxu0 %v3000
    %3390 = vmatprep.subr.mxu0 0.0
    %3391 = vmatpush2.xpose.msra.mxu0 %v3093
    %3392 = vmatprep.subr.mxu0 0.0
    %3393 = vmatpush2.xpose.msra.mxu0 %v3090
    %3394 = vmatprep.subr.mxu0 0.0
    %3395 = vmatpush2.xpose.msra.mxu0 %v3087
    %3396 = vmatprep.subr.mxu0 0.0
    %3397 = vmatpush2.xpose.msra.mxu0 %v3084
    %3398 = vmatprep.subr.mxu0 0.0
    %3399 = vmatpush2.xpose.msra.mxu0 %v3081
    %3400 = vmatprep.subr.mxu0 0.0
    %3401 = vmatpush2.xpose.msra.mxu0 %v3078
    %3402 = vmatprep.subr.mxu0 0.0
    %3403 = vmatpush2.xpose.msra.mxu0 %v3075
    %3404 = vmatprep.subr.mxu0 0.0
    %3405 = vmatpush2.xpose.msra.mxu0 %v3072
    %3406 = vmatprep.subr.mxu0 0.0
    %3407 = vmatpush2.xpose.msra.mxu0 %v3069
    %3408 = vmatprep.subr.mxu0 0.0
    %3409 = vmatpush2.xpose.msra.mxu0 %v3066
    %3410 = vmatprep.subr.mxu0 0.0
    %3411 = vmatpush2.xpose.msra.mxu0 %v3063
    %3412 = vmatprep.subr.mxu0 0.0
    %3413 = vmatpush2.xpose.msra.mxu0 %v3060
    %3414 = vmatprep.subr.mxu0 0.0
    %3415 = vmatpush2.xpose.msra.mxu0 %v3057
    %3416 = vmatprep.subr.mxu0 0.0
    %3417 = vmatpush2.xpose.msra.mxu0 %v3054
    %3418 = vmatprep.subr.mxu0 0.0
    %3419 = vmatpush2.xpose.msra.mxu0 %v3051
    %3420 = vmatprep.subr.mxu0 0.0
    %3421 = vmatpush2.xpose.msra.mxu0 %v3048
    %3422 = vmatprep.mubr.f32.mxu0 0.0
    %3423 = vmatmul.mubr.f32.gmra.mxu0 %v2901
    %v3424 = vpop.f32.mrf.mxu0
    %v3425 = vadd.f32 0.0, %v3424
    %v3426 = vpop.f32.mrf.mxu0
    %v3427 = vadd.f32 0.0, %v3426
    %3428 = vdwg.mxu0
    %3429 = vmatprep.subr.mxu0 0.0
    %3430 = vmatpush1.xpose.msra.mxu0 %v3141
    %3431 = vmatprep.subr.mxu0 0.0
    %3432 = vmatpush1.xpose.msra.mxu0 %v3138
    %3433 = vmatprep.subr.mxu0 0.0
    %3434 = vmatpush1.xpose.msra.mxu0 %v3135
    %3435 = vmatprep.subr.mxu0 0.0
    %3436 = vmatpush1.xpose.msra.mxu0 %v3132
    %3437 = vmatprep.subr.mxu0 0.0
    %3438 = vmatpush1.xpose.msra.mxu0 %v3129
    %3439 = vmatprep.subr.mxu0 0.0
    %3440 = vmatpush1.xpose.msra.mxu0 %v3126
    %3441 = vmatprep.subr.mxu0 0.0
    %3442 = vmatpush1.xpose.msra.mxu0 %v3123
    %3443 = vmatprep.subr.mxu0 0.0
    %3444 = vmatpush1.xpose.msra.mxu0 %v3120
    %3445 = vmatprep.subr.mxu0 0.0
    %3446 = vmatpush1.xpose.msra.mxu0 %v3117
    %3447 = vmatprep.subr.mxu0 0.0
    %3448 = vmatpush1.xpose.msra.mxu0 %v3114
    %3449 = vmatprep.subr.mxu0 0.0
    %3450 = vmatpush1.xpose.msra.mxu0 %v3111
    %3451 = vmatprep.subr.mxu0 0.0
    %3452 = vmatpush1.xpose.msra.mxu0 %v3108
    %3453 = vmatprep.subr.mxu0 0.0
    %3454 = vmatpush1.xpose.msra.mxu0 %v3105
    %3455 = vmatprep.subr.mxu0 0.0
    %3456 = vmatpush1.xpose.msra.mxu0 %v3102
    %3457 = vmatprep.subr.mxu0 0.0
    %3458 = vmatpush1.xpose.msra.mxu0 %v3099
    %3459 = vmatprep.subr.mxu0 0.0
    %3460 = vmatpush1.xpose.msra.mxu0 %v3096
    %3461 = vmatprep.subr.mxu0 0.0
    %3462 = vmatpush2.xpose.msra.mxu0 %v3189
    %3463 = vmatprep.subr.mxu0 0.0
    %3464 = vmatpush2.xpose.msra.mxu0 %v3186
    %3465 = vmatprep.subr.mxu0 0.0
    %3466 = vmatpush2.xpose.msra.mxu0 %v3183
    %3467 = vmatprep.subr.mxu0 0.0
    %3468 = vmatpush2.xpose.msra.mxu0 %v3180
    %3469 = vmatprep.subr.mxu0 0.0
    %3470 = vmatpush2.xpose.msra.mxu0 %v3177
    %3471 = vmatprep.subr.mxu0 0.0
    %3472 = vmatpush2.xpose.msra.mxu0 %v3174
    %3473 = vmatprep.subr.mxu0 0.0
    %3474 = vmatpush2.xpose.msra.mxu0 %v3171
    %3475 = vmatprep.subr.mxu0 0.0
    %3476 = vmatpush2.xpose.msra.mxu0 %v3168
    %3477 = vmatprep.subr.mxu0 0.0
    %3478 = vmatpush2.xpose.msra.mxu0 %v3165
    %3479 = vmatprep.subr.mxu0 0.0
    %3480 = vmatpush2.xpose.msra.mxu0 %v3162
    %3481 = vmatprep.subr.mxu0 0.0
    %3482 = vmatpush2.xpose.msra.mxu0 %v3159
    %3483 = vmatprep.subr.mxu0 0.0
    %3484 = vmatpush2.xpose.msra.mxu0 %v3156
    %3485 = vmatprep.subr.mxu0 0.0
    %3486 = vmatpush2.xpose.msra.mxu0 %v3153
    %3487 = vmatprep.subr.mxu0 0.0
    %3488 = vmatpush2.xpose.msra.mxu0 %v3150
    %3489 = vmatprep.subr.mxu0 0.0
    %3490 = vmatpush2.xpose.msra.mxu0 %v3147
    %3491 = vmatprep.subr.mxu0 0.0
    %3492 = vmatpush2.xpose.msra.mxu0 %v3144
    %3493 = vmatprep.mubr.f32.mxu0 0.0
    %3494 = vmatmul.mubr.f32.gmra.mxu0 %v2901
    %v3495 = vpop.f32.mrf.mxu0
    %v3496 = vadd.f32 0.0, %v3495
    %v3497 = vpop.f32.mrf.mxu0
    %v3498 = vadd.f32 0.0, %v3497
    %3499 = vdwg.mxu0
    %3500 = vmatprep.subr.mxu0 0.0
    %3501 = vmatpush1.xpose.msra.mxu0 %v3237
    %3502 = vmatprep.subr.mxu0 0.0
    %3503 = vmatpush1.xpose.msra.mxu0 %v3234
    %3504 = vmatprep.subr.mxu0 0.0
    %3505 = vmatpush1.xpose.msra.mxu0 %v3231
    %3506 = vmatprep.subr.mxu0 0.0
    %3507 = vmatpush1.xpose.msra.mxu0 %v3228
    %3508 = vmatprep.subr.mxu0 0.0
    %3509 = vmatpush1.xpose.msra.mxu0 %v3225
    %3510 = vmatprep.subr.mxu0 0.0
    %3511 = vmatpush1.xpose.msra.mxu0 %v3222
    %3512 = vmatprep.subr.mxu0 0.0
    %3513 = vmatpush1.xpose.msra.mxu0 %v3219
    %3514 = vmatprep.subr.mxu0 0.0
    %3515 = vmatpush1.xpose.msra.mxu0 %v3216
    %3516 = vmatprep.subr.mxu0 0.0
    %3517 = vmatpush1.xpose.msra.mxu0 %v3213
    %3518 = vmatprep.subr.mxu0 0.0
    %3519 = vmatpush1.xpose.msra.mxu0 %v3210
    %3520 = vmatprep.subr.mxu0 0.0
    %3521 = vmatpush1.xpose.msra.mxu0 %v3207
    %3522 = vmatprep.subr.mxu0 0.0
    %3523 = vmatpush1.xpose.msra.mxu0 %v3204
    %3524 = vmatprep.subr.mxu0 0.0
    %3525 = vmatpush1.xpose.msra.mxu0 %v3201
    %3526 = vmatprep.subr.mxu0 0.0
    %3527 = vmatpush1.xpose.msra.mxu0 %v3198
    %3528 = vmatprep.subr.mxu0 0.0
    %3529 = vmatpush1.xpose.msra.mxu0 %v3195
    %3530 = vmatprep.subr.mxu0 0.0
    %3531 = vmatpush1.xpose.msra.mxu0 %v3192
    %3532 = vmatprep.subr.mxu0 0.0
    %3533 = vmatpush2.xpose.msra.mxu0 %v3285
    %3534 = vmatprep.subr.mxu0 0.0
    %3535 = vmatpush2.xpose.msra.mxu0 %v3282
    %3536 = vmatprep.subr.mxu0 0.0
    %3537 = vmatpush2.xpose.msra.mxu0 %v3279
    %3538 = vmatprep.subr.mxu0 0.0
    %3539 = vmatpush2.xpose.msra.mxu0 %v3276
    %3540 = vmatprep.subr.mxu0 0.0
    %3541 = vmatpush2.xpose.msra.mxu0 %v3273
    %3542 = vmatprep.subr.mxu0 0.0
    %3543 = vmatpush2.xpose.msra.mxu0 %v3270
    %3544 = vmatprep.subr.mxu0 0.0
    %3545 = vmatpush2.xpose.msra.mxu0 %v3267
    %3546 = vmatprep.subr.mxu0 0.0
    %3547 = vmatpush2.xpose.msra.mxu0 %v3264
    %3548 = vmatprep.subr.mxu0 0.0
    %3549 = vmatpush2.xpose.msra.mxu0 %v3261
    %3550 = vmatprep.subr.mxu0 0.0
    %3551 = vmatpush2.xpose.msra.mxu0 %v3258
    %3552 = vmatprep.subr.mxu0 0.0
    %3553 = vmatpush2.xpose.msra.mxu0 %v3255
    %3554 = vmatprep.subr.mxu0 0.0
    %3555 = vmatpush2.xpose.msra.mxu0 %v3252
    %3556 = vmatprep.subr.mxu0 0.0
    %3557 = vmatpush2.xpose.msra.mxu0 %v3249
    %3558 = vmatprep.subr.mxu0 0.0
    %3559 = vmatpush2.xpose.msra.mxu0 %v3246
    %3560 = vmatprep.subr.mxu0 0.0
    %3561 = vmatpush2.xpose.msra.mxu0 %v3243
    %3562 = vmatprep.subr.mxu0 0.0
    %3563 = vmatpush2.xpose.msra.mxu0 %v3240
    %3564 = vmatprep.mubr.f32.mxu0 0.0
    %3565 = vmatmul.mubr.f32.gmra.mxu0 %v2901
    %v3566 = vpop.f32.mrf.mxu0
    %v3567 = vadd.f32 0.0, %v3566
    %v3568 = vpop.f32.mrf.mxu0
    %v3569 = vadd.f32 0.0, %v3568
    %3570 = vdwg.mxu0
    %v3571 = vld [vmem:[#allocation2] sm:$0x1]
    %3573 = vset.pattern.permute.xlu0 0
    %3574 = vperm.xlu0 %3573, %v3571
    %v3575 = vpop.permute.xlu0 %3574
    %v3577 = vlaneseq
    %v3578 = vshrl.u32 %v3577, 7
    %v3579 = vsub.s32 0, %v3578
    %v3580 = vrot.slane %v3575, %v3579
    %v3581 = vadd.f32 %v3354, %v3580
    %v3582 = vadd.f32 %v3356, %v3580
    %v3583 = vadd.f32 %v3425, %v3580
    %v3584 = vadd.f32 %v3427, %v3580
    %v3585 = vadd.f32 %v3496, %v3580
    %v3586 = vadd.f32 %v3498, %v3580
    %v3587 = vadd.f32 %v3567, %v3580
    %v3588 = vadd.f32 %v3569, %v3580
    %v3589 = vsub.f32 0.0, %v3581
    %v3590 = vsub.f32 0.0, %v3582
    %v3591 = vsub.f32 0.0, %v3583
    %v3592 = vsub.f32 0.0, %v3584
    %v3593 = vsub.f32 0.0, %v3585
    %v3594 = vsub.f32 0.0, %v3586
    %v3595 = vsub.f32 0.0, %v3587
    %v3596 = vsub.f32 0.0, %v3588
    %v3597 = vmul.f32 %v3589, 1.442695
    %v3598 = vpow.pop %v3597
    %v3599 = vmul.f32 %v3590, 1.442695
    %v3600 = vpow.pop %v3599
    %v3601 = vmul.f32 %v3591, 1.442695
    %v3602 = vpow.pop %v3601
    %v3603 = vmul.f32 %v3592, 1.442695
    %v3604 = vpow.pop %v3603
    %v3605 = vmul.f32 %v3593, 1.442695
    %v3606 = vpow.pop %v3605
    %v3607 = vmul.f32 %v3594, 1.442695
    %v3608 = vpow.pop %v3607
    %v3609 = vmul.f32 %v3595, 1.442695
    %v3610 = vpow.pop %v3609
    %v3611 = vmul.f32 %v3596, 1.442695
    %v3612 = vpow.pop %v3611
    %v3613 = vadd.f32 %v3598, 1.0
    %v3614 = vadd.f32 %v3600, 1.0
    %v3615 = vadd.f32 %v3602, 1.0
    %v3616 = vadd.f32 %v3604, 1.0
    %v3617 = vadd.f32 %v3606, 1.0
    %v3618 = vadd.f32 %v3608, 1.0
    %v3619 = vadd.f32 %v3610, 1.0
    %v3620 = vadd.f32 %v3612, 1.0
    %v3621 = vrcp.pop %v3613
    %v3622 = vrcp.pop %v3614
    %v3623 = vrcp.pop %v3615
    %v3624 = vrcp.pop %v3616
    %v3625 = vrcp.pop %v3617
    %v3626 = vrcp.pop %v3618
    %v3627 = vrcp.pop %v3619
    %v3628 = vrcp.pop %v3620
    %v3637 = vcombine.low %v3621, %v3622
    %v3638 = vcombine.low %v3623, %v3624
    %v3639 = vcombine.low %v3625, %v3626
    %v3640 = vcombine.low %v3627, %v3628
    %v3642 = vunpack.c.l.s4 1966171168
    %v3643 = vunpack.c.0.s8 %v3642
    %v3644 = vlaneseq
    %v3645 = vshrl.u32 %v3644, 7
    %v3646 = vsub.s32 %v3643, %v3645
    %v3647 = vrot.slane %v3637, %v3646
    %v3649 = vunpack.c.l.s4 1966171168
    %v3650 = vunpack.c.0.s8 %v3649
    %v3651 = vlaneseq
    %v3652 = vshrl.u32 %v3651, 7
    %v3653 = vsub.s32 %v3650, %v3652
    %v3654 = vrot.slane %v3638, %v3653
    %v3656 = vunpack.c.l.s4 1966171168
    %v3657 = vunpack.c.0.s8 %v3656
    %v3658 = vlaneseq
    %v3659 = vshrl.u32 %v3658, 7
    %v3660 = vsub.s32 %v3657, %v3659
    %v3661 = vrot.slane %v3639, %v3660
    %v3663 = vunpack.c.l.s4 1966171168
    %v3664 = vunpack.c.0.s8 %v3663
    %v3665 = vlaneseq
    %v3666 = vshrl.u32 %v3665, 7
    %v3667 = vsub.s32 %v3664, %v3666
    %v3668 = vrot.slane %v3640, %v3667
    %v3669 = vcombine.low %v3647, %v3654
    %v3670 = vcombine.low %v3661, %v3668
    %v3672 = vunpack.c.l.s4 1966171168
    %v3673 = vunpack.c.0.s8 %v3672
    %v3674 = vlaneseq
    %v3675 = vshrl.u32 %v3674, 7
    %v3676 = vsub.s32 %v3673, %v3675
    %v3677 = vrot.slane %v3669, %v3676
    %v3679 = vunpack.c.l.s4 1966171168
    %v3680 = vunpack.c.0.s8 %v3679
    %v3681 = vlaneseq
    %v3682 = vshrl.u32 %v3681, 7
    %v3683 = vsub.s32 %v3680, %v3682
    %v3684 = vrot.slane %v3670, %v3683
    %v3685 = vcombine.low %v3677, %v3684
    %3687 = vst [vmem:[#allocation8] sm:$0xff] %v3685
    // Predicated region
    $region46: #{tpu_custom_call.1} parent=1 // pred_check
      _
    $region47: #{tpu_custom_call.1} parent=1 // pred_check_branch
      %3689 = sbr.rel (0) target = $region49
    $region48: #{tpu_custom_call.1} parent=1 // pred_region
      %s3691 = ssub.s32 128, 128
      %3692 = vsyncadd [#allocation5], %s3691
      %s3694 = sshll.u32 [#allocation8], 4
      %s3695 = int_to_ptr.vmem [resolvable:$true] %s3694
      %3697 = dma.vmem_to_hbm [thread:$0]  %s3695, 128, %s9, [#allocation5]
    $region49: #{tpu_custom_call.1} parent=1 // pred_fallthru
      _
    // Predicated region
    $region50: #{tpu_custom_call.1} parent=1 // pred_check
      _
    $region51: #{tpu_custom_call.1} parent=1 // pred_check_branch
      %3699 = sbr.rel (0) target = $region53
    $region52: #{tpu_custom_call.1} parent=1 // pred_region
      %3700 = dma.done [#allocation5], 128
    $region53: #{tpu_custom_call.1} parent=1 // pred_fallthru
      _
    %3701 = vsyncpa [#allocation4], 1
    %3702 = vsyncpa [#allocation7], 1
    %3703 = vsyncpa [#allocation5], 1

</llo_original>
